<compile_context>
chip_gen: v7x
topology: tpu7x:2x2x1
jax: 0.10.0
libtpu: 0.0.40
codegen_flags: <defaults>
</compile_context>

<pallas_src>
import jax
import jax.numpy as jnp
from jax.experimental import pallas as pl
from jax.experimental.pallas import tpu as pltpu

# Stage geometry: (H_in, W_in, Cin, H_conv, H_pool, W_pool, Cout)
#   28x28x1 -> 26x26x16 -> 13x13x16
#   13x13x16 -> 11x11x32 ->  5x 5x32
#    5x 5x32 ->  3x 3x16 ->  1x 1x16
_STAGES = (
    (28, 28, 1, 26, 13, 13, 16),
    (13, 13, 16, 11, 5, 5, 32),
    (5, 5, 32, 3, 1, 1, 16),
)


# ---------------------------------------------------------------------------
# Fused kernel: one grid step processes a block of `tb` images stacked along
# the row axis.  Activations are 2-D [tb*H, W*C] slabs (channels fastest on
# the lane axis); everything stays in VMEM/vregs.
# ---------------------------------------------------------------------------
def _fused_cnn_kernel(x_ref,
                      w1_ref, b1_ref, se1_ref, so1_ref,
                      w2_ref, b2_ref, se2_ref, so2_ref,
                      w3_ref, b3_ref, se3_ref, so3_ref,
                      wl_ref, bl_ref, o_ref):
    f32 = jnp.float32

    def conv_relu_pool(x, bw_ref, bias_ref, se_ref, so_ref):
        # x      : [tb*H_in, W_in*Cin]      stacked activations (value)
        # bw_ref : [3, 2, W_in*Cin, Wp*Cout] banded conv weights (dy, W-parity)
        # bias   : [1, Wp*Cout]
        # se/so  : [tb*Hp, tb*H_in - 2]     block-diagonal 0/1 row selectors
        r = x.shape[0] - 2
        acc_e = jnp.dot(x[0:r, :], bw_ref[0, 0], preferred_element_type=f32)
        acc_o = jnp.dot(x[0:r, :], bw_ref[0, 1], preferred_element_type=f32)
        for dy in (1, 2):
            xs = x[dy:dy + r, :]
            acc_e = acc_e + jnp.dot(xs, bw_ref[dy, 0], preferred_element_type=f32)
            acc_o = acc_o + jnp.dot(xs, bw_ref[dy, 1], preferred_element_type=f32)
        # W-direction pool (parity max) + bias + ReLU (max/ReLU/bias commute).
        y = jnp.maximum(jnp.maximum(acc_e, acc_o) + bias_ref[...], 0.0)
        # H-direction pool: block-diagonal 0/1 row-selection matmuls over the
        # whole batch block (rows beyond each image's valid conv rows are never
        # selected, so the cross-image "garbage" rows in the slabs are harmless).
        return jnp.maximum(jnp.dot(se_ref[...], y, preferred_element_type=f32),
                           jnp.dot(so_ref[...], y, preferred_element_type=f32))

    act = x_ref[...].astype(f32)                                  # [tb*28, 28]
    act = conv_relu_pool(act, w1_ref, b1_ref, se1_ref, so1_ref)   # [tb*13, 208]
    act = conv_relu_pool(act, w2_ref, b2_ref, se2_ref, so2_ref)   # [tb*5, 160]
    act = conv_relu_pool(act, w3_ref, b3_ref, se3_ref, so3_ref)   # [tb, 16]
    logits = jnp.dot(act, wl_ref[...], preferred_element_type=f32) + bl_ref[...]
    o_ref[...] = logits.astype(o_ref.dtype)                       # [tb, 10]


# ---------------------------------------------------------------------------
# Wrapper-side weight re-layout (pure JAX, negligible cost).
# ---------------------------------------------------------------------------
def _banded_conv_weight(w_oihw, w_in, wp):
    """PyTorch conv weight [Cout,Cin,3,3] -> banded matmul weights.

    B[dy, ex, w*Cin+ci, p*Cout+co] = sum_dx [w == 2p+ex+dx] * W[co,ci,dy,dx],
    so a contiguous row slab [*, W*Cin] of the activation times B[dy,ex]
    accumulates the conv output restricted to output columns w_out = 2p+ex;
    im2col and the W half of the 2x2 pool are folded into the operand.
    """
    w = jnp.transpose(w_oihw, (2, 3, 1, 0)).astype(jnp.float32)   # [3,3,Cin,Cout]
    kh, kw, cin, cout = w.shape
    w_idx = jnp.arange(w_in)[None, None, :, None]
    p_idx = jnp.arange(wp)[None, None, None, :]
    ex_idx = jnp.arange(2)[:, None, None, None]
    dx_idx = jnp.arange(kw)[None, :, None, None]
    mask = (w_idx == 2 * p_idx + ex_idx + dx_idx).astype(jnp.float32)  # [2,3,W,wp]
    b = jnp.einsum("xdwp,ydio->yxwipo", mask, w)       # [3,2,W,Cin,wp,Cout]
    return b.reshape(kh, 2, w_in * cin, wp * cout)


def _pool_select_mats(tb, h_in, h_pool):
    """Block-diagonal 0/1 selectors for the H half of the 2x2 max-pool.

    se[b*Hp + p, b*H_in + 2p] = 1  and  so[b*Hp + p, b*H_in + 2p + 1] = 1,
    so pooled = max(se @ y, so @ y) for the whole stacked block at once.
    Columns match the conv-slab row count tb*H_in - 2.
    """
    rows = tb * h_pool
    cols = tb * h_in - 2
    q = jnp.arange(rows)
    tgt = (q // h_pool) * h_in + 2 * (q % h_pool)
    c = jnp.arange(cols)
    se = (c[None, :] == tgt[:, None]).astype(jnp.float32)
    so = (c[None, :] == (tgt + 1)[:, None]).astype(jnp.float32)
    return se, so


def mnist_cnn_forward(x_nchw, params, *, batch_block=8):
    """x_nchw: [N, 1, 28, 28] float32 (PyTorch NCHW) -> logits [N, 10]."""
    n = x_nchw.shape[0]
    tb = max(1, min(batch_block, n))
    if tb < n and tb % 2 == 1:
        tb += 1            # keep (tb*28) sublane-aligned when the grid has >1 step
    n_pad = -(-n // tb) * tb

    x = x_nchw.reshape(n, 28, 28).astype(jnp.float32)   # Cin == 1
    if n_pad != n:
        x = jnp.pad(x, ((0, n_pad - n), (0, 0), (0, 0)))
    x = x.reshape(n_pad * 28, 28)                        # batch stacked along rows

    operands = []
    for idx, (h_in, w_in, _cin, _ho, hp, wp, cout) in enumerate(_STAGES, start=1):
        operands.append(_banded_conv_weight(params[f"w{idx}"], w_in, wp))
        operands.append(
            jnp.tile(params[f"b{idx}"].astype(jnp.float32), wp).reshape(1, wp * cout))
        operands.extend(_pool_select_mats(tb, h_in, hp))
    operands.append(params["wl"].astype(jnp.float32).T)            # [16, 10]
    operands.append(params["bl"].astype(jnp.float32).reshape(1, 10))

    def full_spec(a):
        nd = a.ndim
        return pl.BlockSpec(a.shape, lambda i, nd=nd: (0,) * nd)   # VMEM-resident

    out = pl.pallas_call(
        _fused_cnn_kernel,
        out_shape=jax.ShapeDtypeStruct((n_pad, 10), jnp.float32),
        grid=(n_pad // tb,),
        in_specs=[pl.BlockSpec((tb * 28, 28), lambda i: (i, 0))]
                 + [full_spec(a) for a in operands],
        out_specs=pl.BlockSpec((tb, 10), lambda i: (i, 0)),
        compiler_params=pltpu.CompilerParams(
            dimension_semantics=("parallel",)),          # megacore on v7x
    )(x, *operands)
    return out[:n]


# ---------------------------------------------------------------------------
# PyTorch-layout params + plain-JAX reference (numerical sanity check).
# ---------------------------------------------------------------------------
def init_params(key):
    def uniform(k, shape, fan_in):
        bound = 1.0 / (fan_in ** 0.5)
        return jax.random.uniform(k, shape, jnp.float32, -bound, bound)

    ks = jax.random.split(key, 8)
    return {
        "w1": uniform(ks[0], (16, 1, 3, 3), 9),      # Conv2d(1, 16, 3)  [O,I,kH,kW]
        "b1": uniform(ks[1], (16,), 9),
        "w2": uniform(ks[2], (32, 16, 3, 3), 144),   # Conv2d(16, 32, 3)
        "b2": uniform(ks[3], (32,), 144),
        "w3": uniform(ks[4], (16, 32, 3, 3), 288),   # Conv2d(32, 16, 3)
        "b3": uniform(ks[5], (16,), 288),
        "wl": uniform(ks[6], (10, 16), 16),          # Linear(16, 10)  [out, in]
        "bl": uniform(ks[7], (10,), 16),
    }


def _reference_forward(x_nchw, params):
    x = x_nchw.astype(jnp.float32)

    def conv_relu(x, w, b):
        y = jax.lax.conv_general_dilated(
            x, w.astype(jnp.float32), window_strides=(1, 1), padding="VALID",
            dimension_numbers=("NCHW", "OIHW", "NCHW"),
            precision=jax.lax.Precision.HIGHEST)
        return jax.nn.relu(y + b.reshape(1, -1, 1, 1))

    def pool(x):
        return jax.lax.reduce_window(x, -jnp.inf, jax.lax.max,
                                     (1, 1, 2, 2), (1, 1, 2, 2), "VALID")

    x = pool(conv_relu(x, params["w1"], params["b1"]))
    x = pool(conv_relu(x, params["w2"], params["b2"]))
    x = pool(conv_relu(x, params["w3"], params["b3"]))
    x = x.reshape(x.shape[0], -1)
    return jnp.dot(x, params["wl"].T,
                   precision=jax.lax.Precision.HIGHEST) + params["bl"]


if __name__ == "__main__":
    key = jax.random.PRNGKey(0)
    k_x, k_p = jax.random.split(key)
    # 28x28 input is required by the module: three (conv3 + pool2) stages
    # reduce it to 1x1x16, matching flatten -> Linear(16, 10).
    x = jax.random.normal(k_x, (2, 1, 28, 28), jnp.float32)
    params = init_params(k_p)

    out = jax.block_until_ready(jax.jit(mnist_cnn_forward)(x, params))
    assert out.shape == (2, 10) and out.dtype == jnp.float32

    ref = jax.block_until_ready(jax.jit(_reference_forward)(x, params))
    max_err = float(jnp.max(jnp.abs(out - ref)))
    assert max_err < 2e-2, f"kernel/reference mismatch: max abs err {max_err}"
    print("KERNEL_OK")
</pallas_src>

<mosaic_0001>
module attributes {stable_mosaic.version = 11 : i64} {
  func.func @_fused_cnn_kernel(%arg0: i32, %arg1: memref<56x28xf32, #tpu.memory_space<vmem>>, %arg2: memref<3x2x28x208xf32, #tpu.memory_space<vmem>>, %arg3: memref<1x208xf32, #tpu.memory_space<vmem>>, %arg4: memref<26x54xf32, #tpu.memory_space<vmem>>, %arg5: memref<26x54xf32, #tpu.memory_space<vmem>>, %arg6: memref<3x2x208x160xf32, #tpu.memory_space<vmem>>, %arg7: memref<1x160xf32, #tpu.memory_space<vmem>>, %arg8: memref<10x24xf32, #tpu.memory_space<vmem>>, %arg9: memref<10x24xf32, #tpu.memory_space<vmem>>, %arg10: memref<3x2x160x16xf32, #tpu.memory_space<vmem>>, %arg11: memref<1x16xf32, #tpu.memory_space<vmem>>, %arg12: memref<2x8xf32, #tpu.memory_space<vmem>>, %arg13: memref<2x8xf32, #tpu.memory_space<vmem>>, %arg14: memref<16x10xf32, #tpu.memory_space<vmem>>, %arg15: memref<1x10xf32, #tpu.memory_space<vmem>>, %arg16: memref<2x10xf32, #tpu.memory_space<vmem>>) attributes {dimension_semantics = [#tpu.dimension_semantics<parallel>], iteration_bounds = array<i64: 1>, scalar_prefetch = 0 : i64, scratch_operands = 0 : i64, tpu.core_type = #tpu.core_type<tc>, window_params = [{transform_indices = @transform_0, window_bounds = array<i64: 56, 28>}, {pipeline_mode = #tpu.pipeline_mode<synchronous>, transform_indices = @transform_1, window_bounds = array<i64: 3, 2, 28, 208>}, {pipeline_mode = #tpu.pipeline_mode<synchronous>, transform_indices = @transform_2, window_bounds = array<i64: 1, 208>}, {pipeline_mode = #tpu.pipeline_mode<synchronous>, transform_indices = @transform_3, window_bounds = array<i64: 26, 54>}, {pipeline_mode = #tpu.pipeline_mode<synchronous>, transform_indices = @transform_4, window_bounds = array<i64: 26, 54>}, {pipeline_mode = #tpu.pipeline_mode<synchronous>, transform_indices = @transform_5, window_bounds = array<i64: 3, 2, 208, 160>}, {pipeline_mode = #tpu.pipeline_mode<synchronous>, transform_indices = @transform_6, window_bounds = array<i64: 1, 160>}, {pipeline_mode = #tpu.pipeline_mode<synchronous>, transform_indices = @transform_7, window_bounds = array<i64: 10, 24>}, {pipeline_mode = #tpu.pipeline_mode<synchronous>, transform_indices = @transform_8, window_bounds = array<i64: 10, 24>}, {pipeline_mode = #tpu.pipeline_mode<synchronous>, transform_indices = @transform_9, window_bounds = array<i64: 3, 2, 160, 16>}, {pipeline_mode = #tpu.pipeline_mode<synchronous>, transform_indices = @transform_10, window_bounds = array<i64: 1, 16>}, {pipeline_mode = #tpu.pipeline_mode<synchronous>, transform_indices = @transform_11, window_bounds = array<i64: 2, 8>}, {pipeline_mode = #tpu.pipeline_mode<synchronous>, transform_indices = @transform_12, window_bounds = array<i64: 2, 8>}, {pipeline_mode = #tpu.pipeline_mode<synchronous>, transform_indices = @transform_13, window_bounds = array<i64: 16, 10>}, {pipeline_mode = #tpu.pipeline_mode<synchronous>, transform_indices = @transform_14, window_bounds = array<i64: 1, 10>}, {transform_indices = @transform_15, window_bounds = array<i64: 2, 10>}]} {
    %c0 = arith.constant 0 : index
    %c0_0 = arith.constant 0 : index
    %0 = vector.load %arg1[%c0, %c0_0] : memref<56x28xf32, #tpu.memory_space<vmem>>, vector<56x28xf32>
    %1 = vector.extract_strided_slice %0 {offsets = [0, 0], sizes = [54, 28], strides = [1, 1]} : vector<56x28xf32> to vector<54x28xf32>
    %c0_1 = arith.constant 0 : index
    %c0_2 = arith.constant 0 : index
    %c0_3 = arith.constant 0 : index
    %c0_4 = arith.constant 0 : index
    %2 = vector.load %arg2[%c0_1, %c0_2, %c0_3, %c0_4] : memref<3x2x28x208xf32, #tpu.memory_space<vmem>>, vector<1x1x28x208xf32>
    %3 = vector.shape_cast %2 : vector<1x1x28x208xf32> to vector<28x208xf32>
    %cst = arith.constant dense<0.000000e+00> : vector<54x208xf32>
    %4 = tpu.matmul %1, %3, %cst {dimension_numbers = #tpu.dot_dimension_numbers<[1], [0], [0], [1], [0, 0, 1, 1], [], []>} : vector<54x28xf32>, vector<28x208xf32>, vector<54x208xf32> -> vector<54x208xf32>
    %5 = vector.extract_strided_slice %0 {offsets = [0, 0], sizes = [54, 28], strides = [1, 1]} : vector<56x28xf32> to vector<54x28xf32>
    %c0_5 = arith.constant 0 : index
    %c1 = arith.constant 1 : index
    %c0_6 = arith.constant 0 : index
    %c0_7 = arith.constant 0 : index
    %6 = vector.load %arg2[%c0_5, %c1, %c0_6, %c0_7] : memref<3x2x28x208xf32, #tpu.memory_space<vmem>>, vector<1x1x28x208xf32>
    %7 = vector.shape_cast %6 : vector<1x1x28x208xf32> to vector<28x208xf32>
    %cst_8 = arith.constant dense<0.000000e+00> : vector<54x208xf32>
    %8 = tpu.matmul %5, %7, %cst_8 {dimension_numbers = #tpu.dot_dimension_numbers<[1], [0], [0], [1], [0, 0, 1, 1], [], []>} : vector<54x28xf32>, vector<28x208xf32>, vector<54x208xf32> -> vector<54x208xf32>
    %9 = vector.extract_strided_slice %0 {offsets = [1, 0], sizes = [54, 28], strides = [1, 1]} : vector<56x28xf32> to vector<54x28xf32>
    %c1_9 = arith.constant 1 : index
    %c0_10 = arith.constant 0 : index
    %c0_11 = arith.constant 0 : index
    %c0_12 = arith.constant 0 : index
    %10 = vector.load %arg2[%c1_9, %c0_10, %c0_11, %c0_12] : memref<3x2x28x208xf32, #tpu.memory_space<vmem>>, vector<1x1x28x208xf32>
    %11 = vector.shape_cast %10 : vector<1x1x28x208xf32> to vector<28x208xf32>
    %cst_13 = arith.constant dense<0.000000e+00> : vector<54x208xf32>
    %12 = tpu.matmul %9, %11, %cst_13 {dimension_numbers = #tpu.dot_dimension_numbers<[1], [0], [0], [1], [0, 0, 1, 1], [], []>} : vector<54x28xf32>, vector<28x208xf32>, vector<54x208xf32> -> vector<54x208xf32>
    %13 = arith.addf %4, %12 : vector<54x208xf32>
    %c1_14 = arith.constant 1 : index
    %c1_15 = arith.constant 1 : index
    %c0_16 = arith.constant 0 : index
    %c0_17 = arith.constant 0 : index
    %14 = vector.load %arg2[%c1_14, %c1_15, %c0_16, %c0_17] : memref<3x2x28x208xf32, #tpu.memory_space<vmem>>, vector<1x1x28x208xf32>
    %15 = vector.shape_cast %14 : vector<1x1x28x208xf32> to vector<28x208xf32>
    %cst_18 = arith.constant dense<0.000000e+00> : vector<54x208xf32>
    %16 = tpu.matmul %9, %15, %cst_18 {dimension_numbers = #tpu.dot_dimension_numbers<[1], [0], [0], [1], [0, 0, 1, 1], [], []>} : vector<54x28xf32>, vector<28x208xf32>, vector<54x208xf32> -> vector<54x208xf32>
    %17 = arith.addf %8, %16 : vector<54x208xf32>
    %18 = vector.extract_strided_slice %0 {offsets = [2, 0], sizes = [54, 28], strides = [1, 1]} : vector<56x28xf32> to vector<54x28xf32>
    %c2 = arith.constant 2 : index
    %c0_19 = arith.constant 0 : index
    %c0_20 = arith.constant 0 : index
    %c0_21 = arith.constant 0 : index
    %19 = vector.load %arg2[%c2, %c0_19, %c0_20, %c0_21] : memref<3x2x28x208xf32, #tpu.memory_space<vmem>>, vector<1x1x28x208xf32>
    %20 = vector.shape_cast %19 : vector<1x1x28x208xf32> to vector<28x208xf32>
    %cst_22 = arith.constant dense<0.000000e+00> : vector<54x208xf32>
    %21 = tpu.matmul %18, %20, %cst_22 {dimension_numbers = #tpu.dot_dimension_numbers<[1], [0], [0], [1], [0, 0, 1, 1], [], []>} : vector<54x28xf32>, vector<28x208xf32>, vector<54x208xf32> -> vector<54x208xf32>
    %22 = arith.addf %13, %21 : vector<54x208xf32>
    %c2_23 = arith.constant 2 : index
    %c1_24 = arith.constant 1 : index
    %c0_25 = arith.constant 0 : index
    %c0_26 = arith.constant 0 : index
    %23 = vector.load %arg2[%c2_23, %c1_24, %c0_25, %c0_26] : memref<3x2x28x208xf32, #tpu.memory_space<vmem>>, vector<1x1x28x208xf32>
    %24 = vector.shape_cast %23 : vector<1x1x28x208xf32> to vector<28x208xf32>
    %cst_27 = arith.constant dense<0.000000e+00> : vector<54x208xf32>
    %25 = tpu.matmul %18, %24, %cst_27 {dimension_numbers = #tpu.dot_dimension_numbers<[1], [0], [0], [1], [0, 0, 1, 1], [], []>} : vector<54x28xf32>, vector<28x208xf32>, vector<54x208xf32> -> vector<54x208xf32>
    %26 = arith.addf %17, %25 : vector<54x208xf32>
    %27 = arith.maximumf %22, %26 : vector<54x208xf32>
    %c0_28 = arith.constant 0 : index
    %c0_29 = arith.constant 0 : index
    %28 = vector.load %arg3[%c0_28, %c0_29] : memref<1x208xf32, #tpu.memory_space<vmem>>, vector<1x208xf32>
    %29 = vector.broadcast %28 : vector<1x208xf32> to vector<54x208xf32>
    %30 = arith.addf %27, %29 : vector<54x208xf32>
    %cst_30 = arith.constant 0.000000e+00 : f32
    %31 = vector.broadcast %cst_30 : f32 to vector<54x208xf32>
    %32 = arith.maximumf %30, %31 : vector<54x208xf32>
    %c0_31 = arith.constant 0 : index
    %c0_32 = arith.constant 0 : index
    %33 = vector.load %arg4[%c0_31, %c0_32] : memref<26x54xf32, #tpu.memory_space<vmem>>, vector<26x54xf32>
    %cst_33 = arith.constant dense<0.000000e+00> : vector<26x208xf32>
    %34 = tpu.matmul %33, %32, %cst_33 {dimension_numbers = #tpu.dot_dimension_numbers<[1], [0], [0], [1], [0, 0, 1, 1], [], []>} : vector<26x54xf32>, vector<54x208xf32>, vector<26x208xf32> -> vector<26x208xf32>
    %c0_34 = arith.constant 0 : index
    %c0_35 = arith.constant 0 : index
    %35 = vector.load %arg5[%c0_34, %c0_35] : memref<26x54xf32, #tpu.memory_space<vmem>>, vector<26x54xf32>
    %cst_36 = arith.constant dense<0.000000e+00> : vector<26x208xf32>
    %36 = tpu.matmul %35, %32, %cst_36 {dimension_numbers = #tpu.dot_dimension_numbers<[1], [0], [0], [1], [0, 0, 1, 1], [], []>} : vector<26x54xf32>, vector<54x208xf32>, vector<26x208xf32> -> vector<26x208xf32>
    %37 = arith.maximumf %34, %36 : vector<26x208xf32>
    %38 = vector.extract_strided_slice %37 {offsets = [0, 0], sizes = [24, 208], strides = [1, 1]} : vector<26x208xf32> to vector<24x208xf32>
    %c0_37 = arith.constant 0 : index
    %c0_38 = arith.constant 0 : index
    %c0_39 = arith.constant 0 : index
    %c0_40 = arith.constant 0 : index
    %39 = vector.load %arg6[%c0_37, %c0_38, %c0_39, %c0_40] : memref<3x2x208x160xf32, #tpu.memory_space<vmem>>, vector<1x1x208x160xf32>
    %40 = vector.shape_cast %39 : vector<1x1x208x160xf32> to vector<208x160xf32>
    %cst_41 = arith.constant dense<0.000000e+00> : vector<24x160xf32>
    %41 = tpu.matmul %38, %40, %cst_41 {dimension_numbers = #tpu.dot_dimension_numbers<[1], [0], [0], [1], [0, 0, 1, 1], [], []>} : vector<24x208xf32>, vector<208x160xf32>, vector<24x160xf32> -> vector<24x160xf32>
    %42 = vector.extract_strided_slice %37 {offsets = [0, 0], sizes = [24, 208], strides = [1, 1]} : vector<26x208xf32> to vector<24x208xf32>
    %c0_42 = arith.constant 0 : index
    %c1_43 = arith.constant 1 : index
    %c0_44 = arith.constant 0 : index
    %c0_45 = arith.constant 0 : index
    %43 = vector.load %arg6[%c0_42, %c1_43, %c0_44, %c0_45] : memref<3x2x208x160xf32, #tpu.memory_space<vmem>>, vector<1x1x208x160xf32>
    %44 = vector.shape_cast %43 : vector<1x1x208x160xf32> to vector<208x160xf32>
    %cst_46 = arith.constant dense<0.000000e+00> : vector<24x160xf32>
    %45 = tpu.matmul %42, %44, %cst_46 {dimension_numbers = #tpu.dot_dimension_numbers<[1], [0], [0], [1], [0, 0, 1, 1], [], []>} : vector<24x208xf32>, vector<208x160xf32>, vector<24x160xf32> -> vector<24x160xf32>
    %46 = vector.extract_strided_slice %37 {offsets = [1, 0], sizes = [24, 208], strides = [1, 1]} : vector<26x208xf32> to vector<24x208xf32>
    %c1_47 = arith.constant 1 : index
    %c0_48 = arith.constant 0 : index
    %c0_49 = arith.constant 0 : index
    %c0_50 = arith.constant 0 : index
    %47 = vector.load %arg6[%c1_47, %c0_48, %c0_49, %c0_50] : memref<3x2x208x160xf32, #tpu.memory_space<vmem>>, vector<1x1x208x160xf32>
    %48 = vector.shape_cast %47 : vector<1x1x208x160xf32> to vector<208x160xf32>
    %cst_51 = arith.constant dense<0.000000e+00> : vector<24x160xf32>
    %49 = tpu.matmul %46, %48, %cst_51 {dimension_numbers = #tpu.dot_dimension_numbers<[1], [0], [0], [1], [0, 0, 1, 1], [], []>} : vector<24x208xf32>, vector<208x160xf32>, vector<24x160xf32> -> vector<24x160xf32>
    %50 = arith.addf %41, %49 : vector<24x160xf32>
    %c1_52 = arith.constant 1 : index
    %c1_53 = arith.constant 1 : index
    %c0_54 = arith.constant 0 : index
    %c0_55 = arith.constant 0 : index
    %51 = vector.load %arg6[%c1_52, %c1_53, %c0_54, %c0_55] : memref<3x2x208x160xf32, #tpu.memory_space<vmem>>, vector<1x1x208x160xf32>
    %52 = vector.shape_cast %51 : vector<1x1x208x160xf32> to vector<208x160xf32>
    %cst_56 = arith.constant dense<0.000000e+00> : vector<24x160xf32>
    %53 = tpu.matmul %46, %52, %cst_56 {dimension_numbers = #tpu.dot_dimension_numbers<[1], [0], [0], [1], [0, 0, 1, 1], [], []>} : vector<24x208xf32>, vector<208x160xf32>, vector<24x160xf32> -> vector<24x160xf32>
    %54 = arith.addf %45, %53 : vector<24x160xf32>
    %55 = vector.extract_strided_slice %37 {offsets = [2, 0], sizes = [24, 208], strides = [1, 1]} : vector<26x208xf32> to vector<24x208xf32>
    %c2_57 = arith.constant 2 : index
    %c0_58 = arith.constant 0 : index
    %c0_59 = arith.constant 0 : index
    %c0_60 = arith.constant 0 : index
    %56 = vector.load %arg6[%c2_57, %c0_58, %c0_59, %c0_60] : memref<3x2x208x160xf32, #tpu.memory_space<vmem>>, vector<1x1x208x160xf32>
    %57 = vector.shape_cast %56 : vector<1x1x208x160xf32> to vector<208x160xf32>
    %cst_61 = arith.constant dense<0.000000e+00> : vector<24x160xf32>
    %58 = tpu.matmul %55, %57, %cst_61 {dimension_numbers = #tpu.dot_dimension_numbers<[1], [0], [0], [1], [0, 0, 1, 1], [], []>} : vector<24x208xf32>, vector<208x160xf32>, vector<24x160xf32> -> vector<24x160xf32>
    %59 = arith.addf %50, %58 : vector<24x160xf32>
    %c2_62 = arith.constant 2 : index
    %c1_63 = arith.constant 1 : index
    %c0_64 = arith.constant 0 : index
    %c0_65 = arith.constant 0 : index
    %60 = vector.load %arg6[%c2_62, %c1_63, %c0_64, %c0_65] : memref<3x2x208x160xf32, #tpu.memory_space<vmem>>, vector<1x1x208x160xf32>
    %61 = vector.shape_cast %60 : vector<1x1x208x160xf32> to vector<208x160xf32>
    %cst_66 = arith.constant dense<0.000000e+00> : vector<24x160xf32>
    %62 = tpu.matmul %55, %61, %cst_66 {dimension_numbers = #tpu.dot_dimension_numbers<[1], [0], [0], [1], [0, 0, 1, 1], [], []>} : vector<24x208xf32>, vector<208x160xf32>, vector<24x160xf32> -> vector<24x160xf32>
    %63 = arith.addf %54, %62 : vector<24x160xf32>
    %64 = arith.maximumf %59, %63 : vector<24x160xf32>
    %c0_67 = arith.constant 0 : index
    %c0_68 = arith.constant 0 : index
    %65 = vector.load %arg7[%c0_67, %c0_68] : memref<1x160xf32, #tpu.memory_space<vmem>>, vector<1x160xf32>
    %66 = vector.broadcast %65 : vector<1x160xf32> to vector<24x160xf32>
    %67 = arith.addf %64, %66 : vector<24x160xf32>
    %cst_69 = arith.constant 0.000000e+00 : f32
    %68 = vector.broadcast %cst_69 : f32 to vector<24x160xf32>
    %69 = arith.maximumf %67, %68 : vector<24x160xf32>
    %c0_70 = arith.constant 0 : index
    %c0_71 = arith.constant 0 : index
    %70 = vector.load %arg8[%c0_70, %c0_71] : memref<10x24xf32, #tpu.memory_space<vmem>>, vector<10x24xf32>
    %cst_72 = arith.constant dense<0.000000e+00> : vector<10x160xf32>
    %71 = tpu.matmul %70, %69, %cst_72 {dimension_numbers = #tpu.dot_dimension_numbers<[1], [0], [0], [1], [0, 0, 1, 1], [], []>} : vector<10x24xf32>, vector<24x160xf32>, vector<10x160xf32> -> vector<10x160xf32>
    %c0_73 = arith.constant 0 : index
    %c0_74 = arith.constant 0 : index
    %72 = vector.load %arg9[%c0_73, %c0_74] : memref<10x24xf32, #tpu.memory_space<vmem>>, vector<10x24xf32>
    %cst_75 = arith.constant dense<0.000000e+00> : vector<10x160xf32>
    %73 = tpu.matmul %72, %69, %cst_75 {dimension_numbers = #tpu.dot_dimension_numbers<[1], [0], [0], [1], [0, 0, 1, 1], [], []>} : vector<10x24xf32>, vector<24x160xf32>, vector<10x160xf32> -> vector<10x160xf32>
    %74 = arith.maximumf %71, %73 : vector<10x160xf32>
    %75 = vector.extract_strided_slice %74 {offsets = [0, 0], sizes = [8, 160], strides = [1, 1]} : vector<10x160xf32> to vector<8x160xf32>
    %c0_76 = arith.constant 0 : index
    %c0_77 = arith.constant 0 : index
    %c0_78 = arith.constant 0 : index
    %c0_79 = arith.constant 0 : index
    %76 = vector.load %arg10[%c0_76, %c0_77, %c0_78, %c0_79] : memref<3x2x160x16xf32, #tpu.memory_space<vmem>>, vector<1x1x160x16xf32>
    %77 = vector.shape_cast %76 : vector<1x1x160x16xf32> to vector<160x16xf32>
    %cst_80 = arith.constant dense<0.000000e+00> : vector<8x16xf32>
    %78 = tpu.matmul %75, %77, %cst_80 {dimension_numbers = #tpu.dot_dimension_numbers<[1], [0], [0], [1], [0, 0, 1, 1], [], []>} : vector<8x160xf32>, vector<160x16xf32>, vector<8x16xf32> -> vector<8x16xf32>
    %79 = vector.extract_strided_slice %74 {offsets = [0, 0], sizes = [8, 160], strides = [1, 1]} : vector<10x160xf32> to vector<8x160xf32>
    %c0_81 = arith.constant 0 : index
    %c1_82 = arith.constant 1 : index
    %c0_83 = arith.constant 0 : index
    %c0_84 = arith.constant 0 : index
    %80 = vector.load %arg10[%c0_81, %c1_82, %c0_83, %c0_84] : memref<3x2x160x16xf32, #tpu.memory_space<vmem>>, vector<1x1x160x16xf32>
    %81 = vector.shape_cast %80 : vector<1x1x160x16xf32> to vector<160x16xf32>
    %cst_85 = arith.constant dense<0.000000e+00> : vector<8x16xf32>
    %82 = tpu.matmul %79, %81, %cst_85 {dimension_numbers = #tpu.dot_dimension_numbers<[1], [0], [0], [1], [0, 0, 1, 1], [], []>} : vector<8x160xf32>, vector<160x16xf32>, vector<8x16xf32> -> vector<8x16xf32>
    %83 = vector.extract_strided_slice %74 {offsets = [1, 0], sizes = [8, 160], strides = [1, 1]} : vector<10x160xf32> to vector<8x160xf32>
    %c1_86 = arith.constant 1 : index
    %c0_87 = arith.constant 0 : index
    %c0_88 = arith.constant 0 : index
    %c0_89 = arith.constant 0 : index
    %84 = vector.load %arg10[%c1_86, %c0_87, %c0_88, %c0_89] : memref<3x2x160x16xf32, #tpu.memory_space<vmem>>, vector<1x1x160x16xf32>
    %85 = vector.shape_cast %84 : vector<1x1x160x16xf32> to vector<160x16xf32>
    %cst_90 = arith.constant dense<0.000000e+00> : vector<8x16xf32>
    %86 = tpu.matmul %83, %85, %cst_90 {dimension_numbers = #tpu.dot_dimension_numbers<[1], [0], [0], [1], [0, 0, 1, 1], [], []>} : vector<8x160xf32>, vector<160x16xf32>, vector<8x16xf32> -> vector<8x16xf32>
    %87 = arith.addf %78, %86 : vector<8x16xf32>
    %c1_91 = arith.constant 1 : index
    %c1_92 = arith.constant 1 : index
    %c0_93 = arith.constant 0 : index
    %c0_94 = arith.constant 0 : index
    %88 = vector.load %arg10[%c1_91, %c1_92, %c0_93, %c0_94] : memref<3x2x160x16xf32, #tpu.memory_space<vmem>>, vector<1x1x160x16xf32>
    %89 = vector.shape_cast %88 : vector<1x1x160x16xf32> to vector<160x16xf32>
    %cst_95 = arith.constant dense<0.000000e+00> : vector<8x16xf32>
    %90 = tpu.matmul %83, %89, %cst_95 {dimension_numbers = #tpu.dot_dimension_numbers<[1], [0], [0], [1], [0, 0, 1, 1], [], []>} : vector<8x160xf32>, vector<160x16xf32>, vector<8x16xf32> -> vector<8x16xf32>
    %91 = arith.addf %82, %90 : vector<8x16xf32>
    %92 = vector.extract_strided_slice %74 {offsets = [2, 0], sizes = [8, 160], strides = [1, 1]} : vector<10x160xf32> to vector<8x160xf32>
    %c2_96 = arith.constant 2 : index
    %c0_97 = arith.constant 0 : index
    %c0_98 = arith.constant 0 : index
    %c0_99 = arith.constant 0 : index
    %93 = vector.load %arg10[%c2_96, %c0_97, %c0_98, %c0_99] : memref<3x2x160x16xf32, #tpu.memory_space<vmem>>, vector<1x1x160x16xf32>
    %94 = vector.shape_cast %93 : vector<1x1x160x16xf32> to vector<160x16xf32>
    %cst_100 = arith.constant dense<0.000000e+00> : vector<8x16xf32>
    %95 = tpu.matmul %92, %94, %cst_100 {dimension_numbers = #tpu.dot_dimension_numbers<[1], [0], [0], [1], [0, 0, 1, 1], [], []>} : vector<8x160xf32>, vector<160x16xf32>, vector<8x16xf32> -> vector<8x16xf32>
    %96 = arith.addf %87, %95 : vector<8x16xf32>
    %c2_101 = arith.constant 2 : index
    %c1_102 = arith.constant 1 : index
    %c0_103 = arith.constant 0 : index
    %c0_104 = arith.constant 0 : index
    %97 = vector.load %arg10[%c2_101, %c1_102, %c0_103, %c0_104] : memref<3x2x160x16xf32, #tpu.memory_space<vmem>>, vector<1x1x160x16xf32>
    %98 = vector.shape_cast %97 : vector<1x1x160x16xf32> to vector<160x16xf32>
    %cst_105 = arith.constant dense<0.000000e+00> : vector<8x16xf32>
    %99 = tpu.matmul %92, %98, %cst_105 {dimension_numbers = #tpu.dot_dimension_numbers<[1], [0], [0], [1], [0, 0, 1, 1], [], []>} : vector<8x160xf32>, vector<160x16xf32>, vector<8x16xf32> -> vector<8x16xf32>
    %100 = arith.addf %91, %99 : vector<8x16xf32>
    %101 = arith.maximumf %96, %100 : vector<8x16xf32>
    %c0_106 = arith.constant 0 : index
    %c0_107 = arith.constant 0 : index
    %102 = vector.load %arg11[%c0_106, %c0_107] : memref<1x16xf32, #tpu.memory_space<vmem>>, vector<1x16xf32>
    %103 = vector.broadcast %102 : vector<1x16xf32> to vector<8x16xf32>
    %104 = arith.addf %101, %103 : vector<8x16xf32>
    %cst_108 = arith.constant 0.000000e+00 : f32
    %105 = vector.broadcast %cst_108 : f32 to vector<8x16xf32>
    %106 = arith.maximumf %104, %105 : vector<8x16xf32>
    %c0_109 = arith.constant 0 : index
    %c0_110 = arith.constant 0 : index
    %107 = vector.load %arg12[%c0_109, %c0_110] : memref<2x8xf32, #tpu.memory_space<vmem>>, vector<2x8xf32>
    %cst_111 = arith.constant dense<0.000000e+00> : vector<2x16xf32>
    %108 = tpu.matmul %107, %106, %cst_111 {dimension_numbers = #tpu.dot_dimension_numbers<[1], [0], [0], [1], [0, 0, 1, 1], [], []>} : vector<2x8xf32>, vector<8x16xf32>, vector<2x16xf32> -> vector<2x16xf32>
    %c0_112 = arith.constant 0 : index
    %c0_113 = arith.constant 0 : index
    %109 = vector.load %arg13[%c0_112, %c0_113] : memref<2x8xf32, #tpu.memory_space<vmem>>, vector<2x8xf32>
    %cst_114 = arith.constant dense<0.000000e+00> : vector<2x16xf32>
    %110 = tpu.matmul %109, %106, %cst_114 {dimension_numbers = #tpu.dot_dimension_numbers<[1], [0], [0], [1], [0, 0, 1, 1], [], []>} : vector<2x8xf32>, vector<8x16xf32>, vector<2x16xf32> -> vector<2x16xf32>
    %111 = arith.maximumf %108, %110 : vector<2x16xf32>
    %c0_115 = arith.constant 0 : index
    %c0_116 = arith.constant 0 : index
    %112 = vector.load %arg14[%c0_115, %c0_116] : memref<16x10xf32, #tpu.memory_space<vmem>>, vector<16x10xf32>
    %cst_117 = arith.constant dense<0.000000e+00> : vector<2x10xf32>
    %113 = tpu.matmul %111, %112, %cst_117 {dimension_numbers = #tpu.dot_dimension_numbers<[1], [0], [0], [1], [0, 0, 1, 1], [], []>} : vector<2x16xf32>, vector<16x10xf32>, vector<2x10xf32> -> vector<2x10xf32>
    %c0_118 = arith.constant 0 : index
    %c0_119 = arith.constant 0 : index
    %114 = vector.load %arg15[%c0_118, %c0_119] : memref<1x10xf32, #tpu.memory_space<vmem>>, vector<1x10xf32>
    %115 = vector.broadcast %114 : vector<1x10xf32> to vector<2x10xf32>
    %116 = arith.addf %113, %115 : vector<2x10xf32>
    %c0_120 = arith.constant 0 : index
    %c0_121 = arith.constant 0 : index
    %117 = vector.load %arg16[%c0_120, %c0_121] : memref<2x10xf32, #tpu.memory_space<vmem>>, vector<2x10xf32>
    tpu.vector_store %arg16[%c0_120, %c0_121], %116 {strides = array<i32>} : memref<2x10xf32, #tpu.memory_space<vmem>>, vector<2x10xf32>,
    return
  }
  func.func @transform_0(%arg0: i32) -> (i32, i32) {
    %c0_i32 = arith.constant 0 : i32
    %c0_i32_0 = arith.constant 0 : i32
    return %arg0, %c0_i32 : i32, i32
  }
  func.func @transform_1(%arg0: i32) -> (i32, i32, i32, i32) {
    %c0_i32 = arith.constant 0 : i32
    %c0_i32_0 = arith.constant 0 : i32
    %c0_i32_1 = arith.constant 0 : i32
    %c0_i32_2 = arith.constant 0 : i32
    %c0_i32_3 = arith.constant 0 : i32
    return %c0_i32, %c0_i32_0, %c0_i32_1, %c0_i32_2 : i32, i32, i32, i32
  }
  func.func @transform_2(%arg0: i32) -> (i32, i32) {
    %c0_i32 = arith.constant 0 : i32
    %c0_i32_0 = arith.constant 0 : i32
    %c0_i32_1 = arith.constant 0 : i32
    return %c0_i32, %c0_i32_0 : i32, i32
  }
  func.func @transform_3(%arg0: i32) -> (i32, i32) {
    %c0_i32 = arith.constant 0 : i32
    %c0_i32_0 = arith.constant 0 : i32
    %c0_i32_1 = arith.constant 0 : i32
    return %c0_i32, %c0_i32_0 : i32, i32
  }
  func.func @transform_4(%arg0: i32) -> (i32, i32) {
    %c0_i32 = arith.constant 0 : i32
    %c0_i32_0 = arith.constant 0 : i32
    %c0_i32_1 = arith.constant 0 : i32
    return %c0_i32, %c0_i32_0 : i32, i32
  }
  func.func @transform_5(%arg0: i32) -> (i32, i32, i32, i32) {
    %c0_i32 = arith.constant 0 : i32
    %c0_i32_0 = arith.constant 0 : i32
    %c0_i32_1 = arith.constant 0 : i32
    %c0_i32_2 = arith.constant 0 : i32
    %c0_i32_3 = arith.constant 0 : i32
    return %c0_i32, %c0_i32_0, %c0_i32_1, %c0_i32_2 : i32, i32, i32, i32
  }
  func.func @transform_6(%arg0: i32) -> (i32, i32) {
    %c0_i32 = arith.constant 0 : i32
    %c0_i32_0 = arith.constant 0 : i32
    %c0_i32_1 = arith.constant 0 : i32
    return %c0_i32, %c0_i32_0 : i32, i32
  }
  func.func @transform_7(%arg0: i32) -> (i32, i32) {
    %c0_i32 = arith.constant 0 : i32
    %c0_i32_0 = arith.constant 0 : i32
    %c0_i32_1 = arith.constant 0 : i32
    return %c0_i32, %c0_i32_0 : i32, i32
  }
  func.func @transform_8(%arg0: i32) -> (i32, i32) {
    %c0_i32 = arith.constant 0 : i32
    %c0_i32_0 = arith.constant 0 : i32
    %c0_i32_1 = arith.constant 0 : i32
    return %c0_i32, %c0_i32_0 : i32, i32
  }
  func.func @transform_9(%arg0: i32) -> (i32, i32, i32, i32) {
    %c0_i32 = arith.constant 0 : i32
    %c0_i32_0 = arith.constant 0 : i32
    %c0_i32_1 = arith.constant 0 : i32
    %c0_i32_2 = arith.constant 0 : i32
    %c0_i32_3 = arith.constant 0 : i32
    return %c0_i32, %c0_i32_0, %c0_i32_1, %c0_i32_2 : i32, i32, i32, i32
  }
  func.func @transform_10(%arg0: i32) -> (i32, i32) {
    %c0_i32 = arith.constant 0 : i32
    %c0_i32_0 = arith.constant 0 : i32
    %c0_i32_1 = arith.constant 0 : i32
    return %c0_i32, %c0_i32_0 : i32, i32
  }
  func.func @transform_11(%arg0: i32) -> (i32, i32) {
    %c0_i32 = arith.constant 0 : i32
    %c0_i32_0 = arith.constant 0 : i32
    %c0_i32_1 = arith.constant 0 : i32
    return %c0_i32, %c0_i32_0 : i32, i32
  }
  func.func @transform_12(%arg0: i32) -> (i32, i32) {
    %c0_i32 = arith.constant 0 : i32
    %c0_i32_0 = arith.constant 0 : i32
    %c0_i32_1 = arith.constant 0 : i32
    return %c0_i32, %c0_i32_0 : i32, i32
  }
  func.func @transform_13(%arg0: i32) -> (i32, i32) {
    %c0_i32 = arith.constant 0 : i32
    %c0_i32_0 = arith.constant 0 : i32
    %c0_i32_1 = arith.constant 0 : i32
    return %c0_i32, %c0_i32_0 : i32, i32
  }
  func.func @transform_14(%arg0: i32) -> (i32, i32) {
    %c0_i32 = arith.constant 0 : i32
    %c0_i32_0 = arith.constant 0 : i32
    %c0_i32_1 = arith.constant 0 : i32
    return %c0_i32, %c0_i32_0 : i32, i32
  }
  func.func @transform_15(%arg0: i32) -> (i32, i32) {
    %c0_i32 = arith.constant 0 : i32
    %c0_i32_0 = arith.constant 0 : i32
    return %arg0, %c0_i32 : i32, i32
  }
}

</mosaic_0001>

<llo_original>
// kernel: tile.14
$region0: #{tile.14}
  #allocation0 [shape = 's32[1]{0}', space=sflag, size = 0x4, scoped, tag = 'scoped memory for tile.14']
  %s0 = inlined_call_operand.vmem [shape: f32[16], index: 0, kind: input, shape index: {}]
  %s1 = inlined_call_operand.vmem [shape: f32[13,16], index: 1, kind: output, shape index: {}]
  // Predicated region
  $region2: #{tile.14} parent=0 // pred_check
    _
  $region3: #{tile.14} parent=0 // pred_check_branch
    %3 = sbr.rel (0) target = $region5
  $region4: #{tile.14} parent=0 // pred_region
    _
  $region5: #{tile.14} parent=0 // pred_fallthru
    _
  %v4 = vld [vmem:[%s0] ss:$0 sm:$0xff]
  %5 = vst [vmem:[%s1] sm:$0xff] %v4
  %s6 = scalar_lea.vmem %s1, 8
  %7 = vst [vmem:[%s6] sm:$0xff] %v4

// kernel: tile.15
$region0: #{tile.15}
  %s0 = inlined_call_operand.vmem [shape: f32[13,16], index: 0, kind: input, shape index: {}]
  %s1 = inlined_call_operand.vmem [shape: f32[1,208], index: 1, kind: output, shape index: {}]
  $region1: #{tile.15} parent=0
    #allocation0 [shape = 'u8[8192]{0}', space=vmem, size = 0x2000, scoped, tag = 'scoped mem for output reshape']
    %s2 = smov 3
    %v3 = vld [vmem:[%s0] ss:$8 sm:%s2]
    %vm4 = vcmask 130048
    %5 = vst.msk [vmem:[#allocation0] ss:$8 sm:$0x3] %vm4, %v3
    %s6 = scalar_lea.vmem %s0, 7
    %v7 = vld [vmem:[%s6] sm:$0x1]
    %8 = vrot.lane.b32.xlu0 %v7, 112
    %v9 = vpop.permute.xlu0 %8
    %vm10 = vcmask 1048448
    %11 = vst.msk [vmem:[#allocation0] sm:$0x1] %vm10, %v9
    %s12 = scalar_lea.vmem %s0, 6
    %v13 = vld [vmem:[%s12] sm:$0x1]
    %14 = vrot.lane.b32.xlu0 %v13, 96
    %v15 = vpop.permute.xlu0 %14
    %vm16 = vcmask 917248
    %17 = vst.msk [vmem:[#allocation0] sm:$0x1] %vm16, %v15
    %s18 = scalar_lea.vmem %s0, 5
    %v19 = vld [vmem:[%s18] sm:$0x1]
    %20 = vrot.lane.b32.xlu0 %v19, 80
    %v21 = vpop.permute.xlu0 %20
    %vm22 = vcmask 786048
    %23 = vst.msk [vmem:[#allocation0] sm:$0x1] %vm22, %v21
    %s24 = scalar_lea.vmem %s0, 4
    %s25 = smov 3
    %v26 = vld [vmem:[%s24] ss:$8 sm:%s25]
    %27 = vrot.lane.b32.xlu0 %v26, 64
    %v28 = vpop.permute.xlu0 %27
    %vm29 = vcmask 654848
    %30 = vst.msk [vmem:[#allocation0] ss:$8 sm:$0x3] %vm29, %v28
    %s31 = scalar_lea.vmem %s0, 3
    %s32 = smov 3
    %v33 = vld [vmem:[%s31] ss:$8 sm:%s32]
    %34 = vrot.lane.b32.xlu0 %v33, 48
    %v35 = vpop.permute.xlu0 %34
    %vm36 = vcmask 523648
    %37 = vst.msk [vmem:[#allocation0] ss:$8 sm:$0x3] %vm36, %v35
    %s38 = scalar_lea.vmem %s0, 2
    %s39 = smov 3
    %v40 = vld [vmem:[%s38] ss:$8 sm:%s39]
    %41 = vrot.lane.b32.xlu0 %v40, 32
    %v42 = vpop.permute.xlu0 %41
    %vm43 = vcmask 392448
    %44 = vst.msk [vmem:[#allocation0] ss:$8 sm:$0x3] %vm43, %v42
    %s45 = scalar_lea.vmem %s0, 1
    %s46 = smov 3
    %v47 = vld [vmem:[%s45] ss:$8 sm:%s46]
    %48 = vrot.lane.b32.xlu0 %v47, 16
    %v49 = vpop.permute.xlu0 %48
    %vm50 = vcmask 261248
    %51 = vst.msk [vmem:[#allocation0] ss:$8 sm:$0x3] %vm50, %v49
    %s53 = sshllo.u32 0, 1
    %v55 = vld [vmem:[#allocation0] sm:%s53]
    %s56 = sshllo.u32 0, 1
    %57 = vst [vmem:[%s1] sm:%s56] %v55
    %s58 = scalar_lea.vmem [#allocation0], 8
    %v59 = vld [vmem:[%s58] sm:%s53]
    %s60 = sshllo.u32 0, 1
    %s61 = scalar_lea.vmem %s1, 1
    %62 = vst [vmem:[%s61] sm:%s60] %v59

// kernel: tile.19
$region0: #{tile.19}
  #allocation0 [shape = 's32[1]{0}', space=sflag, size = 0x4, scoped, tag = 'scoped memory for tile.19']
  %s0 = inlined_call_operand.vmem [shape: f32[32], index: 0, kind: input, shape index: {}]
  %s1 = inlined_call_operand.vmem [shape: f32[5,32], index: 1, kind: output, shape index: {}]
  // Predicated region
  $region2: #{tile.19} parent=0 // pred_check
    _
  $region3: #{tile.19} parent=0 // pred_check_branch
    %3 = sbr.rel (0) target = $region5
  $region4: #{tile.19} parent=0 // pred_region
    _
  $region5: #{tile.19} parent=0 // pred_fallthru
    _
  %v4 = vld [vmem:[%s0] ss:$0 sm:$0xff]
  %5 = vst [vmem:[%s1] sm:$0xff] %v4

// kernel: tile.20
$region0: #{tile.20}
  %s0 = inlined_call_operand.vmem [shape: f32[5,32], index: 0, kind: input, shape index: {}]
  %s1 = inlined_call_operand.vmem [shape: f32[1,160], index: 1, kind: output, shape index: {}]
  $region1: #{tile.20} parent=0
    #allocation0 [shape = 'u8[8192]{0}', space=vmem, size = 0x2000, scoped, tag = 'scoped mem for output reshape']
    %s2 = smov 3
    %v3 = vld [vmem:[%s0] ss:$4 sm:%s2]
    %vm4 = vcmask 261120
    %5 = vst.msk [vmem:[#allocation0] ss:$8 sm:$0x3] %vm4, %v3
    %s6 = scalar_lea.vmem %s0, 3
    %v7 = vld [vmem:[%s6] sm:$0x1]
    %8 = vrot.lane.b32.xlu0 %v7, 96
    %v9 = vpop.permute.xlu0 %8
    %vm10 = vcmask 1048320
    %11 = vst.msk [vmem:[#allocation0] sm:$0x1] %vm10, %v9
    %s12 = scalar_lea.vmem %s0, 2
    %v13 = vld [vmem:[%s12] sm:$0x1]
    %14 = vrot.lane.b32.xlu0 %v13, 64
    %v15 = vpop.permute.xlu0 %14
    %vm16 = vcmask 785920
    %17 = vst.msk [vmem:[#allocation0] sm:$0x1] %vm16, %v15
    %s18 = scalar_lea.vmem %s0, 1
    %v19 = vld [vmem:[%s18] sm:$0x1]
    %20 = vrot.lane.b32.xlu0 %v19, 32
    %v21 = vpop.permute.xlu0 %20
    %vm22 = vcmask 523520
    %23 = vst.msk [vmem:[#allocation0] sm:$0x1] %vm22, %v21
    %s25 = sshllo.u32 0, 1
    %v27 = vld [vmem:[#allocation0] sm:%s25]
    %s28 = sshllo.u32 0, 1
    %29 = vst [vmem:[%s1] sm:%s28] %v27
    %s30 = scalar_lea.vmem [#allocation0], 8
    %v31 = vld [vmem:[%s30] sm:%s25]
    %s32 = sshllo.u32 0, 1
    %s33 = scalar_lea.vmem %s1, 1
    %34 = vst [vmem:[%s33] sm:%s32] %v31

// kernel: mnist_cnn_forward.1
$region0: #{mnist_cnn_forward.1}
  #allocation0 [shape = 'u32[]', space=smem, size = 0x4, offset = 0x4, fixed_abs, tag = 'smem constant byte address 0x4 - core index']
  #allocation1 [shape = 'u32[144,128]{1,0:T(1,128)}', space=vmem, size = 0x12000, scoped, tag = 'internal scratch']
  %s0 = inlined_call_operand.vmem [shape: f32[56,28], index: 0, kind: input, shape index: {}]
  %s1 = inlined_call_operand.vmem [shape: f32[3,2,28,208], index: 1, kind: input, shape index: {}]
  %s2 = inlined_call_operand.vmem [shape: f32[1,208], index: 2, kind: input, shape index: {}]
  %s3 = inlined_call_operand.vmem [shape: f32[26,54], index: 3, kind: input, shape index: {}]
  %s4 = inlined_call_operand.vmem [shape: f32[26,54], index: 4, kind: input, shape index: {}]
  %s5 = inlined_call_operand.vmem [shape: f32[3,2,208,160], index: 5, kind: input, shape index: {}]
  %s6 = inlined_call_operand.vmem [shape: f32[1,160], index: 6, kind: input, shape index: {}]
  %s7 = inlined_call_operand.vmem [shape: f32[10,24], index: 7, kind: input, shape index: {}]
  %s8 = inlined_call_operand.vmem [shape: f32[10,24], index: 8, kind: input, shape index: {}]
  %s9 = inlined_call_operand.vmem [shape: f32[3,2,160,16], index: 9, kind: input, shape index: {}]
  %s10 = inlined_call_operand.vmem [shape: f32[1,16], index: 10, kind: input, shape index: {}]
  %s11 = inlined_call_operand.vmem [shape: f32[2,8], index: 11, kind: input, shape index: {}]
  %s12 = inlined_call_operand.vmem [shape: f32[2,8], index: 12, kind: input, shape index: {}]
  %s13 = inlined_call_operand.vmem [shape: f32[16,10], index: 13, kind: input, shape index: {}]
  %s14 = inlined_call_operand.vmem [shape: f32[1,10], index: 14, kind: input, shape index: {}]
  %s15 = inlined_call_operand.hbm [shape: f32[2,10], index: 15, kind: output, shape index: {}]
  %s16 = sld [smem:[#allocation0]]
  $region70: #{mnist_cnn_forward.1} parent=0
    _
  %s18 = ssub.s32 1, %s16
  %s19 = scalar_select 0, %s18, %s16
  $region1: #{mnist_cnn_forward.1} parent=0
    #allocation2 [shape = 'u8[1024]{0}', space=vmem, size = 0x400, scoped, tag = 'output window, operand 0, single buffered']
    #allocation3 [shape = 's32[1]{0}', space=sflag, size = 0x4, scoped, tag = 'scoped memory for mnist_cnn_forward.1']
    %20 = vsyncpa [#allocation3], 0
    // Predicated region
    $region2: #{mnist_cnn_forward.1} parent=1 // pred_check
      _
    $region3: #{mnist_cnn_forward.1} parent=1 // pred_check_branch
      %22 = sbr.rel (0) target = $region5
    $region4: #{mnist_cnn_forward.1} parent=1 // pred_region
      _
    $region5: #{mnist_cnn_forward.1} parent=1 // pred_fallthru
      _
    // Predicated region
    $region6: #{mnist_cnn_forward.1} parent=1 // pred_check
      _
    $region7: #{mnist_cnn_forward.1} parent=1 // pred_check_branch
      %24 = sbr.rel (0) target = $region9
    $region8: #{mnist_cnn_forward.1} parent=1 // pred_region
      _
    $region9: #{mnist_cnn_forward.1} parent=1 // pred_fallthru
      _
    // Predicated region
    $region10: #{mnist_cnn_forward.1} parent=1 // pred_check
      _
    $region11: #{mnist_cnn_forward.1} parent=1 // pred_check_branch
      %26 = sbr.rel (0) target = $region13
    $region12: #{mnist_cnn_forward.1} parent=1 // pred_region
      _
    $region13: #{mnist_cnn_forward.1} parent=1 // pred_fallthru
      _
    // Predicated region
    $region14: #{mnist_cnn_forward.1} parent=1 // pred_check
      _
    $region15: #{mnist_cnn_forward.1} parent=1 // pred_check_branch
      %28 = sbr.rel (0) target = $region17
    $region16: #{mnist_cnn_forward.1} parent=1 // pred_region
      _
    $region17: #{mnist_cnn_forward.1} parent=1 // pred_fallthru
      _
    // Predicated region
    $region18: #{mnist_cnn_forward.1} parent=1 // pred_check
      _
    $region19: #{mnist_cnn_forward.1} parent=1 // pred_check_branch
      %30 = sbr.rel (0) target = $region21
    $region20: #{mnist_cnn_forward.1} parent=1 // pred_region
      _
    $region21: #{mnist_cnn_forward.1} parent=1 // pred_fallthru
      _
    // Predicated region
    $region22: #{mnist_cnn_forward.1} parent=1 // pred_check
      _
    $region23: #{mnist_cnn_forward.1} parent=1 // pred_check_branch
      %32 = sbr.rel (0) target = $region25
    $region24: #{mnist_cnn_forward.1} parent=1 // pred_region
      _
    $region25: #{mnist_cnn_forward.1} parent=1 // pred_fallthru
      _
    // Predicated region
    $region26: #{mnist_cnn_forward.1} parent=1 // pred_check
      _
    $region27: #{mnist_cnn_forward.1} parent=1 // pred_check_branch
      %34 = sbr.rel (0) target = $region29
    $region28: #{mnist_cnn_forward.1} parent=1 // pred_region
      _
    $region29: #{mnist_cnn_forward.1} parent=1 // pred_fallthru
      _
    // Predicated region
    $region30: #{mnist_cnn_forward.1} parent=1 // pred_check
      _
    $region31: #{mnist_cnn_forward.1} parent=1 // pred_check_branch
      %36 = sbr.rel (0) target = $region33
    $region32: #{mnist_cnn_forward.1} parent=1 // pred_region
      _
    $region33: #{mnist_cnn_forward.1} parent=1 // pred_fallthru
      _
    // Predicated region
    $region34: #{mnist_cnn_forward.1} parent=1 // pred_check
      _
    $region35: #{mnist_cnn_forward.1} parent=1 // pred_check_branch
      %38 = sbr.rel (0) target = $region37
    $region36: #{mnist_cnn_forward.1} parent=1 // pred_region
      _
    $region37: #{mnist_cnn_forward.1} parent=1 // pred_fallthru
      _
    // Predicated region
    $region38: #{mnist_cnn_forward.1} parent=1 // pred_check
      _
    $region39: #{mnist_cnn_forward.1} parent=1 // pred_check_branch
      %40 = sbr.rel (0) target = $region41
    $region40: #{mnist_cnn_forward.1} parent=1 // pred_region
      _
    $region41: #{mnist_cnn_forward.1} parent=1 // pred_fallthru
      _
    // Predicated region
    $region42: #{mnist_cnn_forward.1} parent=1 // pred_check
      _
    $region43: #{mnist_cnn_forward.1} parent=1 // pred_check_branch
      %42 = sbr.rel (0) target = $region45
    $region44: #{mnist_cnn_forward.1} parent=1 // pred_region
      _
    $region45: #{mnist_cnn_forward.1} parent=1 // pred_fallthru
      _
    // Predicated region
    $region46: #{mnist_cnn_forward.1} parent=1 // pred_check
      _
    $region47: #{mnist_cnn_forward.1} parent=1 // pred_check_branch
      %44 = sbr.rel (0) target = $region49
    $region48: #{mnist_cnn_forward.1} parent=1 // pred_region
      _
    $region49: #{mnist_cnn_forward.1} parent=1 // pred_fallthru
      _
    // Predicated region
    $region50: #{mnist_cnn_forward.1} parent=1 // pred_check
      _
    $region51: #{mnist_cnn_forward.1} parent=1 // pred_check_branch
      %46 = sbr.rel (0) target = $region53
    $region52: #{mnist_cnn_forward.1} parent=1 // pred_region
      _
    $region53: #{mnist_cnn_forward.1} parent=1 // pred_fallthru
      _
    // Predicated region
    $region54: #{mnist_cnn_forward.1} parent=1 // pred_check
      _
    $region55: #{mnist_cnn_forward.1} parent=1 // pred_check_branch
      %48 = sbr.rel (0) target = $region57
    $region56: #{mnist_cnn_forward.1} parent=1 // pred_region
      _
    $region57: #{mnist_cnn_forward.1} parent=1 // pred_fallthru
      _
    // Predicated region
    $region58: #{mnist_cnn_forward.1} parent=1 // pred_check
      _
    $region59: #{mnist_cnn_forward.1} parent=1 // pred_check_branch
      %50 = sbr.rel (0) target = $region61
    $region60: #{mnist_cnn_forward.1} parent=1 // pred_region
      _
    $region61: #{mnist_cnn_forward.1} parent=1 // pred_fallthru
      _
    %v51 = vld [vmem:[%s0] sm:$0xff]
    %v52 = vld [vmem:[%s0 + $0x8] sm:$0xff]
    %v53 = vld [vmem:[%s0 + $0x10] sm:$0xff]
    %v54 = vld [vmem:[%s0 + $0x18] sm:$0xff]
    %v55 = vld [vmem:[%s0 + $0x20] sm:$0xff]
    %v56 = vld [vmem:[%s0 + $0x28] sm:$0xff]
    %v57 = vld [vmem:[%s0 + $0x30] sm:$0xff]
    %v58 = vld [vmem:[%s1] sm:$0xff]
    %v59 = vld [vmem:[%s1 + $0x8] sm:$0xff]
    %v60 = vld [vmem:[%s1 + $0x10] sm:$0xff]
    %v61 = vld [vmem:[%s1 + $0x18] sm:$0xff]
    %v62 = vld [vmem:[%s1 + $0x20] sm:$0xff]
    %v63 = vld [vmem:[%s1 + $0x28] sm:$0xff]
    %v64 = vld [vmem:[%s1 + $0x30] sm:$0xf]
    %v65 = vld [vmem:[%s1 + $0x38] sm:$0xf]
    %s66 = scalar_lea.vmem %s1, 64
    %v67 = vld [vmem:[%s66] sm:$0xff]
    %v68 = vld [vmem:[%s66 + $0x8] sm:$0xff]
    %v69 = vld [vmem:[%s66 + $0x10] sm:$0xff]
    %v70 = vld [vmem:[%s66 + $0x18] sm:$0xff]
    %v71 = vld [vmem:[%s66 + $0x20] sm:$0xff]
    %v72 = vld [vmem:[%s66 + $0x28] sm:$0xff]
    %v73 = vld [vmem:[%s66 + $0x30] sm:$0xf]
    %v74 = vld [vmem:[%s66 + $0x38] sm:$0xf]
    %s75 = scalar_lea.vmem %s1, 128
    %v76 = vld [vmem:[%s75] sm:$0xff]
    %v77 = vld [vmem:[%s75 + $0x8] sm:$0xff]
    %v78 = vld [vmem:[%s75 + $0x10] sm:$0xff]
    %v79 = vld [vmem:[%s75 + $0x18] sm:$0xff]
    %v80 = vld [vmem:[%s75 + $0x20] sm:$0xff]
    %v81 = vld [vmem:[%s75 + $0x28] sm:$0xff]
    %v82 = vld [vmem:[%s75 + $0x30] sm:$0xf]
    %v83 = vld [vmem:[%s75 + $0x38] sm:$0xf]
    %vm91 = vcmask 1046528
    %v92 = vrot.slane %v51, 1
    %v93 = vrot.slane %v52, 1
    %v94 = vsel %vm91, %v92, %v93
    %v95 = vrot.slane %v53, 1
    %v96 = vsel %vm91, %v93, %v95
    %v97 = vrot.slane %v54, 1
    %v98 = vsel %vm91, %v95, %v97
    %v99 = vrot.slane %v55, 1
    %v100 = vsel %vm91, %v97, %v99
    %v101 = vrot.slane %v56, 1
    %v102 = vsel %vm91, %v99, %v101
    %v103 = vrot.slane %v57, 1
    %v104 = vsel %vm91, %v101, %v103
    %vm105 = vcmask 228352
    %v106 = vsel %vm105, %v94, 0
    %v108 = vsel %vm105, %v96, 0
    %v110 = vsel %vm105, %v98, 0
    %v112 = vsel %vm105, %v100, 0
    %v114 = vsel %vm105, %v102, 0
    %v116 = vsel %vm105, %v104, 0
    %v118 = vsel %vm105, %v103, 0
    %vm120 = vcmask 1043456
    %v122 = vsel %vm120, %v82, 0
    %v125 = vsel %vm120, %v83, 0
    %127 = vmatprep.subr.mxu0 %v77
    %128 = vmatpush1.msra.mxu0 %v76
    %129 = vmatprep.subr.mxu0 %v79
    %130 = vmatpush1.msra.mxu0 %v78
    %131 = vmatprep.subr.mxu0 %v81
    %132 = vmatpush1.msra.mxu0 %v80
    %133 = vmatprep.subr.mxu0 %v125
    %134 = vmatpush1.msra.mxu0 %v122
    %135 = vmatprep.subr.mxu0 0.0
    %136 = vmatpush1.msra.mxu0 0.0
    %137 = vmatprep.subr.mxu0 0.0
    %138 = vmatpush1.msra.mxu0 0.0
    %139 = vmatprep.subr.mxu0 0.0
    %140 = vmatpush1.msra.mxu0 0.0
    %141 = vmatprep.subr.mxu0 0.0
    %142 = vmatpush1.msra.mxu0 0.0
    %143 = vmatprep.subr.mxu0 0.0
    %144 = vmatpush1.msra.mxu0 0.0
    %145 = vmatprep.subr.mxu0 0.0
    %146 = vmatpush1.msra.mxu0 0.0
    %147 = vmatprep.subr.mxu0 0.0
    %148 = vmatpush1.msra.mxu0 0.0
    %149 = vmatprep.subr.mxu0 0.0
    %150 = vmatpush1.msra.mxu0 0.0
    %151 = vmatprep.subr.mxu0 0.0
    %152 = vmatpush1.msra.mxu0 0.0
    %153 = vmatprep.subr.mxu0 0.0
    %154 = vmatpush1.msra.mxu0 0.0
    %155 = vmatprep.subr.mxu0 0.0
    %156 = vmatpush1.msra.mxu0 0.0
    %157 = vmatprep.subr.mxu0 0.0
    %158 = vmatpush1.msra.mxu0 0.0
    %159 = vmatprep.subr.mxu0 0.0
    %160 = vmatpush1.msra.mxu0 0.0
    %161 = vmatprep.subr.mxu0 0.0
    %162 = vmatpush1.msra.mxu0 0.0
    %163 = vmatprep.subr.mxu0 0.0
    %164 = vmatpush1.msra.mxu0 0.0
    %165 = vmatprep.subr.mxu0 0.0
    %166 = vmatpush1.msra.mxu0 0.0
    %167 = vmatprep.subr.mxu0 0.0
    %168 = vmatpush1.msra.mxu0 0.0
    %169 = vmatprep.subr.mxu0 0.0
    %170 = vmatpush1.msra.mxu0 0.0
    %171 = vmatprep.subr.mxu0 0.0
    %172 = vmatpush1.msra.mxu0 0.0
    %173 = vmatprep.subr.mxu0 0.0
    %174 = vmatpush1.msra.mxu0 0.0
    %175 = vmatprep.subr.mxu0 0.0
    %176 = vmatpush1.msra.mxu0 0.0
    %177 = vmatprep.subr.mxu0 0.0
    %178 = vmatpush1.msra.mxu0 0.0
    %179 = vmatprep.subr.mxu0 0.0
    %180 = vmatpush1.msra.mxu0 0.0
    %181 = vmatprep.subr.mxu0 0.0
    %182 = vmatpush1.msra.mxu0 0.0
    %183 = vmatprep.subr.mxu0 0.0
    %184 = vmatpush1.msra.mxu0 0.0
    %185 = vmatprep.subr.mxu0 0.0
    %186 = vmatpush1.msra.mxu0 0.0
    %187 = vmatprep.subr.mxu0 0.0
    %188 = vmatpush1.msra.mxu0 0.0
    %189 = vmatprep.subr.mxu0 0.0
    %190 = vmatpush1.msra.mxu0 0.0
    %191 = vmatprep.mubr.f32.mxu0 0.0
    %192 = vmatmul.mubr.f32.gmra.mrb[0].mxu0 %v106
    %v193 = vpop.f32.mrb[0].mxu0
    %v194 = vadd.f32 0.0, %v193
    %v195 = vpop.f32.mrb[0].mxu0
    %v196 = vadd.f32 0.0, %v195
    %197 = vmatprep.mubr.f32.mxu0 0.0
    %198 = vmatmul.mubr.f32.gmra.mrb[0].mxu0 %v108
    %v199 = vpop.f32.mrb[0].mxu0
    %v200 = vadd.f32 0.0, %v199
    %v201 = vpop.f32.mrb[0].mxu0
    %v202 = vadd.f32 0.0, %v201
    %203 = vmatprep.mubr.f32.mxu0 0.0
    %204 = vmatmul.mubr.f32.gmra.mrb[0].mxu0 %v110
    %v205 = vpop.f32.mrb[0].mxu0
    %v206 = vadd.f32 0.0, %v205
    %v207 = vpop.f32.mrb[0].mxu0
    %v208 = vadd.f32 0.0, %v207
    %209 = vmatprep.mubr.f32.mxu0 0.0
    %210 = vmatmul.mubr.f32.gmra.mrb[0].mxu0 %v112
    %v211 = vpop.f32.mrb[0].mxu0
    %v212 = vadd.f32 0.0, %v211
    %v213 = vpop.f32.mrb[0].mxu0
    %v214 = vadd.f32 0.0, %v213
    %215 = vmatprep.mubr.f32.mxu0 0.0
    %216 = vmatmul.mubr.f32.gmra.mrb[0].mxu0 %v114
    %v217 = vpop.f32.mrb[0].mxu0
    %v218 = vadd.f32 0.0, %v217
    %v219 = vpop.f32.mrb[0].mxu0
    %v220 = vadd.f32 0.0, %v219
    %221 = vmatprep.mubr.f32.mxu0 0.0
    %222 = vmatmul.mubr.f32.gmra.mrb[0].mxu0 %v116
    %v223 = vpop.f32.mrb[0].mxu0
    %v224 = vadd.f32 0.0, %v223
    %v225 = vpop.f32.mrb[0].mxu0
    %v226 = vadd.f32 0.0, %v225
    %227 = vmatprep.mubr.f32.mxu0 0.0
    %228 = vmatmul.mubr.f32.gmra.mrb[0].mxu0 %v118
    %v229 = vpop.f32.mrb[0].mxu0
    %v230 = vadd.f32 0.0, %v229
    %v231 = vpop.f32.mrb[0].mxu0
    %v232 = vadd.f32 0.0, %v231
    %233 = vdwg.mxu0
    %v234 = vsel %vm105, %v51, 0
    %v236 = vsel %vm105, %v52, 0
    %v238 = vsel %vm105, %v53, 0
    %v240 = vsel %vm105, %v54, 0
    %v242 = vsel %vm105, %v55, 0
    %v244 = vsel %vm105, %v56, 0
    %v246 = vsel %vm105, %v57, 0
    %v249 = vsel %vm120, %v64, 0
    %v252 = vsel %vm120, %v65, 0
    %254 = vmatprep.subr.mxu0 %v59
    %255 = vmatpush1.msra.mxu0 %v58
    %256 = vmatprep.subr.mxu0 %v61
    %257 = vmatpush1.msra.mxu0 %v60
    %258 = vmatprep.subr.mxu0 %v63
    %259 = vmatpush1.msra.mxu0 %v62
    %260 = vmatprep.subr.mxu0 %v252
    %261 = vmatpush1.msra.mxu0 %v249
    %262 = vmatprep.subr.mxu0 0.0
    %263 = vmatpush1.msra.mxu0 0.0
    %264 = vmatprep.subr.mxu0 0.0
    %265 = vmatpush1.msra.mxu0 0.0
    %266 = vmatprep.subr.mxu0 0.0
    %267 = vmatpush1.msra.mxu0 0.0
    %268 = vmatprep.subr.mxu0 0.0
    %269 = vmatpush1.msra.mxu0 0.0
    %270 = vmatprep.subr.mxu0 0.0
    %271 = vmatpush1.msra.mxu0 0.0
    %272 = vmatprep.subr.mxu0 0.0
    %273 = vmatpush1.msra.mxu0 0.0
    %274 = vmatprep.subr.mxu0 0.0
    %275 = vmatpush1.msra.mxu0 0.0
    %276 = vmatprep.subr.mxu0 0.0
    %277 = vmatpush1.msra.mxu0 0.0
    %278 = vmatprep.subr.mxu0 0.0
    %279 = vmatpush1.msra.mxu0 0.0
    %280 = vmatprep.subr.mxu0 0.0
    %281 = vmatpush1.msra.mxu0 0.0
    %282 = vmatprep.subr.mxu0 0.0
    %283 = vmatpush1.msra.mxu0 0.0
    %284 = vmatprep.subr.mxu0 0.0
    %285 = vmatpush1.msra.mxu0 0.0
    %286 = vmatprep.subr.mxu0 0.0
    %287 = vmatpush1.msra.mxu0 0.0
    %288 = vmatprep.subr.mxu0 0.0
    %289 = vmatpush1.msra.mxu0 0.0
    %290 = vmatprep.subr.mxu0 0.0
    %291 = vmatpush1.msra.mxu0 0.0
    %292 = vmatprep.subr.mxu0 0.0
    %293 = vmatpush1.msra.mxu0 0.0
    %294 = vmatprep.subr.mxu0 0.0
    %295 = vmatpush1.msra.mxu0 0.0
    %296 = vmatprep.subr.mxu0 0.0
    %297 = vmatpush1.msra.mxu0 0.0
    %298 = vmatprep.subr.mxu0 0.0
    %299 = vmatpush1.msra.mxu0 0.0
    %300 = vmatprep.subr.mxu0 0.0
    %301 = vmatpush1.msra.mxu0 0.0
    %302 = vmatprep.subr.mxu0 0.0
    %303 = vmatpush1.msra.mxu0 0.0
    %304 = vmatprep.subr.mxu0 0.0
    %305 = vmatpush1.msra.mxu0 0.0
    %306 = vmatprep.subr.mxu0 0.0
    %307 = vmatpush1.msra.mxu0 0.0
    %308 = vmatprep.subr.mxu0 0.0
    %309 = vmatpush1.msra.mxu0 0.0
    %310 = vmatprep.subr.mxu0 0.0
    %311 = vmatpush1.msra.mxu0 0.0
    %312 = vmatprep.subr.mxu0 0.0
    %313 = vmatpush1.msra.mxu0 0.0
    %314 = vmatprep.subr.mxu0 0.0
    %315 = vmatpush1.msra.mxu0 0.0
    %316 = vmatprep.subr.mxu0 0.0
    %317 = vmatpush1.msra.mxu0 0.0
    %318 = vmatprep.mubr.f32.mxu0 0.0
    %319 = vmatmul.mubr.f32.gmra.mrb[0].mxu0 %v234
    %v320 = vpop.f32.mrb[0].mxu0
    %v321 = vadd.f32 %v194, %v320
    %v322 = vpop.f32.mrb[0].mxu0
    %v323 = vadd.f32 %v196, %v322
    %324 = vmatprep.mubr.f32.mxu0 0.0
    %325 = vmatmul.mubr.f32.gmra.mrb[0].mxu0 %v236
    %v326 = vpop.f32.mrb[0].mxu0
    %v327 = vadd.f32 %v200, %v326
    %v328 = vpop.f32.mrb[0].mxu0
    %v329 = vadd.f32 %v202, %v328
    %330 = vmatprep.mubr.f32.mxu0 0.0
    %331 = vmatmul.mubr.f32.gmra.mrb[0].mxu0 %v238
    %v332 = vpop.f32.mrb[0].mxu0
    %v333 = vadd.f32 %v206, %v332
    %v334 = vpop.f32.mrb[0].mxu0
    %v335 = vadd.f32 %v208, %v334
    %336 = vmatprep.mubr.f32.mxu0 0.0
    %337 = vmatmul.mubr.f32.gmra.mrb[0].mxu0 %v240
    %v338 = vpop.f32.mrb[0].mxu0
    %v339 = vadd.f32 %v212, %v338
    %v340 = vpop.f32.mrb[0].mxu0
    %v341 = vadd.f32 %v214, %v340
    %342 = vmatprep.mubr.f32.mxu0 0.0
    %343 = vmatmul.mubr.f32.gmra.mrb[0].mxu0 %v242
    %v344 = vpop.f32.mrb[0].mxu0
    %v345 = vadd.f32 %v218, %v344
    %v346 = vpop.f32.mrb[0].mxu0
    %v347 = vadd.f32 %v220, %v346
    %348 = vmatprep.mubr.f32.mxu0 0.0
    %349 = vmatmul.mubr.f32.gmra.mrb[0].mxu0 %v244
    %v350 = vpop.f32.mrb[0].mxu0
    %v351 = vadd.f32 %v224, %v350
    %v352 = vpop.f32.mrb[0].mxu0
    %v353 = vadd.f32 %v226, %v352
    %354 = vmatprep.mubr.f32.mxu0 0.0
    %355 = vmatmul.mubr.f32.gmra.mrb[0].mxu0 %v246
    %v356 = vpop.f32.mrb[0].mxu0
    %v357 = vadd.f32 %v230, %v356
    %v358 = vpop.f32.mrb[0].mxu0
    %v359 = vadd.f32 %v232, %v358
    %360 = vdwg.mxu0
    %s361 = scalar_lea.vmem %s1, 192
    %v362 = vld [vmem:[%s361] sm:$0xff]
    %v363 = vld [vmem:[%s361 + $0x8] sm:$0xff]
    %v364 = vld [vmem:[%s361 + $0x10] sm:$0xff]
    %v365 = vld [vmem:[%s361 + $0x18] sm:$0xff]
    %v366 = vld [vmem:[%s361 + $0x20] sm:$0xff]
    %v367 = vld [vmem:[%s361 + $0x28] sm:$0xff]
    %v368 = vld [vmem:[%s361 + $0x30] sm:$0xf]
    %v369 = vld [vmem:[%s361 + $0x38] sm:$0xf]
    %v371 = vsel %vm120, %v368, 0
    %v374 = vsel %vm120, %v369, 0
    %376 = vmatprep.subr.mxu0 %v363
    %377 = vmatpush1.msra.mxu0 %v362
    %378 = vmatprep.subr.mxu0 %v365
    %379 = vmatpush1.msra.mxu0 %v364
    %380 = vmatprep.subr.mxu0 %v367
    %381 = vmatpush1.msra.mxu0 %v366
    %382 = vmatprep.subr.mxu0 %v374
    %383 = vmatpush1.msra.mxu0 %v371
    %384 = vmatprep.subr.mxu0 0.0
    %385 = vmatpush1.msra.mxu0 0.0
    %386 = vmatprep.subr.mxu0 0.0
    %387 = vmatpush1.msra.mxu0 0.0
    %388 = vmatprep.subr.mxu0 0.0
    %389 = vmatpush1.msra.mxu0 0.0
    %390 = vmatprep.subr.mxu0 0.0
    %391 = vmatpush1.msra.mxu0 0.0
    %392 = vmatprep.subr.mxu0 0.0
    %393 = vmatpush1.msra.mxu0 0.0
    %394 = vmatprep.subr.mxu0 0.0
    %395 = vmatpush1.msra.mxu0 0.0
    %396 = vmatprep.subr.mxu0 0.0
    %397 = vmatpush1.msra.mxu0 0.0
    %398 = vmatprep.subr.mxu0 0.0
    %399 = vmatpush1.msra.mxu0 0.0
    %400 = vmatprep.subr.mxu0 0.0
    %401 = vmatpush1.msra.mxu0 0.0
    %402 = vmatprep.subr.mxu0 0.0
    %403 = vmatpush1.msra.mxu0 0.0
    %404 = vmatprep.subr.mxu0 0.0
    %405 = vmatpush1.msra.mxu0 0.0
    %406 = vmatprep.subr.mxu0 0.0
    %407 = vmatpush1.msra.mxu0 0.0
    %408 = vmatprep.subr.mxu0 0.0
    %409 = vmatpush1.msra.mxu0 0.0
    %410 = vmatprep.subr.mxu0 0.0
    %411 = vmatpush1.msra.mxu0 0.0
    %412 = vmatprep.subr.mxu0 0.0
    %413 = vmatpush1.msra.mxu0 0.0
    %414 = vmatprep.subr.mxu0 0.0
    %415 = vmatpush1.msra.mxu0 0.0
    %416 = vmatprep.subr.mxu0 0.0
    %417 = vmatpush1.msra.mxu0 0.0
    %418 = vmatprep.subr.mxu0 0.0
    %419 = vmatpush1.msra.mxu0 0.0
    %420 = vmatprep.subr.mxu0 0.0
    %421 = vmatpush1.msra.mxu0 0.0
    %422 = vmatprep.subr.mxu0 0.0
    %423 = vmatpush1.msra.mxu0 0.0
    %424 = vmatprep.subr.mxu0 0.0
    %425 = vmatpush1.msra.mxu0 0.0
    %426 = vmatprep.subr.mxu0 0.0
    %427 = vmatpush1.msra.mxu0 0.0
    %428 = vmatprep.subr.mxu0 0.0
    %429 = vmatpush1.msra.mxu0 0.0
    %430 = vmatprep.subr.mxu0 0.0
    %431 = vmatpush1.msra.mxu0 0.0
    %432 = vmatprep.subr.mxu0 0.0
    %433 = vmatpush1.msra.mxu0 0.0
    %434 = vmatprep.subr.mxu0 0.0
    %435 = vmatpush1.msra.mxu0 0.0
    %436 = vmatprep.subr.mxu0 0.0
    %437 = vmatpush1.msra.mxu0 0.0
    %438 = vmatprep.subr.mxu0 0.0
    %439 = vmatpush1.msra.mxu0 0.0
    %440 = vmatprep.mubr.f32.mxu0 0.0
    %441 = vmatmul.mubr.f32.gmra.mrb[0].mxu0 %v106
    %v442 = vpop.f32.mrb[0].mxu0
    %v443 = vadd.f32 0.0, %v442
    %v444 = vpop.f32.mrb[0].mxu0
    %v445 = vadd.f32 0.0, %v444
    %446 = vmatprep.mubr.f32.mxu0 0.0
    %447 = vmatmul.mubr.f32.gmra.mrb[0].mxu0 %v108
    %v448 = vpop.f32.mrb[0].mxu0
    %v449 = vadd.f32 0.0, %v448
    %v450 = vpop.f32.mrb[0].mxu0
    %v451 = vadd.f32 0.0, %v450
    %452 = vmatprep.mubr.f32.mxu0 0.0
    %453 = vmatmul.mubr.f32.gmra.mrb[0].mxu0 %v110
    %v454 = vpop.f32.mrb[0].mxu0
    %v455 = vadd.f32 0.0, %v454
    %v456 = vpop.f32.mrb[0].mxu0
    %v457 = vadd.f32 0.0, %v456
    %458 = vmatprep.mubr.f32.mxu0 0.0
    %459 = vmatmul.mubr.f32.gmra.mrb[0].mxu0 %v112
    %v460 = vpop.f32.mrb[0].mxu0
    %v461 = vadd.f32 0.0, %v460
    %v462 = vpop.f32.mrb[0].mxu0
    %v463 = vadd.f32 0.0, %v462
    %464 = vmatprep.mubr.f32.mxu0 0.0
    %465 = vmatmul.mubr.f32.gmra.mrb[0].mxu0 %v114
    %v466 = vpop.f32.mrb[0].mxu0
    %v467 = vadd.f32 0.0, %v466
    %v468 = vpop.f32.mrb[0].mxu0
    %v469 = vadd.f32 0.0, %v468
    %470 = vmatprep.mubr.f32.mxu0 0.0
    %471 = vmatmul.mubr.f32.gmra.mrb[0].mxu0 %v116
    %v472 = vpop.f32.mrb[0].mxu0
    %v473 = vadd.f32 0.0, %v472
    %v474 = vpop.f32.mrb[0].mxu0
    %v475 = vadd.f32 0.0, %v474
    %476 = vmatprep.mubr.f32.mxu0 0.0
    %477 = vmatmul.mubr.f32.gmra.mrb[0].mxu0 %v118
    %v478 = vpop.f32.mrb[0].mxu0
    %v479 = vadd.f32 0.0, %v478
    %v480 = vpop.f32.mrb[0].mxu0
    %v481 = vadd.f32 0.0, %v480
    %482 = vdwg.mxu0
    %v484 = vsel %vm120, %v73, 0
    %v487 = vsel %vm120, %v74, 0
    %489 = vmatprep.subr.mxu0 %v68
    %490 = vmatpush1.msra.mxu0 %v67
    %491 = vmatprep.subr.mxu0 %v70
    %492 = vmatpush1.msra.mxu0 %v69
    %493 = vmatprep.subr.mxu0 %v72
    %494 = vmatpush1.msra.mxu0 %v71
    %495 = vmatprep.subr.mxu0 %v487
    %496 = vmatpush1.msra.mxu0 %v484
    %497 = vmatprep.subr.mxu0 0.0
    %498 = vmatpush1.msra.mxu0 0.0
    %499 = vmatprep.subr.mxu0 0.0
    %500 = vmatpush1.msra.mxu0 0.0
    %501 = vmatprep.subr.mxu0 0.0
    %502 = vmatpush1.msra.mxu0 0.0
    %503 = vmatprep.subr.mxu0 0.0
    %504 = vmatpush1.msra.mxu0 0.0
    %505 = vmatprep.subr.mxu0 0.0
    %506 = vmatpush1.msra.mxu0 0.0
    %507 = vmatprep.subr.mxu0 0.0
    %508 = vmatpush1.msra.mxu0 0.0
    %509 = vmatprep.subr.mxu0 0.0
    %510 = vmatpush1.msra.mxu0 0.0
    %511 = vmatprep.subr.mxu0 0.0
    %512 = vmatpush1.msra.mxu0 0.0
    %513 = vmatprep.subr.mxu0 0.0
    %514 = vmatpush1.msra.mxu0 0.0
    %515 = vmatprep.subr.mxu0 0.0
    %516 = vmatpush1.msra.mxu0 0.0
    %517 = vmatprep.subr.mxu0 0.0
    %518 = vmatpush1.msra.mxu0 0.0
    %519 = vmatprep.subr.mxu0 0.0
    %520 = vmatpush1.msra.mxu0 0.0
    %521 = vmatprep.subr.mxu0 0.0
    %522 = vmatpush1.msra.mxu0 0.0
    %523 = vmatprep.subr.mxu0 0.0
    %524 = vmatpush1.msra.mxu0 0.0
    %525 = vmatprep.subr.mxu0 0.0
    %526 = vmatpush1.msra.mxu0 0.0
    %527 = vmatprep.subr.mxu0 0.0
    %528 = vmatpush1.msra.mxu0 0.0
    %529 = vmatprep.subr.mxu0 0.0
    %530 = vmatpush1.msra.mxu0 0.0
    %531 = vmatprep.subr.mxu0 0.0
    %532 = vmatpush1.msra.mxu0 0.0
    %533 = vmatprep.subr.mxu0 0.0
    %534 = vmatpush1.msra.mxu0 0.0
    %535 = vmatprep.subr.mxu0 0.0
    %536 = vmatpush1.msra.mxu0 0.0
    %537 = vmatprep.subr.mxu0 0.0
    %538 = vmatpush1.msra.mxu0 0.0
    %539 = vmatprep.subr.mxu0 0.0
    %540 = vmatpush1.msra.mxu0 0.0
    %541 = vmatprep.subr.mxu0 0.0
    %542 = vmatpush1.msra.mxu0 0.0
    %543 = vmatprep.subr.mxu0 0.0
    %544 = vmatpush1.msra.mxu0 0.0
    %545 = vmatprep.subr.mxu0 0.0
    %546 = vmatpush1.msra.mxu0 0.0
    %547 = vmatprep.subr.mxu0 0.0
    %548 = vmatpush1.msra.mxu0 0.0
    %549 = vmatprep.subr.mxu0 0.0
    %550 = vmatpush1.msra.mxu0 0.0
    %551 = vmatprep.subr.mxu0 0.0
    %552 = vmatpush1.msra.mxu0 0.0
    %553 = vmatprep.mubr.f32.mxu0 0.0
    %554 = vmatmul.mubr.f32.gmra.mrb[0].mxu0 %v234
    %v555 = vpop.f32.mrb[0].mxu0
    %v556 = vadd.f32 %v443, %v555
    %v557 = vpop.f32.mrb[0].mxu0
    %v558 = vadd.f32 %v445, %v557
    %559 = vmatprep.mubr.f32.mxu0 0.0
    %560 = vmatmul.mubr.f32.gmra.mrb[0].mxu0 %v236
    %v561 = vpop.f32.mrb[0].mxu0
    %v562 = vadd.f32 %v449, %v561
    %v563 = vpop.f32.mrb[0].mxu0
    %v564 = vadd.f32 %v451, %v563
    %565 = vmatprep.mubr.f32.mxu0 0.0
    %566 = vmatmul.mubr.f32.gmra.mrb[0].mxu0 %v238
    %v567 = vpop.f32.mrb[0].mxu0
    %v568 = vadd.f32 %v455, %v567
    %v569 = vpop.f32.mrb[0].mxu0
    %v570 = vadd.f32 %v457, %v569
    %571 = vmatprep.mubr.f32.mxu0 0.0
    %572 = vmatmul.mubr.f32.gmra.mrb[0].mxu0 %v240
    %v573 = vpop.f32.mrb[0].mxu0
    %v574 = vadd.f32 %v461, %v573
    %v575 = vpop.f32.mrb[0].mxu0
    %v576 = vadd.f32 %v463, %v575
    %577 = vmatprep.mubr.f32.mxu0 0.0
    %578 = vmatmul.mubr.f32.gmra.mrb[0].mxu0 %v242
    %v579 = vpop.f32.mrb[0].mxu0
    %v580 = vadd.f32 %v467, %v579
    %v581 = vpop.f32.mrb[0].mxu0
    %v582 = vadd.f32 %v469, %v581
    %583 = vmatprep.mubr.f32.mxu0 0.0
    %584 = vmatmul.mubr.f32.gmra.mrb[0].mxu0 %v244
    %v585 = vpop.f32.mrb[0].mxu0
    %v586 = vadd.f32 %v473, %v585
    %v587 = vpop.f32.mrb[0].mxu0
    %v588 = vadd.f32 %v475, %v587
    %589 = vmatprep.mubr.f32.mxu0 0.0
    %590 = vmatmul.mubr.f32.gmra.mrb[0].mxu0 %v246
    %v591 = vpop.f32.mrb[0].mxu0
    %v592 = vadd.f32 %v479, %v591
    %v593 = vpop.f32.mrb[0].mxu0
    %v594 = vadd.f32 %v481, %v593
    %595 = vdwg.mxu0
    %s596 = scalar_lea.vmem %s1, 256
    %v597 = vld [vmem:[%s596] sm:$0xff]
    %v598 = vld [vmem:[%s596 + $0x8] sm:$0xff]
    %v599 = vld [vmem:[%s596 + $0x10] sm:$0xff]
    %v600 = vld [vmem:[%s596 + $0x18] sm:$0xff]
    %v601 = vld [vmem:[%s596 + $0x20] sm:$0xff]
    %v602 = vld [vmem:[%s596 + $0x28] sm:$0xff]
    %v603 = vld [vmem:[%s596 + $0x30] sm:$0xf]
    %v604 = vld [vmem:[%s596 + $0x38] sm:$0xf]
    %vm605 = vcmask 1045504
    %v606 = vrot.slane %v51, 2
    %v607 = vrot.slane %v52, 2
    %v608 = vsel %vm605, %v606, %v607
    %v609 = vrot.slane %v53, 2
    %v610 = vsel %vm605, %v607, %v609
    %v611 = vrot.slane %v54, 2
    %v612 = vsel %vm605, %v609, %v611
    %v613 = vrot.slane %v55, 2
    %v614 = vsel %vm605, %v611, %v613
    %v615 = vrot.slane %v56, 2
    %v616 = vsel %vm605, %v613, %v615
    %v617 = vrot.slane %v57, 2
    %v618 = vsel %vm605, %v615, %v617
    %v619 = vsel %vm105, %v608, 0
    %v621 = vsel %vm105, %v610, 0
    %v623 = vsel %vm105, %v612, 0
    %v625 = vsel %vm105, %v614, 0
    %v627 = vsel %vm105, %v616, 0
    %v629 = vsel %vm105, %v618, 0
    %v631 = vsel %vm105, %v617, 0
    %v634 = vsel %vm120, %v603, 0
    %v637 = vsel %vm120, %v604, 0
    %639 = vmatprep.subr.mxu0 %v598
    %640 = vmatpush1.msra.mxu0 %v597
    %641 = vmatprep.subr.mxu0 %v600
    %642 = vmatpush1.msra.mxu0 %v599
    %643 = vmatprep.subr.mxu0 %v602
    %644 = vmatpush1.msra.mxu0 %v601
    %645 = vmatprep.subr.mxu0 %v637
    %646 = vmatpush1.msra.mxu0 %v634
    %647 = vmatprep.subr.mxu0 0.0
    %648 = vmatpush1.msra.mxu0 0.0
    %649 = vmatprep.subr.mxu0 0.0
    %650 = vmatpush1.msra.mxu0 0.0
    %651 = vmatprep.subr.mxu0 0.0
    %652 = vmatpush1.msra.mxu0 0.0
    %653 = vmatprep.subr.mxu0 0.0
    %654 = vmatpush1.msra.mxu0 0.0
    %655 = vmatprep.subr.mxu0 0.0
    %656 = vmatpush1.msra.mxu0 0.0
    %657 = vmatprep.subr.mxu0 0.0
    %658 = vmatpush1.msra.mxu0 0.0
    %659 = vmatprep.subr.mxu0 0.0
    %660 = vmatpush1.msra.mxu0 0.0
    %661 = vmatprep.subr.mxu0 0.0
    %662 = vmatpush1.msra.mxu0 0.0
    %663 = vmatprep.subr.mxu0 0.0
    %664 = vmatpush1.msra.mxu0 0.0
    %665 = vmatprep.subr.mxu0 0.0
    %666 = vmatpush1.msra.mxu0 0.0
    %667 = vmatprep.subr.mxu0 0.0
    %668 = vmatpush1.msra.mxu0 0.0
    %669 = vmatprep.subr.mxu0 0.0
    %670 = vmatpush1.msra.mxu0 0.0
    %671 = vmatprep.subr.mxu0 0.0
    %672 = vmatpush1.msra.mxu0 0.0
    %673 = vmatprep.subr.mxu0 0.0
    %674 = vmatpush1.msra.mxu0 0.0
    %675 = vmatprep.subr.mxu0 0.0
    %676 = vmatpush1.msra.mxu0 0.0
    %677 = vmatprep.subr.mxu0 0.0
    %678 = vmatpush1.msra.mxu0 0.0
    %679 = vmatprep.subr.mxu0 0.0
    %680 = vmatpush1.msra.mxu0 0.0
    %681 = vmatprep.subr.mxu0 0.0
    %682 = vmatpush1.msra.mxu0 0.0
    %683 = vmatprep.subr.mxu0 0.0
    %684 = vmatpush1.msra.mxu0 0.0
    %685 = vmatprep.subr.mxu0 0.0
    %686 = vmatpush1.msra.mxu0 0.0
    %687 = vmatprep.subr.mxu0 0.0
    %688 = vmatpush1.msra.mxu0 0.0
    %689 = vmatprep.subr.mxu0 0.0
    %690 = vmatpush1.msra.mxu0 0.0
    %691 = vmatprep.subr.mxu0 0.0
    %692 = vmatpush1.msra.mxu0 0.0
    %693 = vmatprep.subr.mxu0 0.0
    %694 = vmatpush1.msra.mxu0 0.0
    %695 = vmatprep.subr.mxu0 0.0
    %696 = vmatpush1.msra.mxu0 0.0
    %697 = vmatprep.subr.mxu0 0.0
    %698 = vmatpush1.msra.mxu0 0.0
    %699 = vmatprep.subr.mxu0 0.0
    %700 = vmatpush1.msra.mxu0 0.0
    %701 = vmatprep.subr.mxu0 0.0
    %702 = vmatpush1.msra.mxu0 0.0
    %703 = vmatprep.mubr.f32.mxu0 0.0
    %704 = vmatmul.mubr.f32.gmra.mrb[0].mxu0 %v619
    %v705 = vpop.f32.mrb[0].mxu0
    %v706 = vadd.f32 0.0, %v705
    %v707 = vpop.f32.mrb[0].mxu0
    %v708 = vadd.f32 0.0, %v707
    %709 = vmatprep.mubr.f32.mxu0 0.0
    %710 = vmatmul.mubr.f32.gmra.mrb[0].mxu0 %v621
    %v711 = vpop.f32.mrb[0].mxu0
    %v712 = vadd.f32 0.0, %v711
    %v713 = vpop.f32.mrb[0].mxu0
    %v714 = vadd.f32 0.0, %v713
    %715 = vmatprep.mubr.f32.mxu0 0.0
    %716 = vmatmul.mubr.f32.gmra.mrb[0].mxu0 %v623
    %v717 = vpop.f32.mrb[0].mxu0
    %v718 = vadd.f32 0.0, %v717
    %v719 = vpop.f32.mrb[0].mxu0
    %v720 = vadd.f32 0.0, %v719
    %721 = vmatprep.mubr.f32.mxu0 0.0
    %722 = vmatmul.mubr.f32.gmra.mrb[0].mxu0 %v625
    %v723 = vpop.f32.mrb[0].mxu0
    %v724 = vadd.f32 0.0, %v723
    %v725 = vpop.f32.mrb[0].mxu0
    %v726 = vadd.f32 0.0, %v725
    %727 = vmatprep.mubr.f32.mxu0 0.0
    %728 = vmatmul.mubr.f32.gmra.mrb[0].mxu0 %v627
    %v729 = vpop.f32.mrb[0].mxu0
    %v730 = vadd.f32 0.0, %v729
    %v731 = vpop.f32.mrb[0].mxu0
    %v732 = vadd.f32 0.0, %v731
    %733 = vmatprep.mubr.f32.mxu0 0.0
    %734 = vmatmul.mubr.f32.gmra.mrb[0].mxu0 %v629
    %v735 = vpop.f32.mrb[0].mxu0
    %v736 = vadd.f32 0.0, %v735
    %v737 = vpop.f32.mrb[0].mxu0
    %v738 = vadd.f32 0.0, %v737
    %739 = vmatprep.mubr.f32.mxu0 0.0
    %740 = vmatmul.mubr.f32.gmra.mrb[0].mxu0 %v631
    %v741 = vpop.f32.mrb[0].mxu0
    %v742 = vadd.f32 0.0, %v741
    %v743 = vpop.f32.mrb[0].mxu0
    %v744 = vadd.f32 0.0, %v743
    %745 = vdwg.mxu0
    %v746 = vadd.f32 %v321, %v706
    %v747 = vadd.f32 %v323, %v708
    %v748 = vadd.f32 %v327, %v712
    %v749 = vadd.f32 %v329, %v714
    %v750 = vadd.f32 %v333, %v718
    %v751 = vadd.f32 %v335, %v720
    %v752 = vadd.f32 %v339, %v724
    %v753 = vadd.f32 %v341, %v726
    %v754 = vadd.f32 %v345, %v730
    %v755 = vadd.f32 %v347, %v732
    %v756 = vadd.f32 %v351, %v736
    %v757 = vadd.f32 %v353, %v738
    %v758 = vadd.f32 %v357, %v742
    %v759 = vadd.f32 %v359, %v744
    %s760 = scalar_lea.vmem %s1, 320
    %v761 = vld [vmem:[%s760] sm:$0xff]
    %v762 = vld [vmem:[%s760 + $0x8] sm:$0xff]
    %v763 = vld [vmem:[%s760 + $0x10] sm:$0xff]
    %v764 = vld [vmem:[%s760 + $0x18] sm:$0xff]
    %v765 = vld [vmem:[%s760 + $0x20] sm:$0xff]
    %v766 = vld [vmem:[%s760 + $0x28] sm:$0xff]
    %v767 = vld [vmem:[%s760 + $0x30] sm:$0xf]
    %v768 = vld [vmem:[%s760 + $0x38] sm:$0xf]
    %v770 = vsel %vm120, %v767, 0
    %v773 = vsel %vm120, %v768, 0
    %775 = vmatprep.subr.mxu0 %v762
    %776 = vmatpush1.msra.mxu0 %v761
    %777 = vmatprep.subr.mxu0 %v764
    %778 = vmatpush1.msra.mxu0 %v763
    %779 = vmatprep.subr.mxu0 %v766
    %780 = vmatpush1.msra.mxu0 %v765
    %781 = vmatprep.subr.mxu0 %v773
    %782 = vmatpush1.msra.mxu0 %v770
    %783 = vmatprep.subr.mxu0 0.0
    %784 = vmatpush1.msra.mxu0 0.0
    %785 = vmatprep.subr.mxu0 0.0
    %786 = vmatpush1.msra.mxu0 0.0
    %787 = vmatprep.subr.mxu0 0.0
    %788 = vmatpush1.msra.mxu0 0.0
    %789 = vmatprep.subr.mxu0 0.0
    %790 = vmatpush1.msra.mxu0 0.0
    %791 = vmatprep.subr.mxu0 0.0
    %792 = vmatpush1.msra.mxu0 0.0
    %793 = vmatprep.subr.mxu0 0.0
    %794 = vmatpush1.msra.mxu0 0.0
    %795 = vmatprep.subr.mxu0 0.0
    %796 = vmatpush1.msra.mxu0 0.0
    %797 = vmatprep.subr.mxu0 0.0
    %798 = vmatpush1.msra.mxu0 0.0
    %799 = vmatprep.subr.mxu0 0.0
    %800 = vmatpush1.msra.mxu0 0.0
    %801 = vmatprep.subr.mxu0 0.0
    %802 = vmatpush1.msra.mxu0 0.0
    %803 = vmatprep.subr.mxu0 0.0
    %804 = vmatpush1.msra.mxu0 0.0
    %805 = vmatprep.subr.mxu0 0.0
    %806 = vmatpush1.msra.mxu0 0.0
    %807 = vmatprep.subr.mxu0 0.0
    %808 = vmatpush1.msra.mxu0 0.0
    %809 = vmatprep.subr.mxu0 0.0
    %810 = vmatpush1.msra.mxu0 0.0
    %811 = vmatprep.subr.mxu0 0.0
    %812 = vmatpush1.msra.mxu0 0.0
    %813 = vmatprep.subr.mxu0 0.0
    %814 = vmatpush1.msra.mxu0 0.0
    %815 = vmatprep.subr.mxu0 0.0
    %816 = vmatpush1.msra.mxu0 0.0
    %817 = vmatprep.subr.mxu0 0.0
    %818 = vmatpush1.msra.mxu0 0.0
    %819 = vmatprep.subr.mxu0 0.0
    %820 = vmatpush1.msra.mxu0 0.0
    %821 = vmatprep.subr.mxu0 0.0
    %822 = vmatpush1.msra.mxu0 0.0
    %823 = vmatprep.subr.mxu0 0.0
    %824 = vmatpush1.msra.mxu0 0.0
    %825 = vmatprep.subr.mxu0 0.0
    %826 = vmatpush1.msra.mxu0 0.0
    %827 = vmatprep.subr.mxu0 0.0
    %828 = vmatpush1.msra.mxu0 0.0
    %829 = vmatprep.subr.mxu0 0.0
    %830 = vmatpush1.msra.mxu0 0.0
    %831 = vmatprep.subr.mxu0 0.0
    %832 = vmatpush1.msra.mxu0 0.0
    %833 = vmatprep.subr.mxu0 0.0
    %834 = vmatpush1.msra.mxu0 0.0
    %835 = vmatprep.subr.mxu0 0.0
    %836 = vmatpush1.msra.mxu0 0.0
    %837 = vmatprep.subr.mxu0 0.0
    %838 = vmatpush1.msra.mxu0 0.0
    %839 = vmatprep.mubr.f32.mxu0 0.0
    %840 = vmatmul.mubr.f32.gmra.mrb[0].mxu0 %v619
    %v841 = vpop.f32.mrb[0].mxu0
    %v842 = vadd.f32 0.0, %v841
    %v843 = vpop.f32.mrb[0].mxu0
    %v844 = vadd.f32 0.0, %v843
    %845 = vmatprep.mubr.f32.mxu0 0.0
    %846 = vmatmul.mubr.f32.gmra.mrb[0].mxu0 %v621
    %v847 = vpop.f32.mrb[0].mxu0
    %v848 = vadd.f32 0.0, %v847
    %v849 = vpop.f32.mrb[0].mxu0
    %v850 = vadd.f32 0.0, %v849
    %851 = vmatprep.mubr.f32.mxu0 0.0
    %852 = vmatmul.mubr.f32.gmra.mrb[0].mxu0 %v623
    %v853 = vpop.f32.mrb[0].mxu0
    %v854 = vadd.f32 0.0, %v853
    %v855 = vpop.f32.mrb[0].mxu0
    %v856 = vadd.f32 0.0, %v855
    %857 = vmatprep.mubr.f32.mxu0 0.0
    %858 = vmatmul.mubr.f32.gmra.mrb[0].mxu0 %v625
    %v859 = vpop.f32.mrb[0].mxu0
    %v860 = vadd.f32 0.0, %v859
    %v861 = vpop.f32.mrb[0].mxu0
    %v862 = vadd.f32 0.0, %v861
    %863 = vmatprep.mubr.f32.mxu0 0.0
    %864 = vmatmul.mubr.f32.gmra.mrb[0].mxu0 %v627
    %v865 = vpop.f32.mrb[0].mxu0
    %v866 = vadd.f32 0.0, %v865
    %v867 = vpop.f32.mrb[0].mxu0
    %v868 = vadd.f32 0.0, %v867
    %869 = vmatprep.mubr.f32.mxu0 0.0
    %870 = vmatmul.mubr.f32.gmra.mrb[0].mxu0 %v629
    %v871 = vpop.f32.mrb[0].mxu0
    %v872 = vadd.f32 0.0, %v871
    %v873 = vpop.f32.mrb[0].mxu0
    %v874 = vadd.f32 0.0, %v873
    %875 = vmatprep.mubr.f32.mxu0 0.0
    %876 = vmatmul.mubr.f32.gmra.mrb[0].mxu0 %v631
    %v877 = vpop.f32.mrb[0].mxu0
    %v878 = vadd.f32 0.0, %v877
    %v879 = vpop.f32.mrb[0].mxu0
    %v880 = vadd.f32 0.0, %v879
    %881 = vdwg.mxu0
    %v882 = vadd.f32 %v556, %v842
    %v883 = vadd.f32 %v558, %v844
    %v884 = vadd.f32 %v562, %v848
    %v885 = vadd.f32 %v564, %v850
    %v886 = vadd.f32 %v568, %v854
    %v887 = vadd.f32 %v570, %v856
    %v888 = vadd.f32 %v574, %v860
    %v889 = vadd.f32 %v576, %v862
    %v890 = vadd.f32 %v580, %v866
    %v891 = vadd.f32 %v582, %v868
    %v892 = vadd.f32 %v586, %v872
    %v893 = vadd.f32 %v588, %v874
    %v894 = vadd.f32 %v592, %v878
    %v895 = vadd.f32 %v594, %v880
    %v896 = vmax.f32 %v746, %v882
    %v897 = vmax.f32 %v747, %v883
    %v898 = vmax.f32 %v748, %v884
    %v899 = vmax.f32 %v749, %v885
    %v900 = vmax.f32 %v750, %v886
    %v901 = vmax.f32 %v751, %v887
    %v902 = vmax.f32 %v752, %v888
    %v903 = vmax.f32 %v753, %v889
    %v904 = vmax.f32 %v754, %v890
    %v905 = vmax.f32 %v755, %v891
    %v906 = vmax.f32 %v756, %v892
    %v907 = vmax.f32 %v757, %v893
    %v908 = vmax.f32 %v758, %v894
    %v909 = vmax.f32 %v759, %v895
    %v910 = vld [vmem:[%s2] sm:$0x3]
    %v912 = vlaneseq
    %v913 = vshrl.u32 %v912, 7
    %v914 = vsub.s32 0, %v913
    %v915 = vrot.slane %v910, %v914
    %v916 = vlaneseq
    %v917 = vshrl.u32 %v916, 7
    %v918 = vsub.s32 1, %v917
    %v919 = vrot.slane %v910, %v918
    %v922 = vadd.f32 %v896, %v915
    %v923 = vadd.f32 %v897, %v919
    %v924 = vadd.f32 %v898, %v915
    %v925 = vadd.f32 %v899, %v919
    %v926 = vadd.f32 %v900, %v915
    %v927 = vadd.f32 %v901, %v919
    %v928 = vadd.f32 %v902, %v915
    %v929 = vadd.f32 %v903, %v919
    %v930 = vadd.f32 %v904, %v915
    %v931 = vadd.f32 %v905, %v919
    %v932 = vadd.f32 %v906, %v915
    %v933 = vadd.f32 %v907, %v919
    %v934 = vadd.f32 %v908, %v915
    %v935 = vadd.f32 %v909, %v919
    %v936 = vmax.f32 %v922, 0.0
    %v937 = vmax.f32 %v923, 0.0
    %v938 = vmax.f32 %v924, 0.0
    %v939 = vmax.f32 %v925, 0.0
    %v940 = vmax.f32 %v926, 0.0
    %v941 = vmax.f32 %v927, 0.0
    %v942 = vmax.f32 %v928, 0.0
    %v943 = vmax.f32 %v929, 0.0
    %v944 = vmax.f32 %v930, 0.0
    %v945 = vmax.f32 %v931, 0.0
    %v946 = vmax.f32 %v932, 0.0
    %v947 = vmax.f32 %v933, 0.0
    %v948 = vmax.f32 %v934, 0.0
    %v949 = vmax.f32 %v935, 0.0
    %v950 = vld [vmem:[%s3] sm:$0xff]
    %v951 = vld [vmem:[%s3 + $0x8] sm:$0xff]
    %v952 = vld [vmem:[%s3 + $0x10] sm:$0xff]
    %v953 = vld [vmem:[%s3 + $0x18] sm:$0x3]
    %vm954 = vcmask 441344
    %v956 = vsel %vm954, %v950, 0
    %v959 = vsel %vm954, %v951, 0
    %v962 = vsel %vm954, %v952, 0
    %v965 = vsel %vm954, %v953, 0
    %v968 = vsel %vm605, %v948, 0
    %v971 = vsel %vm605, %v949, 0
    %973 = vmatprep.subr.mxu0 %v937
    %974 = vmatpush1.msra.mxu0 %v936
    %975 = vmatprep.subr.mxu0 %v939
    %976 = vmatpush1.msra.mxu0 %v938
    %977 = vmatprep.subr.mxu0 %v941
    %978 = vmatpush1.msra.mxu0 %v940
    %979 = vmatprep.subr.mxu0 %v943
    %980 = vmatpush1.msra.mxu0 %v942
    %981 = vmatprep.subr.mxu0 %v945
    %982 = vmatpush1.msra.mxu0 %v944
    %983 = vmatprep.subr.mxu0 %v947
    %984 = vmatpush1.msra.mxu0 %v946
    %985 = vmatprep.subr.mxu0 %v971
    %986 = vmatpush1.msra.mxu0 %v968
    %987 = vmatprep.subr.mxu0 0.0
    %988 = vmatpush1.msra.mxu0 0.0
    %989 = vmatprep.subr.mxu0 0.0
    %990 = vmatpush1.msra.mxu0 0.0
    %991 = vmatprep.subr.mxu0 0.0
    %992 = vmatpush1.msra.mxu0 0.0
    %993 = vmatprep.subr.mxu0 0.0
    %994 = vmatpush1.msra.mxu0 0.0
    %995 = vmatprep.subr.mxu0 0.0
    %996 = vmatpush1.msra.mxu0 0.0
    %997 = vmatprep.subr.mxu0 0.0
    %998 = vmatpush1.msra.mxu0 0.0
    %999 = vmatprep.subr.mxu0 0.0
    %1000 = vmatpush1.msra.mxu0 0.0
    %1001 = vmatprep.subr.mxu0 0.0
    %1002 = vmatpush1.msra.mxu0 0.0
    %1003 = vmatprep.subr.mxu0 0.0
    %1004 = vmatpush1.msra.mxu0 0.0
    %1005 = vmatprep.subr.mxu0 0.0
    %1006 = vmatpush1.msra.mxu0 0.0
    %1007 = vmatprep.subr.mxu0 0.0
    %1008 = vmatpush1.msra.mxu0 0.0
    %1009 = vmatprep.subr.mxu0 0.0
    %1010 = vmatpush1.msra.mxu0 0.0
    %1011 = vmatprep.subr.mxu0 0.0
    %1012 = vmatpush1.msra.mxu0 0.0
    %1013 = vmatprep.subr.mxu0 0.0
    %1014 = vmatpush1.msra.mxu0 0.0
    %1015 = vmatprep.subr.mxu0 0.0
    %1016 = vmatpush1.msra.mxu0 0.0
    %1017 = vmatprep.subr.mxu0 0.0
    %1018 = vmatpush1.msra.mxu0 0.0
    %1019 = vmatprep.subr.mxu0 0.0
    %1020 = vmatpush1.msra.mxu0 0.0
    %1021 = vmatprep.subr.mxu0 0.0
    %1022 = vmatpush1.msra.mxu0 0.0
    %1023 = vmatprep.subr.mxu0 0.0
    %1024 = vmatpush1.msra.mxu0 0.0
    %1025 = vmatprep.subr.mxu0 0.0
    %1026 = vmatpush1.msra.mxu0 0.0
    %1027 = vmatprep.subr.mxu0 0.0
    %1028 = vmatpush1.msra.mxu0 0.0
    %1029 = vmatprep.subr.mxu0 0.0
    %1030 = vmatpush1.msra.mxu0 0.0
    %1031 = vmatprep.subr.mxu0 0.0
    %1032 = vmatpush1.msra.mxu0 0.0
    %1033 = vmatprep.subr.mxu0 0.0
    %1034 = vmatpush1.msra.mxu0 0.0
    %1035 = vmatprep.subr.mxu0 0.0
    %1036 = vmatpush1.msra.mxu0 0.0
    %1037 = vmatprep.mubr.f32.mxu0 0.0
    %1038 = vmatmul.mubr.f32.gmra.mrb[0].mxu0 %v956
    %v1039 = vpop.f32.mrb[0].mxu0
    %v1040 = vadd.f32 0.0, %v1039
    %v1041 = vpop.f32.mrb[0].mxu0
    %v1042 = vadd.f32 0.0, %v1041
    %1043 = vmatprep.mubr.f32.mxu0 0.0
    %1044 = vmatmul.mubr.f32.gmra.mrb[0].mxu0 %v959
    %v1045 = vpop.f32.mrb[0].mxu0
    %v1046 = vadd.f32 0.0, %v1045
    %v1047 = vpop.f32.mrb[0].mxu0
    %v1048 = vadd.f32 0.0, %v1047
    %1049 = vmatprep.mubr.f32.mxu0 0.0
    %1050 = vmatmul.mubr.f32.gmra.mrb[0].mxu0 %v962
    %v1051 = vpop.f32.mrb[0].mxu0
    %v1052 = vadd.f32 0.0, %v1051
    %v1053 = vpop.f32.mrb[0].mxu0
    %v1054 = vadd.f32 0.0, %v1053
    %1055 = vmatprep.mubr.f32.mxu0 0.0
    %1056 = vmatmul.mubr.f32.gmra.mrb[0].mxu0 %v965
    %v1057 = vpop.f32.mrb[0].mxu0
    %v1058 = vadd.f32 0.0, %v1057
    %v1059 = vpop.f32.mrb[0].mxu0
    %v1060 = vadd.f32 0.0, %v1059
    %1061 = vdwg.mxu0
    %v1062 = vld [vmem:[%s4] sm:$0xff]
    %v1063 = vld [vmem:[%s4 + $0x8] sm:$0xff]
    %v1064 = vld [vmem:[%s4 + $0x10] sm:$0xff]
    %v1065 = vld [vmem:[%s4 + $0x18] sm:$0x3]
    %v1067 = vsel %vm954, %v1062, 0
    %v1070 = vsel %vm954, %v1063, 0
    %v1073 = vsel %vm954, %v1064, 0
    %v1076 = vsel %vm954, %v1065, 0
    %1078 = vmatprep.subr.mxu0 %v937
    %1079 = vmatpush1.msra.mxu0 %v936
    %1080 = vmatprep.subr.mxu0 %v939
    %1081 = vmatpush1.msra.mxu0 %v938
    %1082 = vmatprep.subr.mxu0 %v941
    %1083 = vmatpush1.msra.mxu0 %v940
    %1084 = vmatprep.subr.mxu0 %v943
    %1085 = vmatpush1.msra.mxu0 %v942
    %1086 = vmatprep.subr.mxu0 %v945
    %1087 = vmatpush1.msra.mxu0 %v944
    %1088 = vmatprep.subr.mxu0 %v947
    %1089 = vmatpush1.msra.mxu0 %v946
    %1090 = vmatprep.subr.mxu0 %v971
    %1091 = vmatpush1.msra.mxu0 %v968
    %1092 = vmatprep.subr.mxu0 0.0
    %1093 = vmatpush1.msra.mxu0 0.0
    %1094 = vmatprep.subr.mxu0 0.0
    %1095 = vmatpush1.msra.mxu0 0.0
    %1096 = vmatprep.subr.mxu0 0.0
    %1097 = vmatpush1.msra.mxu0 0.0
    %1098 = vmatprep.subr.mxu0 0.0
    %1099 = vmatpush1.msra.mxu0 0.0
    %1100 = vmatprep.subr.mxu0 0.0
    %1101 = vmatpush1.msra.mxu0 0.0
    %1102 = vmatprep.subr.mxu0 0.0
    %1103 = vmatpush1.msra.mxu0 0.0
    %1104 = vmatprep.subr.mxu0 0.0
    %1105 = vmatpush1.msra.mxu0 0.0
    %1106 = vmatprep.subr.mxu0 0.0
    %1107 = vmatpush1.msra.mxu0 0.0
    %1108 = vmatprep.subr.mxu0 0.0
    %1109 = vmatpush1.msra.mxu0 0.0
    %1110 = vmatprep.subr.mxu0 0.0
    %1111 = vmatpush1.msra.mxu0 0.0
    %1112 = vmatprep.subr.mxu0 0.0
    %1113 = vmatpush1.msra.mxu0 0.0
    %1114 = vmatprep.subr.mxu0 0.0
    %1115 = vmatpush1.msra.mxu0 0.0
    %1116 = vmatprep.subr.mxu0 0.0
    %1117 = vmatpush1.msra.mxu0 0.0
    %1118 = vmatprep.subr.mxu0 0.0
    %1119 = vmatpush1.msra.mxu0 0.0
    %1120 = vmatprep.subr.mxu0 0.0
    %1121 = vmatpush1.msra.mxu0 0.0
    %1122 = vmatprep.subr.mxu0 0.0
    %1123 = vmatpush1.msra.mxu0 0.0
    %1124 = vmatprep.subr.mxu0 0.0
    %1125 = vmatpush1.msra.mxu0 0.0
    %1126 = vmatprep.subr.mxu0 0.0
    %1127 = vmatpush1.msra.mxu0 0.0
    %1128 = vmatprep.subr.mxu0 0.0
    %1129 = vmatpush1.msra.mxu0 0.0
    %1130 = vmatprep.subr.mxu0 0.0
    %1131 = vmatpush1.msra.mxu0 0.0
    %1132 = vmatprep.subr.mxu0 0.0
    %1133 = vmatpush1.msra.mxu0 0.0
    %1134 = vmatprep.subr.mxu0 0.0
    %1135 = vmatpush1.msra.mxu0 0.0
    %1136 = vmatprep.subr.mxu0 0.0
    %1137 = vmatpush1.msra.mxu0 0.0
    %1138 = vmatprep.subr.mxu0 0.0
    %1139 = vmatpush1.msra.mxu0 0.0
    %1140 = vmatprep.subr.mxu0 0.0
    %1141 = vmatpush1.msra.mxu0 0.0
    %1142 = vmatprep.mubr.f32.mxu0 0.0
    %1143 = vmatmul.mubr.f32.gmra.mrb[0].mxu0 %v1067
    %v1144 = vpop.f32.mrb[0].mxu0
    %v1145 = vadd.f32 0.0, %v1144
    %v1146 = vpop.f32.mrb[0].mxu0
    %v1147 = vadd.f32 0.0, %v1146
    %1148 = vmatprep.mubr.f32.mxu0 0.0
    %1149 = vmatmul.mubr.f32.gmra.mrb[0].mxu0 %v1070
    %v1150 = vpop.f32.mrb[0].mxu0
    %v1151 = vadd.f32 0.0, %v1150
    %v1152 = vpop.f32.mrb[0].mxu0
    %v1153 = vadd.f32 0.0, %v1152
    %1154 = vmatprep.mubr.f32.mxu0 0.0
    %1155 = vmatmul.mubr.f32.gmra.mrb[0].mxu0 %v1073
    %v1156 = vpop.f32.mrb[0].mxu0
    %v1157 = vadd.f32 0.0, %v1156
    %v1158 = vpop.f32.mrb[0].mxu0
    %v1159 = vadd.f32 0.0, %v1158
    %1160 = vmatprep.mubr.f32.mxu0 0.0
    %1161 = vmatmul.mubr.f32.gmra.mrb[0].mxu0 %v1076
    %v1162 = vpop.f32.mrb[0].mxu0
    %v1163 = vadd.f32 0.0, %v1162
    %v1164 = vpop.f32.mrb[0].mxu0
    %v1165 = vadd.f32 0.0, %v1164
    %1166 = vdwg.mxu0
    %v1167 = vmax.f32 %v1040, %v1145
    %v1168 = vmax.f32 %v1042, %v1147
    %v1169 = vmax.f32 %v1046, %v1151
    %v1170 = vmax.f32 %v1048, %v1153
    %v1171 = vmax.f32 %v1052, %v1157
    %v1172 = vmax.f32 %v1054, %v1159
    %v1173 = vmax.f32 %v1058, %v1163
    %v1174 = vmax.f32 %v1060, %v1165
    %v1175 = vld [vmem:[%s5] sm:$0xff]
    %v1176 = vld [vmem:[%s5 + $0x8] sm:$0xff]
    %v1177 = vld [vmem:[%s5 + $0x10] sm:$0xff]
    %v1178 = vld [vmem:[%s5 + $0x18] sm:$0xff]
    %v1179 = vld [vmem:[%s5 + $0x20] sm:$0xff]
    %v1180 = vld [vmem:[%s5 + $0x28] sm:$0xff]
    %v1181 = vld [vmem:[%s5 + $0x30] sm:$0xff]
    %v1182 = vld [vmem:[%s5 + $0x38] sm:$0xff]
    %v1183 = vld [vmem:[%s5 + $0x40] sm:$0xff]
    %v1184 = vld [vmem:[%s5 + $0x48] sm:$0xff]
    %v1185 = vld [vmem:[%s5 + $0x50] sm:$0xff]
    %v1186 = vld [vmem:[%s5 + $0x58] sm:$0xff]
    %v1187 = vld [vmem:[%s5 + $0x60] sm:$0xff]
    %v1188 = vld [vmem:[%s5 + $0x68] sm:$0xff]
    %v1189 = vld [vmem:[%s5 + $0x70] sm:$0xff]
    %v1190 = vld [vmem:[%s5 + $0x78] sm:$0xff]
    %v1191 = vld [vmem:[%s5 + $0x80] sm:$0xff]
    %v1192 = vld [vmem:[%s5 + $0x88] sm:$0xff]
    %v1193 = vld [vmem:[%s5 + $0x90] sm:$0xff]
    %v1194 = vld [vmem:[%s5 + $0x98] sm:$0xff]
    %v1195 = vld [vmem:[%s5 + $0xa0] sm:$0xff]
    %v1196 = vld [vmem:[%s5 + $0xa8] sm:$0xff]
    %v1197 = vld [vmem:[%s5 + $0xb0] sm:$0xff]
    %v1198 = vld [vmem:[%s5 + $0xb8] sm:$0xff]
    %v1199 = vld [vmem:[%s5 + $0xc0] sm:$0xff]
    %v1200 = vld [vmem:[%s5 + $0xc8] sm:$0xff]
    %v1201 = vld [vmem:[%s5 + $0xd0] sm:$0xff]
    %v1202 = vld [vmem:[%s5 + $0xd8] sm:$0xff]
    %v1203 = vld [vmem:[%s5 + $0xe0] sm:$0xff]
    %v1204 = vld [vmem:[%s5 + $0xe8] sm:$0xff]
    %v1205 = vld [vmem:[%s5 + $0xf0] sm:$0xff]
    %v1206 = vld [vmem:[%s5 + $0xf8] sm:$0xff]
    %v1207 = vld [vmem:[%s5 + $0x100] sm:$0xff]
    %v1208 = vld [vmem:[%s5 + $0x108] sm:$0xff]
    %v1209 = vld [vmem:[%s5 + $0x110] sm:$0xff]
    %v1210 = vld [vmem:[%s5 + $0x118] sm:$0xff]
    %v1211 = vld [vmem:[%s5 + $0x120] sm:$0xff]
    %v1212 = vld [vmem:[%s5 + $0x128] sm:$0xff]
    %v1213 = vld [vmem:[%s5 + $0x130] sm:$0xff]
    %v1214 = vld [vmem:[%s5 + $0x138] sm:$0xff]
    %v1215 = vld [vmem:[%s5 + $0x140] sm:$0xff]
    %v1216 = vld [vmem:[%s5 + $0x148] sm:$0xff]
    %v1217 = vld [vmem:[%s5 + $0x150] sm:$0xff]
    %v1218 = vld [vmem:[%s5 + $0x158] sm:$0xff]
    %v1219 = vld [vmem:[%s5 + $0x160] sm:$0xff]
    %v1220 = vld [vmem:[%s5 + $0x168] sm:$0xff]
    %v1221 = vld [vmem:[%s5 + $0x170] sm:$0xff]
    %v1222 = vld [vmem:[%s5 + $0x178] sm:$0xff]
    %v1223 = vld [vmem:[%s5 + $0x180] sm:$0xff]
    %v1224 = vld [vmem:[%s5 + $0x188] sm:$0xff]
    %v1225 = vld [vmem:[%s5 + $0x190] sm:$0xff]
    %v1226 = vld [vmem:[%s5 + $0x198] sm:$0xff]
    %s1227 = scalar_lea.vmem %s5, 416
    %v1228 = vld [vmem:[%s1227] sm:$0xff]
    %v1229 = vld [vmem:[%s1227 + $0x8] sm:$0xff]
    %v1230 = vld [vmem:[%s1227 + $0x10] sm:$0xff]
    %v1231 = vld [vmem:[%s1227 + $0x18] sm:$0xff]
    %v1232 = vld [vmem:[%s1227 + $0x20] sm:$0xff]
    %v1233 = vld [vmem:[%s1227 + $0x28] sm:$0xff]
    %v1234 = vld [vmem:[%s1227 + $0x30] sm:$0xff]
    %v1235 = vld [vmem:[%s1227 + $0x38] sm:$0xff]
    %v1236 = vld [vmem:[%s1227 + $0x40] sm:$0xff]
    %v1237 = vld [vmem:[%s1227 + $0x48] sm:$0xff]
    %v1238 = vld [vmem:[%s1227 + $0x50] sm:$0xff]
    %v1239 = vld [vmem:[%s1227 + $0x58] sm:$0xff]
    %v1240 = vld [vmem:[%s1227 + $0x60] sm:$0xff]
    %v1241 = vld [vmem:[%s1227 + $0x68] sm:$0xff]
    %v1242 = vld [vmem:[%s1227 + $0x70] sm:$0xff]
    %v1243 = vld [vmem:[%s1227 + $0x78] sm:$0xff]
    %v1244 = vld [vmem:[%s1227 + $0x80] sm:$0xff]
    %v1245 = vld [vmem:[%s1227 + $0x88] sm:$0xff]
    %v1246 = vld [vmem:[%s1227 + $0x90] sm:$0xff]
    %v1247 = vld [vmem:[%s1227 + $0x98] sm:$0xff]
    %v1248 = vld [vmem:[%s1227 + $0xa0] sm:$0xff]
    %v1249 = vld [vmem:[%s1227 + $0xa8] sm:$0xff]
    %v1250 = vld [vmem:[%s1227 + $0xb0] sm:$0xff]
    %v1251 = vld [vmem:[%s1227 + $0xb8] sm:$0xff]
    %v1252 = vld [vmem:[%s1227 + $0xc0] sm:$0xff]
    %v1253 = vld [vmem:[%s1227 + $0xc8] sm:$0xff]
    %v1254 = vld [vmem:[%s1227 + $0xd0] sm:$0xff]
    %v1255 = vld [vmem:[%s1227 + $0xd8] sm:$0xff]
    %v1256 = vld [vmem:[%s1227 + $0xe0] sm:$0xff]
    %v1257 = vld [vmem:[%s1227 + $0xe8] sm:$0xff]
    %v1258 = vld [vmem:[%s1227 + $0xf0] sm:$0xff]
    %v1259 = vld [vmem:[%s1227 + $0xf8] sm:$0xff]
    %v1260 = vld [vmem:[%s1227 + $0x100] sm:$0xff]
    %v1261 = vld [vmem:[%s1227 + $0x108] sm:$0xff]
    %v1262 = vld [vmem:[%s1227 + $0x110] sm:$0xff]
    %v1263 = vld [vmem:[%s1227 + $0x118] sm:$0xff]
    %v1264 = vld [vmem:[%s1227 + $0x120] sm:$0xff]
    %v1265 = vld [vmem:[%s1227 + $0x128] sm:$0xff]
    %v1266 = vld [vmem:[%s1227 + $0x130] sm:$0xff]
    %v1267 = vld [vmem:[%s1227 + $0x138] sm:$0xff]
    %v1268 = vld [vmem:[%s1227 + $0x140] sm:$0xff]
    %v1269 = vld [vmem:[%s1227 + $0x148] sm:$0xff]
    %v1270 = vld [vmem:[%s1227 + $0x150] sm:$0xff]
    %v1271 = vld [vmem:[%s1227 + $0x158] sm:$0xff]
    %v1272 = vld [vmem:[%s1227 + $0x160] sm:$0xff]
    %v1273 = vld [vmem:[%s1227 + $0x168] sm:$0xff]
    %v1274 = vld [vmem:[%s1227 + $0x170] sm:$0xff]
    %v1275 = vld [vmem:[%s1227 + $0x178] sm:$0xff]
    %v1276 = vld [vmem:[%s1227 + $0x180] sm:$0xff]
    %v1277 = vld [vmem:[%s1227 + $0x188] sm:$0xff]
    %v1278 = vld [vmem:[%s1227 + $0x190] sm:$0xff]
    %v1279 = vld [vmem:[%s1227 + $0x198] sm:$0xff]
    %s1280 = scalar_lea.vmem %s5, 832
    %v1281 = vld [vmem:[%s1280] sm:$0xff]
    %v1282 = vld [vmem:[%s1280 + $0x8] sm:$0xff]
    %v1283 = vld [vmem:[%s1280 + $0x10] sm:$0xff]
    %v1284 = vld [vmem:[%s1280 + $0x18] sm:$0xff]
    %v1285 = vld [vmem:[%s1280 + $0x20] sm:$0xff]
    %v1286 = vld [vmem:[%s1280 + $0x28] sm:$0xff]
    %v1287 = vld [vmem:[%s1280 + $0x30] sm:$0xff]
    %v1288 = vld [vmem:[%s1280 + $0x38] sm:$0xff]
    %v1289 = vld [vmem:[%s1280 + $0x40] sm:$0xff]
    %v1290 = vld [vmem:[%s1280 + $0x48] sm:$0xff]
    %v1291 = vld [vmem:[%s1280 + $0x50] sm:$0xff]
    %v1292 = vld [vmem:[%s1280 + $0x58] sm:$0xff]
    %v1293 = vld [vmem:[%s1280 + $0x60] sm:$0xff]
    %v1294 = vld [vmem:[%s1280 + $0x68] sm:$0xff]
    %v1295 = vld [vmem:[%s1280 + $0x70] sm:$0xff]
    %v1296 = vld [vmem:[%s1280 + $0x78] sm:$0xff]
    %v1297 = vld [vmem:[%s1280 + $0x80] sm:$0xff]
    %v1298 = vld [vmem:[%s1280 + $0x88] sm:$0xff]
    %v1299 = vld [vmem:[%s1280 + $0x90] sm:$0xff]
    %v1300 = vld [vmem:[%s1280 + $0x98] sm:$0xff]
    %v1301 = vld [vmem:[%s1280 + $0xa0] sm:$0xff]
    %v1302 = vld [vmem:[%s1280 + $0xa8] sm:$0xff]
    %v1303 = vld [vmem:[%s1280 + $0xb0] sm:$0xff]
    %v1304 = vld [vmem:[%s1280 + $0xb8] sm:$0xff]
    %v1305 = vld [vmem:[%s1280 + $0xc0] sm:$0xff]
    %v1306 = vld [vmem:[%s1280 + $0xc8] sm:$0xff]
    %v1307 = vld [vmem:[%s1280 + $0xd0] sm:$0xff]
    %v1308 = vld [vmem:[%s1280 + $0xd8] sm:$0xff]
    %v1309 = vld [vmem:[%s1280 + $0xe0] sm:$0xff]
    %v1310 = vld [vmem:[%s1280 + $0xe8] sm:$0xff]
    %v1311 = vld [vmem:[%s1280 + $0xf0] sm:$0xff]
    %v1312 = vld [vmem:[%s1280 + $0xf8] sm:$0xff]
    %v1313 = vld [vmem:[%s1280 + $0x100] sm:$0xff]
    %v1314 = vld [vmem:[%s1280 + $0x108] sm:$0xff]
    %v1315 = vld [vmem:[%s1280 + $0x110] sm:$0xff]
    %v1316 = vld [vmem:[%s1280 + $0x118] sm:$0xff]
    %v1317 = vld [vmem:[%s1280 + $0x120] sm:$0xff]
    %v1318 = vld [vmem:[%s1280 + $0x128] sm:$0xff]
    %v1319 = vld [vmem:[%s1280 + $0x130] sm:$0xff]
    %v1320 = vld [vmem:[%s1280 + $0x138] sm:$0xff]
    %v1321 = vld [vmem:[%s1280 + $0x140] sm:$0xff]
    %v1322 = vld [vmem:[%s1280 + $0x148] sm:$0xff]
    %v1323 = vld [vmem:[%s1280 + $0x150] sm:$0xff]
    %v1324 = vld [vmem:[%s1280 + $0x158] sm:$0xff]
    %v1325 = vld [vmem:[%s1280 + $0x160] sm:$0xff]
    %v1326 = vld [vmem:[%s1280 + $0x168] sm:$0xff]
    %v1327 = vld [vmem:[%s1280 + $0x170] sm:$0xff]
    %v1328 = vld [vmem:[%s1280 + $0x178] sm:$0xff]
    %v1329 = vld [vmem:[%s1280 + $0x180] sm:$0xff]
    %v1330 = vld [vmem:[%s1280 + $0x188] sm:$0xff]
    %v1331 = vld [vmem:[%s1280 + $0x190] sm:$0xff]
    %v1332 = vld [vmem:[%s1280 + $0x198] sm:$0xff]
    %v1341 = vrot.slane %v1167, 1
    %v1342 = vrot.slane %v1169, 1
    %v1343 = vsel %vm91, %v1341, %v1342
    %v1344 = vrot.slane %v1168, 1
    %v1345 = vrot.slane %v1170, 1
    %v1346 = vsel %vm91, %v1344, %v1345
    %v1347 = vrot.slane %v1171, 1
    %v1348 = vsel %vm91, %v1342, %v1347
    %v1349 = vrot.slane %v1172, 1
    %v1350 = vsel %vm91, %v1345, %v1349
    %v1351 = vrot.slane %v1173, 1
    %v1352 = vsel %vm91, %v1347, %v1351
    %v1353 = vrot.slane %v1174, 1
    %v1354 = vsel %vm91, %v1349, %v1353
    %vm1358 = vcmask 654336
    %v1359 = vsel %vm1358, %v1346, 0
    %v1361 = vsel %vm1358, %v1350, 0
    %v1363 = vsel %vm1358, %v1354, 0
    %1365 = vmatprep.subr.mxu0 %v1282
    %1366 = vmatpush1.msra.mxu0 %v1281
    %1367 = vmatprep.subr.mxu0 %v1284
    %1368 = vmatpush1.msra.mxu0 %v1283
    %1369 = vmatprep.subr.mxu0 %v1286
    %1370 = vmatpush1.msra.mxu0 %v1285
    %1371 = vmatprep.subr.mxu0 %v1288
    %1372 = vmatpush1.msra.mxu0 %v1287
    %1373 = vmatprep.subr.mxu0 %v1290
    %1374 = vmatpush1.msra.mxu0 %v1289
    %1375 = vmatprep.subr.mxu0 %v1292
    %1376 = vmatpush1.msra.mxu0 %v1291
    %1377 = vmatprep.subr.mxu0 %v1294
    %1378 = vmatpush1.msra.mxu0 %v1293
    %1379 = vmatprep.subr.mxu0 %v1296
    %1380 = vmatpush1.msra.mxu0 %v1295
    %1381 = vmatprep.subr.mxu0 %v1298
    %1382 = vmatpush1.msra.mxu0 %v1297
    %1383 = vmatprep.subr.mxu0 %v1300
    %1384 = vmatpush1.msra.mxu0 %v1299
    %1385 = vmatprep.subr.mxu0 %v1302
    %1386 = vmatpush1.msra.mxu0 %v1301
    %1387 = vmatprep.subr.mxu0 %v1304
    %1388 = vmatpush1.msra.mxu0 %v1303
    %1389 = vmatprep.subr.mxu0 %v1306
    %1390 = vmatpush1.msra.mxu0 %v1305
    %1391 = vmatprep.subr.mxu0 %v1308
    %1392 = vmatpush1.msra.mxu0 %v1307
    %1393 = vmatprep.subr.mxu0 %v1310
    %1394 = vmatpush1.msra.mxu0 %v1309
    %1395 = vmatprep.subr.mxu0 %v1312
    %1396 = vmatpush1.msra.mxu0 %v1311
    %1397 = vmatprep.subr.mxu0 %v1314
    %1398 = vmatpush1.msra.mxu0 %v1313
    %1399 = vmatprep.subr.mxu0 %v1316
    %1400 = vmatpush1.msra.mxu0 %v1315
    %1401 = vmatprep.subr.mxu0 %v1318
    %1402 = vmatpush1.msra.mxu0 %v1317
    %1403 = vmatprep.subr.mxu0 %v1320
    %1404 = vmatpush1.msra.mxu0 %v1319
    %1405 = vmatprep.subr.mxu0 %v1322
    %1406 = vmatpush1.msra.mxu0 %v1321
    %1407 = vmatprep.subr.mxu0 %v1324
    %1408 = vmatpush1.msra.mxu0 %v1323
    %1409 = vmatprep.subr.mxu0 %v1326
    %1410 = vmatpush1.msra.mxu0 %v1325
    %1411 = vmatprep.subr.mxu0 %v1328
    %1412 = vmatpush1.msra.mxu0 %v1327
    %1413 = vmatprep.subr.mxu0 %v1330
    %1414 = vmatpush1.msra.mxu0 %v1329
    %1415 = vmatprep.subr.mxu0 %v1332
    %1416 = vmatpush1.msra.mxu0 %v1331
    %1417 = vmatprep.subr.mxu0 0.0
    %1418 = vmatpush1.msra.mxu0 0.0
    %1419 = vmatprep.subr.mxu0 0.0
    %1420 = vmatpush1.msra.mxu0 0.0
    %1421 = vmatprep.subr.mxu0 0.0
    %1422 = vmatpush1.msra.mxu0 0.0
    %1423 = vmatprep.subr.mxu0 0.0
    %1424 = vmatpush1.msra.mxu0 0.0
    %1425 = vmatprep.subr.mxu0 0.0
    %1426 = vmatpush1.msra.mxu0 0.0
    %1427 = vmatprep.subr.mxu0 0.0
    %1428 = vmatpush1.msra.mxu0 0.0
    %1429 = vmatprep.mubr.f32.mxu0 %v1359
    %1430 = vmatmul.mubr.f32.gmra.mrb[0].mxu0 %v1343
    %v1431 = vpop.f32.mrb[0].mxu0
    %v1432 = vadd.f32 0.0, %v1431
    %v1433 = vpop.f32.mrb[0].mxu0
    %v1434 = vadd.f32 0.0, %v1433
    %1435 = vmatprep.mubr.f32.mxu0 %v1361
    %1436 = vmatmul.mubr.f32.gmra.mrb[0].mxu0 %v1348
    %v1437 = vpop.f32.mrb[0].mxu0
    %v1438 = vadd.f32 0.0, %v1437
    %v1439 = vpop.f32.mrb[0].mxu0
    %v1440 = vadd.f32 0.0, %v1439
    %1441 = vmatprep.mubr.f32.mxu0 %v1363
    %1442 = vmatmul.mubr.f32.gmra.mrb[0].mxu0 %v1352
    %v1443 = vpop.f32.mrb[0].mxu0
    %v1444 = vadd.f32 0.0, %v1443
    %v1445 = vpop.f32.mrb[0].mxu0
    %v1446 = vadd.f32 0.0, %v1445
    %1447 = vdwg.mxu0
    %v1448 = vsel %vm1358, %v1168, 0
    %v1450 = vsel %vm1358, %v1170, 0
    %v1452 = vsel %vm1358, %v1172, 0
    %1454 = vmatprep.subr.mxu0 %v1176
    %1455 = vmatpush1.msra.mxu0 %v1175
    %1456 = vmatprep.subr.mxu0 %v1178
    %1457 = vmatpush1.msra.mxu0 %v1177
    %1458 = vmatprep.subr.mxu0 %v1180
    %1459 = vmatpush1.msra.mxu0 %v1179
    %1460 = vmatprep.subr.mxu0 %v1182
    %1461 = vmatpush1.msra.mxu0 %v1181
    %1462 = vmatprep.subr.mxu0 %v1184
    %1463 = vmatpush1.msra.mxu0 %v1183
    %1464 = vmatprep.subr.mxu0 %v1186
    %1465 = vmatpush1.msra.mxu0 %v1185
    %1466 = vmatprep.subr.mxu0 %v1188
    %1467 = vmatpush1.msra.mxu0 %v1187
    %1468 = vmatprep.subr.mxu0 %v1190
    %1469 = vmatpush1.msra.mxu0 %v1189
    %1470 = vmatprep.subr.mxu0 %v1192
    %1471 = vmatpush1.msra.mxu0 %v1191
    %1472 = vmatprep.subr.mxu0 %v1194
    %1473 = vmatpush1.msra.mxu0 %v1193
    %1474 = vmatprep.subr.mxu0 %v1196
    %1475 = vmatpush1.msra.mxu0 %v1195
    %1476 = vmatprep.subr.mxu0 %v1198
    %1477 = vmatpush1.msra.mxu0 %v1197
    %1478 = vmatprep.subr.mxu0 %v1200
    %1479 = vmatpush1.msra.mxu0 %v1199
    %1480 = vmatprep.subr.mxu0 %v1202
    %1481 = vmatpush1.msra.mxu0 %v1201
    %1482 = vmatprep.subr.mxu0 %v1204
    %1483 = vmatpush1.msra.mxu0 %v1203
    %1484 = vmatprep.subr.mxu0 %v1206
    %1485 = vmatpush1.msra.mxu0 %v1205
    %1486 = vmatprep.subr.mxu0 %v1208
    %1487 = vmatpush1.msra.mxu0 %v1207
    %1488 = vmatprep.subr.mxu0 %v1210
    %1489 = vmatpush1.msra.mxu0 %v1209
    %1490 = vmatprep.subr.mxu0 %v1212
    %1491 = vmatpush1.msra.mxu0 %v1211
    %1492 = vmatprep.subr.mxu0 %v1214
    %1493 = vmatpush1.msra.mxu0 %v1213
    %1494 = vmatprep.subr.mxu0 %v1216
    %1495 = vmatpush1.msra.mxu0 %v1215
    %1496 = vmatprep.subr.mxu0 %v1218
    %1497 = vmatpush1.msra.mxu0 %v1217
    %1498 = vmatprep.subr.mxu0 %v1220
    %1499 = vmatpush1.msra.mxu0 %v1219
    %1500 = vmatprep.subr.mxu0 %v1222
    %1501 = vmatpush1.msra.mxu0 %v1221
    %1502 = vmatprep.subr.mxu0 %v1224
    %1503 = vmatpush1.msra.mxu0 %v1223
    %1504 = vmatprep.subr.mxu0 %v1226
    %1505 = vmatpush1.msra.mxu0 %v1225
    %1506 = vmatprep.subr.mxu0 0.0
    %1507 = vmatpush1.msra.mxu0 0.0
    %1508 = vmatprep.subr.mxu0 0.0
    %1509 = vmatpush1.msra.mxu0 0.0
    %1510 = vmatprep.subr.mxu0 0.0
    %1511 = vmatpush1.msra.mxu0 0.0
    %1512 = vmatprep.subr.mxu0 0.0
    %1513 = vmatpush1.msra.mxu0 0.0
    %1514 = vmatprep.subr.mxu0 0.0
    %1515 = vmatpush1.msra.mxu0 0.0
    %1516 = vmatprep.subr.mxu0 0.0
    %1517 = vmatpush1.msra.mxu0 0.0
    %1518 = vmatprep.mubr.f32.mxu0 %v1448
    %1519 = vmatmul.mubr.f32.gmra.mrb[0].mxu0 %v1167
    %v1520 = vpop.f32.mrb[0].mxu0
    %v1521 = vadd.f32 %v1432, %v1520
    %v1522 = vpop.f32.mrb[0].mxu0
    %v1523 = vadd.f32 %v1434, %v1522
    %1524 = vmatprep.mubr.f32.mxu0 %v1450
    %1525 = vmatmul.mubr.f32.gmra.mrb[0].mxu0 %v1169
    %v1526 = vpop.f32.mrb[0].mxu0
    %v1527 = vadd.f32 %v1438, %v1526
    %v1528 = vpop.f32.mrb[0].mxu0
    %v1529 = vadd.f32 %v1440, %v1528
    %1530 = vmatprep.mubr.f32.mxu0 %v1452
    %1531 = vmatmul.mubr.f32.gmra.mrb[0].mxu0 %v1171
    %v1532 = vpop.f32.mrb[0].mxu0
    %v1533 = vadd.f32 %v1444, %v1532
    %v1534 = vpop.f32.mrb[0].mxu0
    %v1535 = vadd.f32 %v1446, %v1534
    %1536 = vdwg.mxu0
    %s1537 = scalar_lea.vmem %s5, 1248
    %v1538 = vld [vmem:[%s1537] sm:$0xff]
    %v1539 = vld [vmem:[%s1537 + $0x8] sm:$0xff]
    %v1540 = vld [vmem:[%s1537 + $0x10] sm:$0xff]
    %v1541 = vld [vmem:[%s1537 + $0x18] sm:$0xff]
    %v1542 = vld [vmem:[%s1537 + $0x20] sm:$0xff]
    %v1543 = vld [vmem:[%s1537 + $0x28] sm:$0xff]
    %v1544 = vld [vmem:[%s1537 + $0x30] sm:$0xff]
    %v1545 = vld [vmem:[%s1537 + $0x38] sm:$0xff]
    %v1546 = vld [vmem:[%s1537 + $0x40] sm:$0xff]
    %v1547 = vld [vmem:[%s1537 + $0x48] sm:$0xff]
    %v1548 = vld [vmem:[%s1537 + $0x50] sm:$0xff]
    %v1549 = vld [vmem:[%s1537 + $0x58] sm:$0xff]
    %v1550 = vld [vmem:[%s1537 + $0x60] sm:$0xff]
    %v1551 = vld [vmem:[%s1537 + $0x68] sm:$0xff]
    %v1552 = vld [vmem:[%s1537 + $0x70] sm:$0xff]
    %v1553 = vld [vmem:[%s1537 + $0x78] sm:$0xff]
    %v1554 = vld [vmem:[%s1537 + $0x80] sm:$0xff]
    %v1555 = vld [vmem:[%s1537 + $0x88] sm:$0xff]
    %v1556 = vld [vmem:[%s1537 + $0x90] sm:$0xff]
    %v1557 = vld [vmem:[%s1537 + $0x98] sm:$0xff]
    %v1558 = vld [vmem:[%s1537 + $0xa0] sm:$0xff]
    %v1559 = vld [vmem:[%s1537 + $0xa8] sm:$0xff]
    %v1560 = vld [vmem:[%s1537 + $0xb0] sm:$0xff]
    %v1561 = vld [vmem:[%s1537 + $0xb8] sm:$0xff]
    %v1562 = vld [vmem:[%s1537 + $0xc0] sm:$0xff]
    %v1563 = vld [vmem:[%s1537 + $0xc8] sm:$0xff]
    %v1564 = vld [vmem:[%s1537 + $0xd0] sm:$0xff]
    %v1565 = vld [vmem:[%s1537 + $0xd8] sm:$0xff]
    %v1566 = vld [vmem:[%s1537 + $0xe0] sm:$0xff]
    %v1567 = vld [vmem:[%s1537 + $0xe8] sm:$0xff]
    %v1568 = vld [vmem:[%s1537 + $0xf0] sm:$0xff]
    %v1569 = vld [vmem:[%s1537 + $0xf8] sm:$0xff]
    %v1570 = vld [vmem:[%s1537 + $0x100] sm:$0xff]
    %v1571 = vld [vmem:[%s1537 + $0x108] sm:$0xff]
    %v1572 = vld [vmem:[%s1537 + $0x110] sm:$0xff]
    %v1573 = vld [vmem:[%s1537 + $0x118] sm:$0xff]
    %v1574 = vld [vmem:[%s1537 + $0x120] sm:$0xff]
    %v1575 = vld [vmem:[%s1537 + $0x128] sm:$0xff]
    %v1576 = vld [vmem:[%s1537 + $0x130] sm:$0xff]
    %v1577 = vld [vmem:[%s1537 + $0x138] sm:$0xff]
    %v1578 = vld [vmem:[%s1537 + $0x140] sm:$0xff]
    %v1579 = vld [vmem:[%s1537 + $0x148] sm:$0xff]
    %v1580 = vld [vmem:[%s1537 + $0x150] sm:$0xff]
    %v1581 = vld [vmem:[%s1537 + $0x158] sm:$0xff]
    %v1582 = vld [vmem:[%s1537 + $0x160] sm:$0xff]
    %v1583 = vld [vmem:[%s1537 + $0x168] sm:$0xff]
    %v1584 = vld [vmem:[%s1537 + $0x170] sm:$0xff]
    %v1585 = vld [vmem:[%s1537 + $0x178] sm:$0xff]
    %v1586 = vld [vmem:[%s1537 + $0x180] sm:$0xff]
    %v1587 = vld [vmem:[%s1537 + $0x188] sm:$0xff]
    %v1588 = vld [vmem:[%s1537 + $0x190] sm:$0xff]
    %v1589 = vld [vmem:[%s1537 + $0x198] sm:$0xff]
    %1590 = vmatprep.subr.mxu0 %v1539
    %1591 = vmatpush1.msra.mxu0 %v1538
    %1592 = vmatprep.subr.mxu0 %v1541
    %1593 = vmatpush1.msra.mxu0 %v1540
    %1594 = vmatprep.subr.mxu0 %v1543
    %1595 = vmatpush1.msra.mxu0 %v1542
    %1596 = vmatprep.subr.mxu0 %v1545
    %1597 = vmatpush1.msra.mxu0 %v1544
    %1598 = vmatprep.subr.mxu0 %v1547
    %1599 = vmatpush1.msra.mxu0 %v1546
    %1600 = vmatprep.subr.mxu0 %v1549
    %1601 = vmatpush1.msra.mxu0 %v1548
    %1602 = vmatprep.subr.mxu0 %v1551
    %1603 = vmatpush1.msra.mxu0 %v1550
    %1604 = vmatprep.subr.mxu0 %v1553
    %1605 = vmatpush1.msra.mxu0 %v1552
    %1606 = vmatprep.subr.mxu0 %v1555
    %1607 = vmatpush1.msra.mxu0 %v1554
    %1608 = vmatprep.subr.mxu0 %v1557
    %1609 = vmatpush1.msra.mxu0 %v1556
    %1610 = vmatprep.subr.mxu0 %v1559
    %1611 = vmatpush1.msra.mxu0 %v1558
    %1612 = vmatprep.subr.mxu0 %v1561
    %1613 = vmatpush1.msra.mxu0 %v1560
    %1614 = vmatprep.subr.mxu0 %v1563
    %1615 = vmatpush1.msra.mxu0 %v1562
    %1616 = vmatprep.subr.mxu0 %v1565
    %1617 = vmatpush1.msra.mxu0 %v1564
    %1618 = vmatprep.subr.mxu0 %v1567
    %1619 = vmatpush1.msra.mxu0 %v1566
    %1620 = vmatprep.subr.mxu0 %v1569
    %1621 = vmatpush1.msra.mxu0 %v1568
    %1622 = vmatprep.subr.mxu0 %v1571
    %1623 = vmatpush1.msra.mxu0 %v1570
    %1624 = vmatprep.subr.mxu0 %v1573
    %1625 = vmatpush1.msra.mxu0 %v1572
    %1626 = vmatprep.subr.mxu0 %v1575
    %1627 = vmatpush1.msra.mxu0 %v1574
    %1628 = vmatprep.subr.mxu0 %v1577
    %1629 = vmatpush1.msra.mxu0 %v1576
    %1630 = vmatprep.subr.mxu0 %v1579
    %1631 = vmatpush1.msra.mxu0 %v1578
    %1632 = vmatprep.subr.mxu0 %v1581
    %1633 = vmatpush1.msra.mxu0 %v1580
    %1634 = vmatprep.subr.mxu0 %v1583
    %1635 = vmatpush1.msra.mxu0 %v1582
    %1636 = vmatprep.subr.mxu0 %v1585
    %1637 = vmatpush1.msra.mxu0 %v1584
    %1638 = vmatprep.subr.mxu0 %v1587
    %1639 = vmatpush1.msra.mxu0 %v1586
    %1640 = vmatprep.subr.mxu0 %v1589
    %1641 = vmatpush1.msra.mxu0 %v1588
    %1642 = vmatprep.subr.mxu0 0.0
    %1643 = vmatpush1.msra.mxu0 0.0
    %1644 = vmatprep.subr.mxu0 0.0
    %1645 = vmatpush1.msra.mxu0 0.0
    %1646 = vmatprep.subr.mxu0 0.0
    %1647 = vmatpush1.msra.mxu0 0.0
    %1648 = vmatprep.subr.mxu0 0.0
    %1649 = vmatpush1.msra.mxu0 0.0
    %1650 = vmatprep.subr.mxu0 0.0
    %1651 = vmatpush1.msra.mxu0 0.0
    %1652 = vmatprep.subr.mxu0 0.0
    %1653 = vmatpush1.msra.mxu0 0.0
    %1654 = vmatprep.mubr.f32.mxu0 %v1359
    %1655 = vmatmul.mubr.f32.gmra.mrb[0].mxu0 %v1343
    %v1656 = vpop.f32.mrb[0].mxu0
    %v1657 = vadd.f32 0.0, %v1656
    %v1658 = vpop.f32.mrb[0].mxu0
    %v1659 = vadd.f32 0.0, %v1658
    %1660 = vmatprep.mubr.f32.mxu0 %v1361
    %1661 = vmatmul.mubr.f32.gmra.mrb[0].mxu0 %v1348
    %v1662 = vpop.f32.mrb[0].mxu0
    %v1663 = vadd.f32 0.0, %v1662
    %v1664 = vpop.f32.mrb[0].mxu0
    %v1665 = vadd.f32 0.0, %v1664
    %1666 = vmatprep.mubr.f32.mxu0 %v1363
    %1667 = vmatmul.mubr.f32.gmra.mrb[0].mxu0 %v1352
    %v1668 = vpop.f32.mrb[0].mxu0
    %v1669 = vadd.f32 0.0, %v1668
    %v1670 = vpop.f32.mrb[0].mxu0
    %v1671 = vadd.f32 0.0, %v1670
    %1672 = vdwg.mxu0
    %1673 = vmatprep.subr.mxu0 %v1229
    %1674 = vmatpush1.msra.mxu0 %v1228
    %1675 = vmatprep.subr.mxu0 %v1231
    %1676 = vmatpush1.msra.mxu0 %v1230
    %1677 = vmatprep.subr.mxu0 %v1233
    %1678 = vmatpush1.msra.mxu0 %v1232
    %1679 = vmatprep.subr.mxu0 %v1235
    %1680 = vmatpush1.msra.mxu0 %v1234
    %1681 = vmatprep.subr.mxu0 %v1237
    %1682 = vmatpush1.msra.mxu0 %v1236
    %1683 = vmatprep.subr.mxu0 %v1239
    %1684 = vmatpush1.msra.mxu0 %v1238
    %1685 = vmatprep.subr.mxu0 %v1241
    %1686 = vmatpush1.msra.mxu0 %v1240
    %1687 = vmatprep.subr.mxu0 %v1243
    %1688 = vmatpush1.msra.mxu0 %v1242
    %1689 = vmatprep.subr.mxu0 %v1245
    %1690 = vmatpush1.msra.mxu0 %v1244
    %1691 = vmatprep.subr.mxu0 %v1247
    %1692 = vmatpush1.msra.mxu0 %v1246
    %1693 = vmatprep.subr.mxu0 %v1249
    %1694 = vmatpush1.msra.mxu0 %v1248
    %1695 = vmatprep.subr.mxu0 %v1251
    %1696 = vmatpush1.msra.mxu0 %v1250
    %1697 = vmatprep.subr.mxu0 %v1253
    %1698 = vmatpush1.msra.mxu0 %v1252
    %1699 = vmatprep.subr.mxu0 %v1255
    %1700 = vmatpush1.msra.mxu0 %v1254
    %1701 = vmatprep.subr.mxu0 %v1257
    %1702 = vmatpush1.msra.mxu0 %v1256
    %1703 = vmatprep.subr.mxu0 %v1259
    %1704 = vmatpush1.msra.mxu0 %v1258
    %1705 = vmatprep.subr.mxu0 %v1261
    %1706 = vmatpush1.msra.mxu0 %v1260
    %1707 = vmatprep.subr.mxu0 %v1263
    %1708 = vmatpush1.msra.mxu0 %v1262
    %1709 = vmatprep.subr.mxu0 %v1265
    %1710 = vmatpush1.msra.mxu0 %v1264
    %1711 = vmatprep.subr.mxu0 %v1267
    %1712 = vmatpush1.msra.mxu0 %v1266
    %1713 = vmatprep.subr.mxu0 %v1269
    %1714 = vmatpush1.msra.mxu0 %v1268
    %1715 = vmatprep.subr.mxu0 %v1271
    %1716 = vmatpush1.msra.mxu0 %v1270
    %1717 = vmatprep.subr.mxu0 %v1273
    %1718 = vmatpush1.msra.mxu0 %v1272
    %1719 = vmatprep.subr.mxu0 %v1275
    %1720 = vmatpush1.msra.mxu0 %v1274
    %1721 = vmatprep.subr.mxu0 %v1277
    %1722 = vmatpush1.msra.mxu0 %v1276
    %1723 = vmatprep.subr.mxu0 %v1279
    %1724 = vmatpush1.msra.mxu0 %v1278
    %1725 = vmatprep.subr.mxu0 0.0
    %1726 = vmatpush1.msra.mxu0 0.0
    %1727 = vmatprep.subr.mxu0 0.0
    %1728 = vmatpush1.msra.mxu0 0.0
    %1729 = vmatprep.subr.mxu0 0.0
    %1730 = vmatpush1.msra.mxu0 0.0
    %1731 = vmatprep.subr.mxu0 0.0
    %1732 = vmatpush1.msra.mxu0 0.0
    %1733 = vmatprep.subr.mxu0 0.0
    %1734 = vmatpush1.msra.mxu0 0.0
    %1735 = vmatprep.subr.mxu0 0.0
    %1736 = vmatpush1.msra.mxu0 0.0
    %1737 = vmatprep.mubr.f32.mxu0 %v1448
    %1738 = vmatmul.mubr.f32.gmra.mrb[0].mxu0 %v1167
    %v1739 = vpop.f32.mrb[0].mxu0
    %v1740 = vadd.f32 %v1657, %v1739
    %v1741 = vpop.f32.mrb[0].mxu0
    %v1742 = vadd.f32 %v1659, %v1741
    %1743 = vmatprep.mubr.f32.mxu0 %v1450
    %1744 = vmatmul.mubr.f32.gmra.mrb[0].mxu0 %v1169
    %v1745 = vpop.f32.mrb[0].mxu0
    %v1746 = vadd.f32 %v1663, %v1745
    %v1747 = vpop.f32.mrb[0].mxu0
    %v1748 = vadd.f32 %v1665, %v1747
    %1749 = vmatprep.mubr.f32.mxu0 %v1452
    %1750 = vmatmul.mubr.f32.gmra.mrb[0].mxu0 %v1171
    %v1751 = vpop.f32.mrb[0].mxu0
    %v1752 = vadd.f32 %v1669, %v1751
    %v1753 = vpop.f32.mrb[0].mxu0
    %v1754 = vadd.f32 %v1671, %v1753
    %1755 = vdwg.mxu0
    %s1756 = scalar_lea.vmem %s5, 1664
    %v1757 = vld [vmem:[%s1756] sm:$0xff]
    %v1758 = vld [vmem:[%s1756 + $0x8] sm:$0xff]
    %v1759 = vld [vmem:[%s1756 + $0x10] sm:$0xff]
    %v1760 = vld [vmem:[%s1756 + $0x18] sm:$0xff]
    %v1761 = vld [vmem:[%s1756 + $0x20] sm:$0xff]
    %v1762 = vld [vmem:[%s1756 + $0x28] sm:$0xff]
    %v1763 = vld [vmem:[%s1756 + $0x30] sm:$0xff]
    %v1764 = vld [vmem:[%s1756 + $0x38] sm:$0xff]
    %v1765 = vld [vmem:[%s1756 + $0x40] sm:$0xff]
    %v1766 = vld [vmem:[%s1756 + $0x48] sm:$0xff]
    %v1767 = vld [vmem:[%s1756 + $0x50] sm:$0xff]
    %v1768 = vld [vmem:[%s1756 + $0x58] sm:$0xff]
    %v1769 = vld [vmem:[%s1756 + $0x60] sm:$0xff]
    %v1770 = vld [vmem:[%s1756 + $0x68] sm:$0xff]
    %v1771 = vld [vmem:[%s1756 + $0x70] sm:$0xff]
    %v1772 = vld [vmem:[%s1756 + $0x78] sm:$0xff]
    %v1773 = vld [vmem:[%s1756 + $0x80] sm:$0xff]
    %v1774 = vld [vmem:[%s1756 + $0x88] sm:$0xff]
    %v1775 = vld [vmem:[%s1756 + $0x90] sm:$0xff]
    %v1776 = vld [vmem:[%s1756 + $0x98] sm:$0xff]
    %v1777 = vld [vmem:[%s1756 + $0xa0] sm:$0xff]
    %v1778 = vld [vmem:[%s1756 + $0xa8] sm:$0xff]
    %v1779 = vld [vmem:[%s1756 + $0xb0] sm:$0xff]
    %v1780 = vld [vmem:[%s1756 + $0xb8] sm:$0xff]
    %v1781 = vld [vmem:[%s1756 + $0xc0] sm:$0xff]
    %v1782 = vld [vmem:[%s1756 + $0xc8] sm:$0xff]
    %v1783 = vld [vmem:[%s1756 + $0xd0] sm:$0xff]
    %v1784 = vld [vmem:[%s1756 + $0xd8] sm:$0xff]
    %v1785 = vld [vmem:[%s1756 + $0xe0] sm:$0xff]
    %v1786 = vld [vmem:[%s1756 + $0xe8] sm:$0xff]
    %v1787 = vld [vmem:[%s1756 + $0xf0] sm:$0xff]
    %v1788 = vld [vmem:[%s1756 + $0xf8] sm:$0xff]
    %v1789 = vld [vmem:[%s1756 + $0x100] sm:$0xff]
    %v1790 = vld [vmem:[%s1756 + $0x108] sm:$0xff]
    %v1791 = vld [vmem:[%s1756 + $0x110] sm:$0xff]
    %v1792 = vld [vmem:[%s1756 + $0x118] sm:$0xff]
    %v1793 = vld [vmem:[%s1756 + $0x120] sm:$0xff]
    %v1794 = vld [vmem:[%s1756 + $0x128] sm:$0xff]
    %v1795 = vld [vmem:[%s1756 + $0x130] sm:$0xff]
    %v1796 = vld [vmem:[%s1756 + $0x138] sm:$0xff]
    %v1797 = vld [vmem:[%s1756 + $0x140] sm:$0xff]
    %v1798 = vld [vmem:[%s1756 + $0x148] sm:$0xff]
    %v1799 = vld [vmem:[%s1756 + $0x150] sm:$0xff]
    %v1800 = vld [vmem:[%s1756 + $0x158] sm:$0xff]
    %v1801 = vld [vmem:[%s1756 + $0x160] sm:$0xff]
    %v1802 = vld [vmem:[%s1756 + $0x168] sm:$0xff]
    %v1803 = vld [vmem:[%s1756 + $0x170] sm:$0xff]
    %v1804 = vld [vmem:[%s1756 + $0x178] sm:$0xff]
    %v1805 = vld [vmem:[%s1756 + $0x180] sm:$0xff]
    %v1806 = vld [vmem:[%s1756 + $0x188] sm:$0xff]
    %v1807 = vld [vmem:[%s1756 + $0x190] sm:$0xff]
    %v1808 = vld [vmem:[%s1756 + $0x198] sm:$0xff]
    %v1809 = vrot.slane %v1167, 2
    %v1810 = vrot.slane %v1169, 2
    %v1811 = vsel %vm605, %v1809, %v1810
    %v1812 = vrot.slane %v1168, 2
    %v1813 = vrot.slane %v1170, 2
    %v1814 = vsel %vm605, %v1812, %v1813
    %v1815 = vrot.slane %v1171, 2
    %v1816 = vsel %vm605, %v1810, %v1815
    %v1817 = vrot.slane %v1172, 2
    %v1818 = vsel %vm605, %v1813, %v1817
    %v1819 = vrot.slane %v1173, 2
    %v1820 = vsel %vm605, %v1815, %v1819
    %v1821 = vrot.slane %v1174, 2
    %v1822 = vsel %vm605, %v1817, %v1821
    %v1826 = vsel %vm1358, %v1814, 0
    %v1828 = vsel %vm1358, %v1818, 0
    %v1830 = vsel %vm1358, %v1822, 0
    %1832 = vmatprep.subr.mxu0 %v1758
    %1833 = vmatpush1.msra.mxu0 %v1757
    %1834 = vmatprep.subr.mxu0 %v1760
    %1835 = vmatpush1.msra.mxu0 %v1759
    %1836 = vmatprep.subr.mxu0 %v1762
    %1837 = vmatpush1.msra.mxu0 %v1761
    %1838 = vmatprep.subr.mxu0 %v1764
    %1839 = vmatpush1.msra.mxu0 %v1763
    %1840 = vmatprep.subr.mxu0 %v1766
    %1841 = vmatpush1.msra.mxu0 %v1765
    %1842 = vmatprep.subr.mxu0 %v1768
    %1843 = vmatpush1.msra.mxu0 %v1767
    %1844 = vmatprep.subr.mxu0 %v1770
    %1845 = vmatpush1.msra.mxu0 %v1769
    %1846 = vmatprep.subr.mxu0 %v1772
    %1847 = vmatpush1.msra.mxu0 %v1771
    %1848 = vmatprep.subr.mxu0 %v1774
    %1849 = vmatpush1.msra.mxu0 %v1773
    %1850 = vmatprep.subr.mxu0 %v1776
    %1851 = vmatpush1.msra.mxu0 %v1775
    %1852 = vmatprep.subr.mxu0 %v1778
    %1853 = vmatpush1.msra.mxu0 %v1777
    %1854 = vmatprep.subr.mxu0 %v1780
    %1855 = vmatpush1.msra.mxu0 %v1779
    %1856 = vmatprep.subr.mxu0 %v1782
    %1857 = vmatpush1.msra.mxu0 %v1781
    %1858 = vmatprep.subr.mxu0 %v1784
    %1859 = vmatpush1.msra.mxu0 %v1783
    %1860 = vmatprep.subr.mxu0 %v1786
    %1861 = vmatpush1.msra.mxu0 %v1785
    %1862 = vmatprep.subr.mxu0 %v1788
    %1863 = vmatpush1.msra.mxu0 %v1787
    %1864 = vmatprep.subr.mxu0 %v1790
    %1865 = vmatpush1.msra.mxu0 %v1789
    %1866 = vmatprep.subr.mxu0 %v1792
    %1867 = vmatpush1.msra.mxu0 %v1791
    %1868 = vmatprep.subr.mxu0 %v1794
    %1869 = vmatpush1.msra.mxu0 %v1793
    %1870 = vmatprep.subr.mxu0 %v1796
    %1871 = vmatpush1.msra.mxu0 %v1795
    %1872 = vmatprep.subr.mxu0 %v1798
    %1873 = vmatpush1.msra.mxu0 %v1797
    %1874 = vmatprep.subr.mxu0 %v1800
    %1875 = vmatpush1.msra.mxu0 %v1799
    %1876 = vmatprep.subr.mxu0 %v1802
    %1877 = vmatpush1.msra.mxu0 %v1801
    %1878 = vmatprep.subr.mxu0 %v1804
    %1879 = vmatpush1.msra.mxu0 %v1803
    %1880 = vmatprep.subr.mxu0 %v1806
    %1881 = vmatpush1.msra.mxu0 %v1805
    %1882 = vmatprep.subr.mxu0 %v1808
    %1883 = vmatpush1.msra.mxu0 %v1807
    %1884 = vmatprep.subr.mxu0 0.0
    %1885 = vmatpush1.msra.mxu0 0.0
    %1886 = vmatprep.subr.mxu0 0.0
    %1887 = vmatpush1.msra.mxu0 0.0
    %1888 = vmatprep.subr.mxu0 0.0
    %1889 = vmatpush1.msra.mxu0 0.0
    %1890 = vmatprep.subr.mxu0 0.0
    %1891 = vmatpush1.msra.mxu0 0.0
    %1892 = vmatprep.subr.mxu0 0.0
    %1893 = vmatpush1.msra.mxu0 0.0
    %1894 = vmatprep.subr.mxu0 0.0
    %1895 = vmatpush1.msra.mxu0 0.0
    %1896 = vmatprep.mubr.f32.mxu0 %v1826
    %1897 = vmatmul.mubr.f32.gmra.mrb[0].mxu0 %v1811
    %v1898 = vpop.f32.mrb[0].mxu0
    %v1899 = vadd.f32 0.0, %v1898
    %v1900 = vpop.f32.mrb[0].mxu0
    %v1901 = vadd.f32 0.0, %v1900
    %1902 = vmatprep.mubr.f32.mxu0 %v1828
    %1903 = vmatmul.mubr.f32.gmra.mrb[0].mxu0 %v1816
    %v1904 = vpop.f32.mrb[0].mxu0
    %v1905 = vadd.f32 0.0, %v1904
    %v1906 = vpop.f32.mrb[0].mxu0
    %v1907 = vadd.f32 0.0, %v1906
    %1908 = vmatprep.mubr.f32.mxu0 %v1830
    %1909 = vmatmul.mubr.f32.gmra.mrb[0].mxu0 %v1820
    %v1910 = vpop.f32.mrb[0].mxu0
    %v1911 = vadd.f32 0.0, %v1910
    %v1912 = vpop.f32.mrb[0].mxu0
    %v1913 = vadd.f32 0.0, %v1912
    %1914 = vdwg.mxu0
    %v1915 = vadd.f32 %v1521, %v1899
    %v1916 = vadd.f32 %v1523, %v1901
    %v1917 = vadd.f32 %v1527, %v1905
    %v1918 = vadd.f32 %v1529, %v1907
    %v1919 = vadd.f32 %v1533, %v1911
    %v1920 = vadd.f32 %v1535, %v1913
    %s1921 = scalar_lea.vmem %s5, 2080
    %v1922 = vld [vmem:[%s1921] sm:$0xff]
    %v1923 = vld [vmem:[%s1921 + $0x8] sm:$0xff]
    %v1924 = vld [vmem:[%s1921 + $0x10] sm:$0xff]
    %v1925 = vld [vmem:[%s1921 + $0x18] sm:$0xff]
    %v1926 = vld [vmem:[%s1921 + $0x20] sm:$0xff]
    %v1927 = vld [vmem:[%s1921 + $0x28] sm:$0xff]
    %v1928 = vld [vmem:[%s1921 + $0x30] sm:$0xff]
    %v1929 = vld [vmem:[%s1921 + $0x38] sm:$0xff]
    %v1930 = vld [vmem:[%s1921 + $0x40] sm:$0xff]
    %v1931 = vld [vmem:[%s1921 + $0x48] sm:$0xff]
    %v1932 = vld [vmem:[%s1921 + $0x50] sm:$0xff]
    %v1933 = vld [vmem:[%s1921 + $0x58] sm:$0xff]
    %v1934 = vld [vmem:[%s1921 + $0x60] sm:$0xff]
    %v1935 = vld [vmem:[%s1921 + $0x68] sm:$0xff]
    %v1936 = vld [vmem:[%s1921 + $0x70] sm:$0xff]
    %v1937 = vld [vmem:[%s1921 + $0x78] sm:$0xff]
    %v1938 = vld [vmem:[%s1921 + $0x80] sm:$0xff]
    %v1939 = vld [vmem:[%s1921 + $0x88] sm:$0xff]
    %v1940 = vld [vmem:[%s1921 + $0x90] sm:$0xff]
    %v1941 = vld [vmem:[%s1921 + $0x98] sm:$0xff]
    %v1942 = vld [vmem:[%s1921 + $0xa0] sm:$0xff]
    %v1943 = vld [vmem:[%s1921 + $0xa8] sm:$0xff]
    %v1944 = vld [vmem:[%s1921 + $0xb0] sm:$0xff]
    %v1945 = vld [vmem:[%s1921 + $0xb8] sm:$0xff]
    %v1946 = vld [vmem:[%s1921 + $0xc0] sm:$0xff]
    %v1947 = vld [vmem:[%s1921 + $0xc8] sm:$0xff]
    %v1948 = vld [vmem:[%s1921 + $0xd0] sm:$0xff]
    %v1949 = vld [vmem:[%s1921 + $0xd8] sm:$0xff]
    %v1950 = vld [vmem:[%s1921 + $0xe0] sm:$0xff]
    %v1951 = vld [vmem:[%s1921 + $0xe8] sm:$0xff]
    %v1952 = vld [vmem:[%s1921 + $0xf0] sm:$0xff]
    %v1953 = vld [vmem:[%s1921 + $0xf8] sm:$0xff]
    %v1954 = vld [vmem:[%s1921 + $0x100] sm:$0xff]
    %v1955 = vld [vmem:[%s1921 + $0x108] sm:$0xff]
    %v1956 = vld [vmem:[%s1921 + $0x110] sm:$0xff]
    %v1957 = vld [vmem:[%s1921 + $0x118] sm:$0xff]
    %v1958 = vld [vmem:[%s1921 + $0x120] sm:$0xff]
    %v1959 = vld [vmem:[%s1921 + $0x128] sm:$0xff]
    %v1960 = vld [vmem:[%s1921 + $0x130] sm:$0xff]
    %v1961 = vld [vmem:[%s1921 + $0x138] sm:$0xff]
    %v1962 = vld [vmem:[%s1921 + $0x140] sm:$0xff]
    %v1963 = vld [vmem:[%s1921 + $0x148] sm:$0xff]
    %v1964 = vld [vmem:[%s1921 + $0x150] sm:$0xff]
    %v1965 = vld [vmem:[%s1921 + $0x158] sm:$0xff]
    %v1966 = vld [vmem:[%s1921 + $0x160] sm:$0xff]
    %v1967 = vld [vmem:[%s1921 + $0x168] sm:$0xff]
    %v1968 = vld [vmem:[%s1921 + $0x170] sm:$0xff]
    %v1969 = vld [vmem:[%s1921 + $0x178] sm:$0xff]
    %v1970 = vld [vmem:[%s1921 + $0x180] sm:$0xff]
    %v1971 = vld [vmem:[%s1921 + $0x188] sm:$0xff]
    %v1972 = vld [vmem:[%s1921 + $0x190] sm:$0xff]
    %v1973 = vld [vmem:[%s1921 + $0x198] sm:$0xff]
    %1974 = vmatprep.subr.mxu0 %v1923
    %1975 = vmatpush1.msra.mxu0 %v1922
    %1976 = vmatprep.subr.mxu0 %v1925
    %1977 = vmatpush1.msra.mxu0 %v1924
    %1978 = vmatprep.subr.mxu0 %v1927
    %1979 = vmatpush1.msra.mxu0 %v1926
    %1980 = vmatprep.subr.mxu0 %v1929
    %1981 = vmatpush1.msra.mxu0 %v1928
    %1982 = vmatprep.subr.mxu0 %v1931
    %1983 = vmatpush1.msra.mxu0 %v1930
    %1984 = vmatprep.subr.mxu0 %v1933
    %1985 = vmatpush1.msra.mxu0 %v1932
    %1986 = vmatprep.subr.mxu0 %v1935
    %1987 = vmatpush1.msra.mxu0 %v1934
    %1988 = vmatprep.subr.mxu0 %v1937
    %1989 = vmatpush1.msra.mxu0 %v1936
    %1990 = vmatprep.subr.mxu0 %v1939
    %1991 = vmatpush1.msra.mxu0 %v1938
    %1992 = vmatprep.subr.mxu0 %v1941
    %1993 = vmatpush1.msra.mxu0 %v1940
    %1994 = vmatprep.subr.mxu0 %v1943
    %1995 = vmatpush1.msra.mxu0 %v1942
    %1996 = vmatprep.subr.mxu0 %v1945
    %1997 = vmatpush1.msra.mxu0 %v1944
    %1998 = vmatprep.subr.mxu0 %v1947
    %1999 = vmatpush1.msra.mxu0 %v1946
    %2000 = vmatprep.subr.mxu0 %v1949
    %2001 = vmatpush1.msra.mxu0 %v1948
    %2002 = vmatprep.subr.mxu0 %v1951
    %2003 = vmatpush1.msra.mxu0 %v1950
    %2004 = vmatprep.subr.mxu0 %v1953
    %2005 = vmatpush1.msra.mxu0 %v1952
    %2006 = vmatprep.subr.mxu0 %v1955
    %2007 = vmatpush1.msra.mxu0 %v1954
    %2008 = vmatprep.subr.mxu0 %v1957
    %2009 = vmatpush1.msra.mxu0 %v1956
    %2010 = vmatprep.subr.mxu0 %v1959
    %2011 = vmatpush1.msra.mxu0 %v1958
    %2012 = vmatprep.subr.mxu0 %v1961
    %2013 = vmatpush1.msra.mxu0 %v1960
    %2014 = vmatprep.subr.mxu0 %v1963
    %2015 = vmatpush1.msra.mxu0 %v1962
    %2016 = vmatprep.subr.mxu0 %v1965
    %2017 = vmatpush1.msra.mxu0 %v1964
    %2018 = vmatprep.subr.mxu0 %v1967
    %2019 = vmatpush1.msra.mxu0 %v1966
    %2020 = vmatprep.subr.mxu0 %v1969
    %2021 = vmatpush1.msra.mxu0 %v1968
    %2022 = vmatprep.subr.mxu0 %v1971
    %2023 = vmatpush1.msra.mxu0 %v1970
    %2024 = vmatprep.subr.mxu0 %v1973
    %2025 = vmatpush1.msra.mxu0 %v1972
    %2026 = vmatprep.subr.mxu0 0.0
    %2027 = vmatpush1.msra.mxu0 0.0
    %2028 = vmatprep.subr.mxu0 0.0
    %2029 = vmatpush1.msra.mxu0 0.0
    %2030 = vmatprep.subr.mxu0 0.0
    %2031 = vmatpush1.msra.mxu0 0.0
    %2032 = vmatprep.subr.mxu0 0.0
    %2033 = vmatpush1.msra.mxu0 0.0
    %2034 = vmatprep.subr.mxu0 0.0
    %2035 = vmatpush1.msra.mxu0 0.0
    %2036 = vmatprep.subr.mxu0 0.0
    %2037 = vmatpush1.msra.mxu0 0.0
    %2038 = vmatprep.mubr.f32.mxu0 %v1826
    %2039 = vmatmul.mubr.f32.gmra.mrb[0].mxu0 %v1811
    %v2040 = vpop.f32.mrb[0].mxu0
    %v2041 = vadd.f32 0.0, %v2040
    %v2042 = vpop.f32.mrb[0].mxu0
    %v2043 = vadd.f32 0.0, %v2042
    %2044 = vmatprep.mubr.f32.mxu0 %v1828
    %2045 = vmatmul.mubr.f32.gmra.mrb[0].mxu0 %v1816
    %v2046 = vpop.f32.mrb[0].mxu0
    %v2047 = vadd.f32 0.0, %v2046
    %v2048 = vpop.f32.mrb[0].mxu0
    %v2049 = vadd.f32 0.0, %v2048
    %2050 = vmatprep.mubr.f32.mxu0 %v1830
    %2051 = vmatmul.mubr.f32.gmra.mrb[0].mxu0 %v1820
    %v2052 = vpop.f32.mrb[0].mxu0
    %v2053 = vadd.f32 0.0, %v2052
    %v2054 = vpop.f32.mrb[0].mxu0
    %v2055 = vadd.f32 0.0, %v2054
    %2056 = vdwg.mxu0
    %v2057 = vadd.f32 %v1740, %v2041
    %v2058 = vadd.f32 %v1742, %v2043
    %v2059 = vadd.f32 %v1746, %v2047
    %v2060 = vadd.f32 %v1748, %v2049
    %v2061 = vadd.f32 %v1752, %v2053
    %v2062 = vadd.f32 %v1754, %v2055
    %v2063 = vmax.f32 %v1915, %v2057
    %v2064 = vmax.f32 %v1916, %v2058
    %v2065 = vmax.f32 %v1917, %v2059
    %v2066 = vmax.f32 %v1918, %v2060
    %v2067 = vmax.f32 %v1919, %v2061
    %v2068 = vmax.f32 %v1920, %v2062
    %v2069 = vld [vmem:[%s6] sm:$0x3]
    %v2071 = vlaneseq
    %v2072 = vshrl.u32 %v2071, 7
    %v2073 = vsub.s32 0, %v2072
    %v2074 = vrot.slane %v2069, %v2073
    %v2075 = vlaneseq
    %v2076 = vshrl.u32 %v2075, 7
    %v2077 = vsub.s32 1, %v2076
    %v2078 = vrot.slane %v2069, %v2077
    %v2081 = vadd.f32 %v2063, %v2074
    %v2082 = vadd.f32 %v2064, %v2078
    %v2083 = vadd.f32 %v2065, %v2074
    %v2084 = vadd.f32 %v2066, %v2078
    %v2085 = vadd.f32 %v2067, %v2074
    %v2086 = vadd.f32 %v2068, %v2078
    %v2087 = vmax.f32 %v2081, 0.0
    %v2088 = vmax.f32 %v2082, 0.0
    %v2089 = vmax.f32 %v2083, 0.0
    %v2090 = vmax.f32 %v2084, 0.0
    %v2091 = vmax.f32 %v2085, 0.0
    %v2092 = vmax.f32 %v2086, 0.0
    %v2093 = vld [vmem:[%s7] sm:$0xff]
    %v2094 = vld [vmem:[%s7 + $0x8] sm:$0x3]
    %vm2095 = vcmask 195584
    %v2097 = vsel %vm2095, %v2093, 0
    %v2100 = vsel %vm2095, %v2094, 0
    %2102 = vmatprep.subr.mxu0 %v2088
    %2103 = vmatpush1.msra.mxu0 %v2087
    %2104 = vmatprep.subr.mxu0 %v2090
    %2105 = vmatpush1.msra.mxu0 %v2089
    %2106 = vmatprep.subr.mxu0 %v2092
    %2107 = vmatpush1.msra.mxu0 %v2091
    %2108 = vmatprep.subr.mxu0 0.0
    %2109 = vmatpush1.msra.mxu0 0.0
    %2110 = vmatprep.subr.mxu0 0.0
    %2111 = vmatpush1.msra.mxu0 0.0
    %2112 = vmatprep.subr.mxu0 0.0
    %2113 = vmatpush1.msra.mxu0 0.0
    %2114 = vmatprep.subr.mxu0 0.0
    %2115 = vmatpush1.msra.mxu0 0.0
    %2116 = vmatprep.subr.mxu0 0.0
    %2117 = vmatpush1.msra.mxu0 0.0
    %2118 = vmatprep.subr.mxu0 0.0
    %2119 = vmatpush1.msra.mxu0 0.0
    %2120 = vmatprep.subr.mxu0 0.0
    %2121 = vmatpush1.msra.mxu0 0.0
    %2122 = vmatprep.subr.mxu0 0.0
    %2123 = vmatpush1.msra.mxu0 0.0
    %2124 = vmatprep.subr.mxu0 0.0
    %2125 = vmatpush1.msra.mxu0 0.0
    %2126 = vmatprep.subr.mxu0 0.0
    %2127 = vmatpush1.msra.mxu0 0.0
    %2128 = vmatprep.subr.mxu0 0.0
    %2129 = vmatpush1.msra.mxu0 0.0
    %2130 = vmatprep.subr.mxu0 0.0
    %2131 = vmatpush1.msra.mxu0 0.0
    %2132 = vmatprep.subr.mxu0 0.0
    %2133 = vmatpush1.msra.mxu0 0.0
    %2134 = vmatprep.subr.mxu0 0.0
    %2135 = vmatpush1.msra.mxu0 0.0
    %2136 = vmatprep.subr.mxu0 0.0
    %2137 = vmatpush1.msra.mxu0 0.0
    %2138 = vmatprep.subr.mxu0 0.0
    %2139 = vmatpush1.msra.mxu0 0.0
    %2140 = vmatprep.subr.mxu0 0.0
    %2141 = vmatpush1.msra.mxu0 0.0
    %2142 = vmatprep.subr.mxu0 0.0
    %2143 = vmatpush1.msra.mxu0 0.0
    %2144 = vmatprep.subr.mxu0 0.0
    %2145 = vmatpush1.msra.mxu0 0.0
    %2146 = vmatprep.subr.mxu0 0.0
    %2147 = vmatpush1.msra.mxu0 0.0
    %2148 = vmatprep.subr.mxu0 0.0
    %2149 = vmatpush1.msra.mxu0 0.0
    %2150 = vmatprep.subr.mxu0 0.0
    %2151 = vmatpush1.msra.mxu0 0.0
    %2152 = vmatprep.subr.mxu0 0.0
    %2153 = vmatpush1.msra.mxu0 0.0
    %2154 = vmatprep.subr.mxu0 0.0
    %2155 = vmatpush1.msra.mxu0 0.0
    %2156 = vmatprep.subr.mxu0 0.0
    %2157 = vmatpush1.msra.mxu0 0.0
    %2158 = vmatprep.subr.mxu0 0.0
    %2159 = vmatpush1.msra.mxu0 0.0
    %2160 = vmatprep.subr.mxu0 0.0
    %2161 = vmatpush1.msra.mxu0 0.0
    %2162 = vmatprep.subr.mxu0 0.0
    %2163 = vmatpush1.msra.mxu0 0.0
    %2164 = vmatprep.subr.mxu0 0.0
    %2165 = vmatpush1.msra.mxu0 0.0
    %2166 = vmatprep.mubr.f32.mxu0 0.0
    %2167 = vmatmul.mubr.f32.gmra.mrb[0].mxu0 %v2097
    %v2168 = vpop.f32.mrb[0].mxu0
    %v2169 = vadd.f32 0.0, %v2168
    %v2170 = vpop.f32.mrb[0].mxu0
    %v2171 = vadd.f32 0.0, %v2170
    %2172 = vmatprep.mubr.f32.mxu0 0.0
    %2173 = vmatmul.mubr.f32.gmra.mrb[0].mxu0 %v2100
    %v2174 = vpop.f32.mrb[0].mxu0
    %v2175 = vadd.f32 0.0, %v2174
    %v2176 = vpop.f32.mrb[0].mxu0
    %v2177 = vadd.f32 0.0, %v2176
    %2178 = vdwg.mxu0
    %v2179 = vld [vmem:[%s8] sm:$0xff]
    %v2180 = vld [vmem:[%s8 + $0x8] sm:$0x3]
    %v2182 = vsel %vm2095, %v2179, 0
    %v2185 = vsel %vm2095, %v2180, 0
    %2187 = vmatprep.subr.mxu0 %v2088
    %2188 = vmatpush1.msra.mxu0 %v2087
    %2189 = vmatprep.subr.mxu0 %v2090
    %2190 = vmatpush1.msra.mxu0 %v2089
    %2191 = vmatprep.subr.mxu0 %v2092
    %2192 = vmatpush1.msra.mxu0 %v2091
    %2193 = vmatprep.subr.mxu0 0.0
    %2194 = vmatpush1.msra.mxu0 0.0
    %2195 = vmatprep.subr.mxu0 0.0
    %2196 = vmatpush1.msra.mxu0 0.0
    %2197 = vmatprep.subr.mxu0 0.0
    %2198 = vmatpush1.msra.mxu0 0.0
    %2199 = vmatprep.subr.mxu0 0.0
    %2200 = vmatpush1.msra.mxu0 0.0
    %2201 = vmatprep.subr.mxu0 0.0
    %2202 = vmatpush1.msra.mxu0 0.0
    %2203 = vmatprep.subr.mxu0 0.0
    %2204 = vmatpush1.msra.mxu0 0.0
    %2205 = vmatprep.subr.mxu0 0.0
    %2206 = vmatpush1.msra.mxu0 0.0
    %2207 = vmatprep.subr.mxu0 0.0
    %2208 = vmatpush1.msra.mxu0 0.0
    %2209 = vmatprep.subr.mxu0 0.0
    %2210 = vmatpush1.msra.mxu0 0.0
    %2211 = vmatprep.subr.mxu0 0.0
    %2212 = vmatpush1.msra.mxu0 0.0
    %2213 = vmatprep.subr.mxu0 0.0
    %2214 = vmatpush1.msra.mxu0 0.0
    %2215 = vmatprep.subr.mxu0 0.0
    %2216 = vmatpush1.msra.mxu0 0.0
    %2217 = vmatprep.subr.mxu0 0.0
    %2218 = vmatpush1.msra.mxu0 0.0
    %2219 = vmatprep.subr.mxu0 0.0
    %2220 = vmatpush1.msra.mxu0 0.0
    %2221 = vmatprep.subr.mxu0 0.0
    %2222 = vmatpush1.msra.mxu0 0.0
    %2223 = vmatprep.subr.mxu0 0.0
    %2224 = vmatpush1.msra.mxu0 0.0
    %2225 = vmatprep.subr.mxu0 0.0
    %2226 = vmatpush1.msra.mxu0 0.0
    %2227 = vmatprep.subr.mxu0 0.0
    %2228 = vmatpush1.msra.mxu0 0.0
    %2229 = vmatprep.subr.mxu0 0.0
    %2230 = vmatpush1.msra.mxu0 0.0
    %2231 = vmatprep.subr.mxu0 0.0
    %2232 = vmatpush1.msra.mxu0 0.0
    %2233 = vmatprep.subr.mxu0 0.0
    %2234 = vmatpush1.msra.mxu0 0.0
    %2235 = vmatprep.subr.mxu0 0.0
    %2236 = vmatpush1.msra.mxu0 0.0
    %2237 = vmatprep.subr.mxu0 0.0
    %2238 = vmatpush1.msra.mxu0 0.0
    %2239 = vmatprep.subr.mxu0 0.0
    %2240 = vmatpush1.msra.mxu0 0.0
    %2241 = vmatprep.subr.mxu0 0.0
    %2242 = vmatpush1.msra.mxu0 0.0
    %2243 = vmatprep.subr.mxu0 0.0
    %2244 = vmatpush1.msra.mxu0 0.0
    %2245 = vmatprep.subr.mxu0 0.0
    %2246 = vmatpush1.msra.mxu0 0.0
    %2247 = vmatprep.subr.mxu0 0.0
    %2248 = vmatpush1.msra.mxu0 0.0
    %2249 = vmatprep.subr.mxu0 0.0
    %2250 = vmatpush1.msra.mxu0 0.0
    %2251 = vmatprep.mubr.f32.mxu0 0.0
    %2252 = vmatmul.mubr.f32.gmra.mrb[0].mxu0 %v2182
    %v2253 = vpop.f32.mrb[0].mxu0
    %v2254 = vadd.f32 0.0, %v2253
    %v2255 = vpop.f32.mrb[0].mxu0
    %v2256 = vadd.f32 0.0, %v2255
    %2257 = vmatprep.mubr.f32.mxu0 0.0
    %2258 = vmatmul.mubr.f32.gmra.mrb[0].mxu0 %v2185
    %v2259 = vpop.f32.mrb[0].mxu0
    %v2260 = vadd.f32 0.0, %v2259
    %v2261 = vpop.f32.mrb[0].mxu0
    %v2262 = vadd.f32 0.0, %v2261
    %2263 = vdwg.mxu0
    %v2264 = vmax.f32 %v2169, %v2254
    %v2265 = vmax.f32 %v2171, %v2256
    %v2266 = vmax.f32 %v2175, %v2260
    %v2267 = vmax.f32 %v2177, %v2262
    %v2268 = vld [vmem:[%s9] sm:$0xff]
    %v2269 = vld [vmem:[%s9 + $0x8] sm:$0xff]
    %v2270 = vld [vmem:[%s9 + $0x10] sm:$0xff]
    %v2271 = vld [vmem:[%s9 + $0x18] sm:$0xff]
    %v2272 = vld [vmem:[%s9 + $0x20] sm:$0xff]
    %v2273 = vld [vmem:[%s9 + $0x28] sm:$0xff]
    %v2274 = vld [vmem:[%s9 + $0x30] sm:$0xff]
    %v2275 = vld [vmem:[%s9 + $0x38] sm:$0xff]
    %v2276 = vld [vmem:[%s9 + $0x40] sm:$0xff]
    %v2277 = vld [vmem:[%s9 + $0x48] sm:$0xff]
    %v2278 = vld [vmem:[%s9 + $0x50] sm:$0xff]
    %v2279 = vld [vmem:[%s9 + $0x58] sm:$0xff]
    %v2280 = vld [vmem:[%s9 + $0x60] sm:$0xff]
    %v2281 = vld [vmem:[%s9 + $0x68] sm:$0xff]
    %v2282 = vld [vmem:[%s9 + $0x70] sm:$0xff]
    %v2283 = vld [vmem:[%s9 + $0x78] sm:$0xff]
    %v2284 = vld [vmem:[%s9 + $0x80] sm:$0xff]
    %v2285 = vld [vmem:[%s9 + $0x88] sm:$0xff]
    %v2286 = vld [vmem:[%s9 + $0x90] sm:$0xff]
    %v2287 = vld [vmem:[%s9 + $0x98] sm:$0xff]
    %s2288 = scalar_lea.vmem %s9, 160
    %v2289 = vld [vmem:[%s2288] sm:$0xff]
    %v2290 = vld [vmem:[%s2288 + $0x8] sm:$0xff]
    %v2291 = vld [vmem:[%s2288 + $0x10] sm:$0xff]
    %v2292 = vld [vmem:[%s2288 + $0x18] sm:$0xff]
    %v2293 = vld [vmem:[%s2288 + $0x20] sm:$0xff]
    %v2294 = vld [vmem:[%s2288 + $0x28] sm:$0xff]
    %v2295 = vld [vmem:[%s2288 + $0x30] sm:$0xff]
    %v2296 = vld [vmem:[%s2288 + $0x38] sm:$0xff]
    %v2297 = vld [vmem:[%s2288 + $0x40] sm:$0xff]
    %v2298 = vld [vmem:[%s2288 + $0x48] sm:$0xff]
    %v2299 = vld [vmem:[%s2288 + $0x50] sm:$0xff]
    %v2300 = vld [vmem:[%s2288 + $0x58] sm:$0xff]
    %v2301 = vld [vmem:[%s2288 + $0x60] sm:$0xff]
    %v2302 = vld [vmem:[%s2288 + $0x68] sm:$0xff]
    %v2303 = vld [vmem:[%s2288 + $0x70] sm:$0xff]
    %v2304 = vld [vmem:[%s2288 + $0x78] sm:$0xff]
    %v2305 = vld [vmem:[%s2288 + $0x80] sm:$0xff]
    %v2306 = vld [vmem:[%s2288 + $0x88] sm:$0xff]
    %v2307 = vld [vmem:[%s2288 + $0x90] sm:$0xff]
    %v2308 = vld [vmem:[%s2288 + $0x98] sm:$0xff]
    %s2309 = scalar_lea.vmem %s9, 320
    %v2310 = vld [vmem:[%s2309] sm:$0xff]
    %v2311 = vld [vmem:[%s2309 + $0x8] sm:$0xff]
    %v2312 = vld [vmem:[%s2309 + $0x10] sm:$0xff]
    %v2313 = vld [vmem:[%s2309 + $0x18] sm:$0xff]
    %v2314 = vld [vmem:[%s2309 + $0x20] sm:$0xff]
    %v2315 = vld [vmem:[%s2309 + $0x28] sm:$0xff]
    %v2316 = vld [vmem:[%s2309 + $0x30] sm:$0xff]
    %v2317 = vld [vmem:[%s2309 + $0x38] sm:$0xff]
    %v2318 = vld [vmem:[%s2309 + $0x40] sm:$0xff]
    %v2319 = vld [vmem:[%s2309 + $0x48] sm:$0xff]
    %v2320 = vld [vmem:[%s2309 + $0x50] sm:$0xff]
    %v2321 = vld [vmem:[%s2309 + $0x58] sm:$0xff]
    %v2322 = vld [vmem:[%s2309 + $0x60] sm:$0xff]
    %v2323 = vld [vmem:[%s2309 + $0x68] sm:$0xff]
    %v2324 = vld [vmem:[%s2309 + $0x70] sm:$0xff]
    %v2325 = vld [vmem:[%s2309 + $0x78] sm:$0xff]
    %v2326 = vld [vmem:[%s2309 + $0x80] sm:$0xff]
    %v2327 = vld [vmem:[%s2309 + $0x88] sm:$0xff]
    %v2328 = vld [vmem:[%s2309 + $0x90] sm:$0xff]
    %v2329 = vld [vmem:[%s2309 + $0x98] sm:$0xff]
    %v2334 = vrot.slane %v2264, 1
    %v2335 = vrot.slane %v2266, 1
    %v2336 = vsel %vm91, %v2334, %v2335
    %v2337 = vrot.slane %v2265, 1
    %v2338 = vrot.slane %v2267, 1
    %v2339 = vsel %vm91, %v2337, %v2338
    %vm2341 = vcmask 261120
    %v2342 = vsel %vm2341, %v2339, 0
    %2344 = vmatprep.subr.mxu0 0.0
    %2345 = vmatpush1.msra.mxu0 %v2310
    %2346 = vmatprep.subr.mxu0 0.0
    %2347 = vmatpush1.msra.mxu0 %v2311
    %2348 = vmatprep.subr.mxu0 0.0
    %2349 = vmatpush1.msra.mxu0 %v2312
    %2350 = vmatprep.subr.mxu0 0.0
    %2351 = vmatpush1.msra.mxu0 %v2313
    %2352 = vmatprep.subr.mxu0 0.0
    %2353 = vmatpush1.msra.mxu0 %v2314
    %2354 = vmatprep.subr.mxu0 0.0
    %2355 = vmatpush1.msra.mxu0 %v2315
    %2356 = vmatprep.subr.mxu0 0.0
    %2357 = vmatpush1.msra.mxu0 %v2316
    %2358 = vmatprep.subr.mxu0 0.0
    %2359 = vmatpush1.msra.mxu0 %v2317
    %2360 = vmatprep.subr.mxu0 0.0
    %2361 = vmatpush1.msra.mxu0 %v2318
    %2362 = vmatprep.subr.mxu0 0.0
    %2363 = vmatpush1.msra.mxu0 %v2319
    %2364 = vmatprep.subr.mxu0 0.0
    %2365 = vmatpush1.msra.mxu0 %v2320
    %2366 = vmatprep.subr.mxu0 0.0
    %2367 = vmatpush1.msra.mxu0 %v2321
    %2368 = vmatprep.subr.mxu0 0.0
    %2369 = vmatpush1.msra.mxu0 %v2322
    %2370 = vmatprep.subr.mxu0 0.0
    %2371 = vmatpush1.msra.mxu0 %v2323
    %2372 = vmatprep.subr.mxu0 0.0
    %2373 = vmatpush1.msra.mxu0 %v2324
    %2374 = vmatprep.subr.mxu0 0.0
    %2375 = vmatpush1.msra.mxu0 %v2325
    %2376 = vmatprep.subr.mxu0 0.0
    %2377 = vmatpush1.msra.mxu0 %v2326
    %2378 = vmatprep.subr.mxu0 0.0
    %2379 = vmatpush1.msra.mxu0 %v2327
    %2380 = vmatprep.subr.mxu0 0.0
    %2381 = vmatpush1.msra.mxu0 %v2328
    %2382 = vmatprep.subr.mxu0 0.0
    %2383 = vmatpush1.msra.mxu0 %v2329
    %2384 = vmatprep.subr.mxu0 0.0
    %2385 = vmatpush1.msra.mxu0 0.0
    %2386 = vmatprep.subr.mxu0 0.0
    %2387 = vmatpush1.msra.mxu0 0.0
    %2388 = vmatprep.subr.mxu0 0.0
    %2389 = vmatpush1.msra.mxu0 0.0
    %2390 = vmatprep.subr.mxu0 0.0
    %2391 = vmatpush1.msra.mxu0 0.0
    %2392 = vmatprep.subr.mxu0 0.0
    %2393 = vmatpush1.msra.mxu0 0.0
    %2394 = vmatprep.subr.mxu0 0.0
    %2395 = vmatpush1.msra.mxu0 0.0
    %2396 = vmatprep.subr.mxu0 0.0
    %2397 = vmatpush1.msra.mxu0 0.0
    %2398 = vmatprep.subr.mxu0 0.0
    %2399 = vmatpush1.msra.mxu0 0.0
    %2400 = vmatprep.subr.mxu0 0.0
    %2401 = vmatpush1.msra.mxu0 0.0
    %2402 = vmatprep.subr.mxu0 0.0
    %2403 = vmatpush1.msra.mxu0 0.0
    %2404 = vmatprep.subr.mxu0 0.0
    %2405 = vmatpush1.msra.mxu0 0.0
    %2406 = vmatprep.subr.mxu0 0.0
    %2407 = vmatpush1.msra.mxu0 0.0
    %2408 = vmatprep.mubr.f32.mxu0 %v2342
    %2409 = vmatmul.mubr.f32.gmra.mrb[0].mxu0 %v2336
    %v2410 = vpop.f32.mrb[0].mxu0
    %v2411 = vadd.f32 0.0, %v2410
    %v2412 = vpop.f32.mrb[0].mxu0
    %2413 = vdwg.mxu0
    %v2414 = vsel %vm2341, %v2265, 0
    %2416 = vmatprep.subr.mxu0 0.0
    %2417 = vmatpush1.msra.mxu0 %v2268
    %2418 = vmatprep.subr.mxu0 0.0
    %2419 = vmatpush1.msra.mxu0 %v2269
    %2420 = vmatprep.subr.mxu0 0.0
    %2421 = vmatpush1.msra.mxu0 %v2270
    %2422 = vmatprep.subr.mxu0 0.0
    %2423 = vmatpush1.msra.mxu0 %v2271
    %2424 = vmatprep.subr.mxu0 0.0
    %2425 = vmatpush1.msra.mxu0 %v2272
    %2426 = vmatprep.subr.mxu0 0.0
    %2427 = vmatpush1.msra.mxu0 %v2273
    %2428 = vmatprep.subr.mxu0 0.0
    %2429 = vmatpush1.msra.mxu0 %v2274
    %2430 = vmatprep.subr.mxu0 0.0
    %2431 = vmatpush1.msra.mxu0 %v2275
    %2432 = vmatprep.subr.mxu0 0.0
    %2433 = vmatpush1.msra.mxu0 %v2276
    %2434 = vmatprep.subr.mxu0 0.0
    %2435 = vmatpush1.msra.mxu0 %v2277
    %2436 = vmatprep.subr.mxu0 0.0
    %2437 = vmatpush1.msra.mxu0 %v2278
    %2438 = vmatprep.subr.mxu0 0.0
    %2439 = vmatpush1.msra.mxu0 %v2279
    %2440 = vmatprep.subr.mxu0 0.0
    %2441 = vmatpush1.msra.mxu0 %v2280
    %2442 = vmatprep.subr.mxu0 0.0
    %2443 = vmatpush1.msra.mxu0 %v2281
    %2444 = vmatprep.subr.mxu0 0.0
    %2445 = vmatpush1.msra.mxu0 %v2282
    %2446 = vmatprep.subr.mxu0 0.0
    %2447 = vmatpush1.msra.mxu0 %v2283
    %2448 = vmatprep.subr.mxu0 0.0
    %2449 = vmatpush1.msra.mxu0 %v2284
    %2450 = vmatprep.subr.mxu0 0.0
    %2451 = vmatpush1.msra.mxu0 %v2285
    %2452 = vmatprep.subr.mxu0 0.0
    %2453 = vmatpush1.msra.mxu0 %v2286
    %2454 = vmatprep.subr.mxu0 0.0
    %2455 = vmatpush1.msra.mxu0 %v2287
    %2456 = vmatprep.subr.mxu0 0.0
    %2457 = vmatpush1.msra.mxu0 0.0
    %2458 = vmatprep.subr.mxu0 0.0
    %2459 = vmatpush1.msra.mxu0 0.0
    %2460 = vmatprep.subr.mxu0 0.0
    %2461 = vmatpush1.msra.mxu0 0.0
    %2462 = vmatprep.subr.mxu0 0.0
    %2463 = vmatpush1.msra.mxu0 0.0
    %2464 = vmatprep.subr.mxu0 0.0
    %2465 = vmatpush1.msra.mxu0 0.0
    %2466 = vmatprep.subr.mxu0 0.0
    %2467 = vmatpush1.msra.mxu0 0.0
    %2468 = vmatprep.subr.mxu0 0.0
    %2469 = vmatpush1.msra.mxu0 0.0
    %2470 = vmatprep.subr.mxu0 0.0
    %2471 = vmatpush1.msra.mxu0 0.0
    %2472 = vmatprep.subr.mxu0 0.0
    %2473 = vmatpush1.msra.mxu0 0.0
    %2474 = vmatprep.subr.mxu0 0.0
    %2475 = vmatpush1.msra.mxu0 0.0
    %2476 = vmatprep.subr.mxu0 0.0
    %2477 = vmatpush1.msra.mxu0 0.0
    %2478 = vmatprep.subr.mxu0 0.0
    %2479 = vmatpush1.msra.mxu0 0.0
    %2480 = vmatprep.mubr.f32.mxu0 %v2414
    %2481 = vmatmul.mubr.f32.gmra.mrb[0].mxu0 %v2264
    %v2482 = vpop.f32.mrb[0].mxu0
    %v2483 = vadd.f32 %v2411, %v2482
    %v2484 = vpop.f32.mrb[0].mxu0
    %2485 = vdwg.mxu0
    %s2486 = scalar_lea.vmem %s9, 480
    %v2487 = vld [vmem:[%s2486] sm:$0xff]
    %v2488 = vld [vmem:[%s2486 + $0x8] sm:$0xff]
    %v2489 = vld [vmem:[%s2486 + $0x10] sm:$0xff]
    %v2490 = vld [vmem:[%s2486 + $0x18] sm:$0xff]
    %v2491 = vld [vmem:[%s2486 + $0x20] sm:$0xff]
    %v2492 = vld [vmem:[%s2486 + $0x28] sm:$0xff]
    %v2493 = vld [vmem:[%s2486 + $0x30] sm:$0xff]
    %v2494 = vld [vmem:[%s2486 + $0x38] sm:$0xff]
    %v2495 = vld [vmem:[%s2486 + $0x40] sm:$0xff]
    %v2496 = vld [vmem:[%s2486 + $0x48] sm:$0xff]
    %v2497 = vld [vmem:[%s2486 + $0x50] sm:$0xff]
    %v2498 = vld [vmem:[%s2486 + $0x58] sm:$0xff]
    %v2499 = vld [vmem:[%s2486 + $0x60] sm:$0xff]
    %v2500 = vld [vmem:[%s2486 + $0x68] sm:$0xff]
    %v2501 = vld [vmem:[%s2486 + $0x70] sm:$0xff]
    %v2502 = vld [vmem:[%s2486 + $0x78] sm:$0xff]
    %v2503 = vld [vmem:[%s2486 + $0x80] sm:$0xff]
    %v2504 = vld [vmem:[%s2486 + $0x88] sm:$0xff]
    %v2505 = vld [vmem:[%s2486 + $0x90] sm:$0xff]
    %v2506 = vld [vmem:[%s2486 + $0x98] sm:$0xff]
    %2507 = vmatprep.subr.mxu0 0.0
    %2508 = vmatpush1.msra.mxu0 %v2487
    %2509 = vmatprep.subr.mxu0 0.0
    %2510 = vmatpush1.msra.mxu0 %v2488
    %2511 = vmatprep.subr.mxu0 0.0
    %2512 = vmatpush1.msra.mxu0 %v2489
    %2513 = vmatprep.subr.mxu0 0.0
    %2514 = vmatpush1.msra.mxu0 %v2490
    %2515 = vmatprep.subr.mxu0 0.0
    %2516 = vmatpush1.msra.mxu0 %v2491
    %2517 = vmatprep.subr.mxu0 0.0
    %2518 = vmatpush1.msra.mxu0 %v2492
    %2519 = vmatprep.subr.mxu0 0.0
    %2520 = vmatpush1.msra.mxu0 %v2493
    %2521 = vmatprep.subr.mxu0 0.0
    %2522 = vmatpush1.msra.mxu0 %v2494
    %2523 = vmatprep.subr.mxu0 0.0
    %2524 = vmatpush1.msra.mxu0 %v2495
    %2525 = vmatprep.subr.mxu0 0.0
    %2526 = vmatpush1.msra.mxu0 %v2496
    %2527 = vmatprep.subr.mxu0 0.0
    %2528 = vmatpush1.msra.mxu0 %v2497
    %2529 = vmatprep.subr.mxu0 0.0
    %2530 = vmatpush1.msra.mxu0 %v2498
    %2531 = vmatprep.subr.mxu0 0.0
    %2532 = vmatpush1.msra.mxu0 %v2499
    %2533 = vmatprep.subr.mxu0 0.0
    %2534 = vmatpush1.msra.mxu0 %v2500
    %2535 = vmatprep.subr.mxu0 0.0
    %2536 = vmatpush1.msra.mxu0 %v2501
    %2537 = vmatprep.subr.mxu0 0.0
    %2538 = vmatpush1.msra.mxu0 %v2502
    %2539 = vmatprep.subr.mxu0 0.0
    %2540 = vmatpush1.msra.mxu0 %v2503
    %2541 = vmatprep.subr.mxu0 0.0
    %2542 = vmatpush1.msra.mxu0 %v2504
    %2543 = vmatprep.subr.mxu0 0.0
    %2544 = vmatpush1.msra.mxu0 %v2505
    %2545 = vmatprep.subr.mxu0 0.0
    %2546 = vmatpush1.msra.mxu0 %v2506
    %2547 = vmatprep.subr.mxu0 0.0
    %2548 = vmatpush1.msra.mxu0 0.0
    %2549 = vmatprep.subr.mxu0 0.0
    %2550 = vmatpush1.msra.mxu0 0.0
    %2551 = vmatprep.subr.mxu0 0.0
    %2552 = vmatpush1.msra.mxu0 0.0
    %2553 = vmatprep.subr.mxu0 0.0
    %2554 = vmatpush1.msra.mxu0 0.0
    %2555 = vmatprep.subr.mxu0 0.0
    %2556 = vmatpush1.msra.mxu0 0.0
    %2557 = vmatprep.subr.mxu0 0.0
    %2558 = vmatpush1.msra.mxu0 0.0
    %2559 = vmatprep.subr.mxu0 0.0
    %2560 = vmatpush1.msra.mxu0 0.0
    %2561 = vmatprep.subr.mxu0 0.0
    %2562 = vmatpush1.msra.mxu0 0.0
    %2563 = vmatprep.subr.mxu0 0.0
    %2564 = vmatpush1.msra.mxu0 0.0
    %2565 = vmatprep.subr.mxu0 0.0
    %2566 = vmatpush1.msra.mxu0 0.0
    %2567 = vmatprep.subr.mxu0 0.0
    %2568 = vmatpush1.msra.mxu0 0.0
    %2569 = vmatprep.subr.mxu0 0.0
    %2570 = vmatpush1.msra.mxu0 0.0
    %2571 = vmatprep.mubr.f32.mxu0 %v2342
    %2572 = vmatmul.mubr.f32.gmra.mrb[0].mxu0 %v2336
    %v2573 = vpop.f32.mrb[0].mxu0
    %v2574 = vadd.f32 0.0, %v2573
    %v2575 = vpop.f32.mrb[0].mxu0
    %2576 = vdwg.mxu0
    %2577 = vmatprep.subr.mxu0 0.0
    %2578 = vmatpush1.msra.mxu0 %v2289
    %2579 = vmatprep.subr.mxu0 0.0
    %2580 = vmatpush1.msra.mxu0 %v2290
    %2581 = vmatprep.subr.mxu0 0.0
    %2582 = vmatpush1.msra.mxu0 %v2291
    %2583 = vmatprep.subr.mxu0 0.0
    %2584 = vmatpush1.msra.mxu0 %v2292
    %2585 = vmatprep.subr.mxu0 0.0
    %2586 = vmatpush1.msra.mxu0 %v2293
    %2587 = vmatprep.subr.mxu0 0.0
    %2588 = vmatpush1.msra.mxu0 %v2294
    %2589 = vmatprep.subr.mxu0 0.0
    %2590 = vmatpush1.msra.mxu0 %v2295
    %2591 = vmatprep.subr.mxu0 0.0
    %2592 = vmatpush1.msra.mxu0 %v2296
    %2593 = vmatprep.subr.mxu0 0.0
    %2594 = vmatpush1.msra.mxu0 %v2297
    %2595 = vmatprep.subr.mxu0 0.0
    %2596 = vmatpush1.msra.mxu0 %v2298
    %2597 = vmatprep.subr.mxu0 0.0
    %2598 = vmatpush1.msra.mxu0 %v2299
    %2599 = vmatprep.subr.mxu0 0.0
    %2600 = vmatpush1.msra.mxu0 %v2300
    %2601 = vmatprep.subr.mxu0 0.0
    %2602 = vmatpush1.msra.mxu0 %v2301
    %2603 = vmatprep.subr.mxu0 0.0
    %2604 = vmatpush1.msra.mxu0 %v2302
    %2605 = vmatprep.subr.mxu0 0.0
    %2606 = vmatpush1.msra.mxu0 %v2303
    %2607 = vmatprep.subr.mxu0 0.0
    %2608 = vmatpush1.msra.mxu0 %v2304
    %2609 = vmatprep.subr.mxu0 0.0
    %2610 = vmatpush1.msra.mxu0 %v2305
    %2611 = vmatprep.subr.mxu0 0.0
    %2612 = vmatpush1.msra.mxu0 %v2306
    %2613 = vmatprep.subr.mxu0 0.0
    %2614 = vmatpush1.msra.mxu0 %v2307
    %2615 = vmatprep.subr.mxu0 0.0
    %2616 = vmatpush1.msra.mxu0 %v2308
    %2617 = vmatprep.subr.mxu0 0.0
    %2618 = vmatpush1.msra.mxu0 0.0
    %2619 = vmatprep.subr.mxu0 0.0
    %2620 = vmatpush1.msra.mxu0 0.0
    %2621 = vmatprep.subr.mxu0 0.0
    %2622 = vmatpush1.msra.mxu0 0.0
    %2623 = vmatprep.subr.mxu0 0.0
    %2624 = vmatpush1.msra.mxu0 0.0
    %2625 = vmatprep.subr.mxu0 0.0
    %2626 = vmatpush1.msra.mxu0 0.0
    %2627 = vmatprep.subr.mxu0 0.0
    %2628 = vmatpush1.msra.mxu0 0.0
    %2629 = vmatprep.subr.mxu0 0.0
    %2630 = vmatpush1.msra.mxu0 0.0
    %2631 = vmatprep.subr.mxu0 0.0
    %2632 = vmatpush1.msra.mxu0 0.0
    %2633 = vmatprep.subr.mxu0 0.0
    %2634 = vmatpush1.msra.mxu0 0.0
    %2635 = vmatprep.subr.mxu0 0.0
    %2636 = vmatpush1.msra.mxu0 0.0
    %2637 = vmatprep.subr.mxu0 0.0
    %2638 = vmatpush1.msra.mxu0 0.0
    %2639 = vmatprep.subr.mxu0 0.0
    %2640 = vmatpush1.msra.mxu0 0.0
    %2641 = vmatprep.mubr.f32.mxu0 %v2414
    %2642 = vmatmul.mubr.f32.gmra.mrb[0].mxu0 %v2264
    %v2643 = vpop.f32.mrb[0].mxu0
    %v2644 = vadd.f32 %v2574, %v2643
    %v2645 = vpop.f32.mrb[0].mxu0
    %2646 = vdwg.mxu0
    %s2647 = scalar_lea.vmem %s9, 640
    %v2648 = vld [vmem:[%s2647] sm:$0xff]
    %v2649 = vld [vmem:[%s2647 + $0x8] sm:$0xff]
    %v2650 = vld [vmem:[%s2647 + $0x10] sm:$0xff]
    %v2651 = vld [vmem:[%s2647 + $0x18] sm:$0xff]
    %v2652 = vld [vmem:[%s2647 + $0x20] sm:$0xff]
    %v2653 = vld [vmem:[%s2647 + $0x28] sm:$0xff]
    %v2654 = vld [vmem:[%s2647 + $0x30] sm:$0xff]
    %v2655 = vld [vmem:[%s2647 + $0x38] sm:$0xff]
    %v2656 = vld [vmem:[%s2647 + $0x40] sm:$0xff]
    %v2657 = vld [vmem:[%s2647 + $0x48] sm:$0xff]
    %v2658 = vld [vmem:[%s2647 + $0x50] sm:$0xff]
    %v2659 = vld [vmem:[%s2647 + $0x58] sm:$0xff]
    %v2660 = vld [vmem:[%s2647 + $0x60] sm:$0xff]
    %v2661 = vld [vmem:[%s2647 + $0x68] sm:$0xff]
    %v2662 = vld [vmem:[%s2647 + $0x70] sm:$0xff]
    %v2663 = vld [vmem:[%s2647 + $0x78] sm:$0xff]
    %v2664 = vld [vmem:[%s2647 + $0x80] sm:$0xff]
    %v2665 = vld [vmem:[%s2647 + $0x88] sm:$0xff]
    %v2666 = vld [vmem:[%s2647 + $0x90] sm:$0xff]
    %v2667 = vld [vmem:[%s2647 + $0x98] sm:$0xff]
    %v2668 = vrot.slane %v2264, 2
    %v2669 = vrot.slane %v2266, 2
    %v2670 = vsel %vm605, %v2668, %v2669
    %v2671 = vrot.slane %v2265, 2
    %v2672 = vrot.slane %v2267, 2
    %v2673 = vsel %vm605, %v2671, %v2672
    %v2675 = vsel %vm2341, %v2673, 0
    %2677 = vmatprep.subr.mxu0 0.0
    %2678 = vmatpush1.msra.mxu0 %v2648
    %2679 = vmatprep.subr.mxu0 0.0
    %2680 = vmatpush1.msra.mxu0 %v2649
    %2681 = vmatprep.subr.mxu0 0.0
    %2682 = vmatpush1.msra.mxu0 %v2650
    %2683 = vmatprep.subr.mxu0 0.0
    %2684 = vmatpush1.msra.mxu0 %v2651
    %2685 = vmatprep.subr.mxu0 0.0
    %2686 = vmatpush1.msra.mxu0 %v2652
    %2687 = vmatprep.subr.mxu0 0.0
    %2688 = vmatpush1.msra.mxu0 %v2653
    %2689 = vmatprep.subr.mxu0 0.0
    %2690 = vmatpush1.msra.mxu0 %v2654
    %2691 = vmatprep.subr.mxu0 0.0
    %2692 = vmatpush1.msra.mxu0 %v2655
    %2693 = vmatprep.subr.mxu0 0.0
    %2694 = vmatpush1.msra.mxu0 %v2656
    %2695 = vmatprep.subr.mxu0 0.0
    %2696 = vmatpush1.msra.mxu0 %v2657
    %2697 = vmatprep.subr.mxu0 0.0
    %2698 = vmatpush1.msra.mxu0 %v2658
    %2699 = vmatprep.subr.mxu0 0.0
    %2700 = vmatpush1.msra.mxu0 %v2659
    %2701 = vmatprep.subr.mxu0 0.0
    %2702 = vmatpush1.msra.mxu0 %v2660
    %2703 = vmatprep.subr.mxu0 0.0
    %2704 = vmatpush1.msra.mxu0 %v2661
    %2705 = vmatprep.subr.mxu0 0.0
    %2706 = vmatpush1.msra.mxu0 %v2662
    %2707 = vmatprep.subr.mxu0 0.0
    %2708 = vmatpush1.msra.mxu0 %v2663
    %2709 = vmatprep.subr.mxu0 0.0
    %2710 = vmatpush1.msra.mxu0 %v2664
    %2711 = vmatprep.subr.mxu0 0.0
    %2712 = vmatpush1.msra.mxu0 %v2665
    %2713 = vmatprep.subr.mxu0 0.0
    %2714 = vmatpush1.msra.mxu0 %v2666
    %2715 = vmatprep.subr.mxu0 0.0
    %2716 = vmatpush1.msra.mxu0 %v2667
    %2717 = vmatprep.subr.mxu0 0.0
    %2718 = vmatpush1.msra.mxu0 0.0
    %2719 = vmatprep.subr.mxu0 0.0
    %2720 = vmatpush1.msra.mxu0 0.0
    %2721 = vmatprep.subr.mxu0 0.0
    %2722 = vmatpush1.msra.mxu0 0.0
    %2723 = vmatprep.subr.mxu0 0.0
    %2724 = vmatpush1.msra.mxu0 0.0
    %2725 = vmatprep.subr.mxu0 0.0
    %2726 = vmatpush1.msra.mxu0 0.0
    %2727 = vmatprep.subr.mxu0 0.0
    %2728 = vmatpush1.msra.mxu0 0.0
    %2729 = vmatprep.subr.mxu0 0.0
    %2730 = vmatpush1.msra.mxu0 0.0
    %2731 = vmatprep.subr.mxu0 0.0
    %2732 = vmatpush1.msra.mxu0 0.0
    %2733 = vmatprep.subr.mxu0 0.0
    %2734 = vmatpush1.msra.mxu0 0.0
    %2735 = vmatprep.subr.mxu0 0.0
    %2736 = vmatpush1.msra.mxu0 0.0
    %2737 = vmatprep.subr.mxu0 0.0
    %2738 = vmatpush1.msra.mxu0 0.0
    %2739 = vmatprep.subr.mxu0 0.0
    %2740 = vmatpush1.msra.mxu0 0.0
    %2741 = vmatprep.mubr.f32.mxu0 %v2675
    %2742 = vmatmul.mubr.f32.gmra.mrb[0].mxu0 %v2670
    %v2743 = vpop.f32.mrb[0].mxu0
    %v2744 = vadd.f32 0.0, %v2743
    %v2745 = vpop.f32.mrb[0].mxu0
    %2746 = vdwg.mxu0
    %v2747 = vadd.f32 %v2483, %v2744
    %s2748 = scalar_lea.vmem %s9, 800
    %v2749 = vld [vmem:[%s2748] sm:$0xff]
    %v2750 = vld [vmem:[%s2748 + $0x8] sm:$0xff]
    %v2751 = vld [vmem:[%s2748 + $0x10] sm:$0xff]
    %v2752 = vld [vmem:[%s2748 + $0x18] sm:$0xff]
    %v2753 = vld [vmem:[%s2748 + $0x20] sm:$0xff]
    %v2754 = vld [vmem:[%s2748 + $0x28] sm:$0xff]
    %v2755 = vld [vmem:[%s2748 + $0x30] sm:$0xff]
    %v2756 = vld [vmem:[%s2748 + $0x38] sm:$0xff]
    %v2757 = vld [vmem:[%s2748 + $0x40] sm:$0xff]
    %v2758 = vld [vmem:[%s2748 + $0x48] sm:$0xff]
    %v2759 = vld [vmem:[%s2748 + $0x50] sm:$0xff]
    %v2760 = vld [vmem:[%s2748 + $0x58] sm:$0xff]
    %v2761 = vld [vmem:[%s2748 + $0x60] sm:$0xff]
    %v2762 = vld [vmem:[%s2748 + $0x68] sm:$0xff]
    %v2763 = vld [vmem:[%s2748 + $0x70] sm:$0xff]
    %v2764 = vld [vmem:[%s2748 + $0x78] sm:$0xff]
    %v2765 = vld [vmem:[%s2748 + $0x80] sm:$0xff]
    %v2766 = vld [vmem:[%s2748 + $0x88] sm:$0xff]
    %v2767 = vld [vmem:[%s2748 + $0x90] sm:$0xff]
    %v2768 = vld [vmem:[%s2748 + $0x98] sm:$0xff]
    %2769 = vmatprep.subr.mxu0 0.0
    %2770 = vmatpush1.msra.mxu0 %v2749
    %2771 = vmatprep.subr.mxu0 0.0
    %2772 = vmatpush1.msra.mxu0 %v2750
    %2773 = vmatprep.subr.mxu0 0.0
    %2774 = vmatpush1.msra.mxu0 %v2751
    %2775 = vmatprep.subr.mxu0 0.0
    %2776 = vmatpush1.msra.mxu0 %v2752
    %2777 = vmatprep.subr.mxu0 0.0
    %2778 = vmatpush1.msra.mxu0 %v2753
    %2779 = vmatprep.subr.mxu0 0.0
    %2780 = vmatpush1.msra.mxu0 %v2754
    %2781 = vmatprep.subr.mxu0 0.0
    %2782 = vmatpush1.msra.mxu0 %v2755
    %2783 = vmatprep.subr.mxu0 0.0
    %2784 = vmatpush1.msra.mxu0 %v2756
    %2785 = vmatprep.subr.mxu0 0.0
    %2786 = vmatpush1.msra.mxu0 %v2757
    %2787 = vmatprep.subr.mxu0 0.0
    %2788 = vmatpush1.msra.mxu0 %v2758
    %2789 = vmatprep.subr.mxu0 0.0
    %2790 = vmatpush1.msra.mxu0 %v2759
    %2791 = vmatprep.subr.mxu0 0.0
    %2792 = vmatpush1.msra.mxu0 %v2760
    %2793 = vmatprep.subr.mxu0 0.0
    %2794 = vmatpush1.msra.mxu0 %v2761
    %2795 = vmatprep.subr.mxu0 0.0
    %2796 = vmatpush1.msra.mxu0 %v2762
    %2797 = vmatprep.subr.mxu0 0.0
    %2798 = vmatpush1.msra.mxu0 %v2763
    %2799 = vmatprep.subr.mxu0 0.0
    %2800 = vmatpush1.msra.mxu0 %v2764
    %2801 = vmatprep.subr.mxu0 0.0
    %2802 = vmatpush1.msra.mxu0 %v2765
    %2803 = vmatprep.subr.mxu0 0.0
    %2804 = vmatpush1.msra.mxu0 %v2766
    %2805 = vmatprep.subr.mxu0 0.0
    %2806 = vmatpush1.msra.mxu0 %v2767
    %2807 = vmatprep.subr.mxu0 0.0
    %2808 = vmatpush1.msra.mxu0 %v2768
    %2809 = vmatprep.subr.mxu0 0.0
    %2810 = vmatpush1.msra.mxu0 0.0
    %2811 = vmatprep.subr.mxu0 0.0
    %2812 = vmatpush1.msra.mxu0 0.0
    %2813 = vmatprep.subr.mxu0 0.0
    %2814 = vmatpush1.msra.mxu0 0.0
    %2815 = vmatprep.subr.mxu0 0.0
    %2816 = vmatpush1.msra.mxu0 0.0
    %2817 = vmatprep.subr.mxu0 0.0
    %2818 = vmatpush1.msra.mxu0 0.0
    %2819 = vmatprep.subr.mxu0 0.0
    %2820 = vmatpush1.msra.mxu0 0.0
    %2821 = vmatprep.subr.mxu0 0.0
    %2822 = vmatpush1.msra.mxu0 0.0
    %2823 = vmatprep.subr.mxu0 0.0
    %2824 = vmatpush1.msra.mxu0 0.0
    %2825 = vmatprep.subr.mxu0 0.0
    %2826 = vmatpush1.msra.mxu0 0.0
    %2827 = vmatprep.subr.mxu0 0.0
    %2828 = vmatpush1.msra.mxu0 0.0
    %2829 = vmatprep.subr.mxu0 0.0
    %2830 = vmatpush1.msra.mxu0 0.0
    %2831 = vmatprep.subr.mxu0 0.0
    %2832 = vmatpush1.msra.mxu0 0.0
    %2833 = vmatprep.mubr.f32.mxu0 %v2675
    %2834 = vmatmul.mubr.f32.gmra.mrb[0].mxu0 %v2670
    %v2835 = vpop.f32.mrb[0].mxu0
    %v2836 = vadd.f32 0.0, %v2835
    %v2837 = vpop.f32.mrb[0].mxu0
    %2838 = vdwg.mxu0
    %v2839 = vadd.f32 %v2644, %v2836
    %v2840 = vmax.f32 %v2747, %v2839
    %v2841 = vld [vmem:[%s10] sm:$0x1]
    %v2843 = vlaneseq
    %v2844 = vshrl.u32 %v2843, 7
    %v2845 = vsub.s32 0, %v2844
    %v2846 = vrot.slane %v2841, %v2845
    %v2848 = vadd.f32 %v2840, %v2846
    %v2849 = vmax.f32 %v2848, 0.0
    %v2850 = vld [vmem:[%s11] sm:$0x3]
    %vm2851 = vcmask 64512
    %v2853 = vsel %vm2851, %v2850, 0
    %2855 = vmatprep.subr.mxu0 0.0
    %2856 = vmatpush1.msra.mxu0 %v2849
    %2857 = vmatprep.subr.mxu0 0.0
    %2858 = vmatpush1.msra.mxu0 0.0
    %2859 = vmatprep.subr.mxu0 0.0
    %2860 = vmatpush1.msra.mxu0 0.0
    %2861 = vmatprep.subr.mxu0 0.0
    %2862 = vmatpush1.msra.mxu0 0.0
    %2863 = vmatprep.subr.mxu0 0.0
    %2864 = vmatpush1.msra.mxu0 0.0
    %2865 = vmatprep.subr.mxu0 0.0
    %2866 = vmatpush1.msra.mxu0 0.0
    %2867 = vmatprep.subr.mxu0 0.0
    %2868 = vmatpush1.msra.mxu0 0.0
    %2869 = vmatprep.subr.mxu0 0.0
    %2870 = vmatpush1.msra.mxu0 0.0
    %2871 = vmatprep.subr.mxu0 0.0
    %2872 = vmatpush1.msra.mxu0 0.0
    %2873 = vmatprep.subr.mxu0 0.0
    %2874 = vmatpush1.msra.mxu0 0.0
    %2875 = vmatprep.subr.mxu0 0.0
    %2876 = vmatpush1.msra.mxu0 0.0
    %2877 = vmatprep.subr.mxu0 0.0
    %2878 = vmatpush1.msra.mxu0 0.0
    %2879 = vmatprep.subr.mxu0 0.0
    %2880 = vmatpush1.msra.mxu0 0.0
    %2881 = vmatprep.subr.mxu0 0.0
    %2882 = vmatpush1.msra.mxu0 0.0
    %2883 = vmatprep.subr.mxu0 0.0
    %2884 = vmatpush1.msra.mxu0 0.0
    %2885 = vmatprep.subr.mxu0 0.0
    %2886 = vmatpush1.msra.mxu0 0.0
    %2887 = vmatprep.subr.mxu0 0.0
    %2888 = vmatpush1.msra.mxu0 0.0
    %2889 = vmatprep.subr.mxu0 0.0
    %2890 = vmatpush1.msra.mxu0 0.0
    %2891 = vmatprep.subr.mxu0 0.0
    %2892 = vmatpush1.msra.mxu0 0.0
    %2893 = vmatprep.subr.mxu0 0.0
    %2894 = vmatpush1.msra.mxu0 0.0
    %2895 = vmatprep.subr.mxu0 0.0
    %2896 = vmatpush1.msra.mxu0 0.0
    %2897 = vmatprep.subr.mxu0 0.0
    %2898 = vmatpush1.msra.mxu0 0.0
    %2899 = vmatprep.subr.mxu0 0.0
    %2900 = vmatpush1.msra.mxu0 0.0
    %2901 = vmatprep.subr.mxu0 0.0
    %2902 = vmatpush1.msra.mxu0 0.0
    %2903 = vmatprep.subr.mxu0 0.0
    %2904 = vmatpush1.msra.mxu0 0.0
    %2905 = vmatprep.subr.mxu0 0.0
    %2906 = vmatpush1.msra.mxu0 0.0
    %2907 = vmatprep.subr.mxu0 0.0
    %2908 = vmatpush1.msra.mxu0 0.0
    %2909 = vmatprep.subr.mxu0 0.0
    %2910 = vmatpush1.msra.mxu0 0.0
    %2911 = vmatprep.subr.mxu0 0.0
    %2912 = vmatpush1.msra.mxu0 0.0
    %2913 = vmatprep.subr.mxu0 0.0
    %2914 = vmatpush1.msra.mxu0 0.0
    %2915 = vmatprep.subr.mxu0 0.0
    %2916 = vmatpush1.msra.mxu0 0.0
    %2917 = vmatprep.subr.mxu0 0.0
    %2918 = vmatpush1.msra.mxu0 0.0
    %2919 = vmatprep.mubr.f32.mxu0 0.0
    %2920 = vmatmul.mubr.f32.gmra.mrb[0].mxu0 %v2853
    %v2921 = vpop.f32.mrb[0].mxu0
    %v2922 = vadd.f32 0.0, %v2921
    %v2923 = vpop.f32.mrb[0].mxu0
    %2924 = vdwg.mxu0
    %v2925 = vld [vmem:[%s12] sm:$0x3]
    %v2927 = vsel %vm2851, %v2925, 0
    %2929 = vmatprep.subr.mxu0 0.0
    %2930 = vmatpush1.msra.mxu0 %v2849
    %2931 = vmatprep.subr.mxu0 0.0
    %2932 = vmatpush1.msra.mxu0 0.0
    %2933 = vmatprep.subr.mxu0 0.0
    %2934 = vmatpush1.msra.mxu0 0.0
    %2935 = vmatprep.subr.mxu0 0.0
    %2936 = vmatpush1.msra.mxu0 0.0
    %2937 = vmatprep.subr.mxu0 0.0
    %2938 = vmatpush1.msra.mxu0 0.0
    %2939 = vmatprep.subr.mxu0 0.0
    %2940 = vmatpush1.msra.mxu0 0.0
    %2941 = vmatprep.subr.mxu0 0.0
    %2942 = vmatpush1.msra.mxu0 0.0
    %2943 = vmatprep.subr.mxu0 0.0
    %2944 = vmatpush1.msra.mxu0 0.0
    %2945 = vmatprep.subr.mxu0 0.0
    %2946 = vmatpush1.msra.mxu0 0.0
    %2947 = vmatprep.subr.mxu0 0.0
    %2948 = vmatpush1.msra.mxu0 0.0
    %2949 = vmatprep.subr.mxu0 0.0
    %2950 = vmatpush1.msra.mxu0 0.0
    %2951 = vmatprep.subr.mxu0 0.0
    %2952 = vmatpush1.msra.mxu0 0.0
    %2953 = vmatprep.subr.mxu0 0.0
    %2954 = vmatpush1.msra.mxu0 0.0
    %2955 = vmatprep.subr.mxu0 0.0
    %2956 = vmatpush1.msra.mxu0 0.0
    %2957 = vmatprep.subr.mxu0 0.0
    %2958 = vmatpush1.msra.mxu0 0.0
    %2959 = vmatprep.subr.mxu0 0.0
    %2960 = vmatpush1.msra.mxu0 0.0
    %2961 = vmatprep.subr.mxu0 0.0
    %2962 = vmatpush1.msra.mxu0 0.0
    %2963 = vmatprep.subr.mxu0 0.0
    %2964 = vmatpush1.msra.mxu0 0.0
    %2965 = vmatprep.subr.mxu0 0.0
    %2966 = vmatpush1.msra.mxu0 0.0
    %2967 = vmatprep.subr.mxu0 0.0
    %2968 = vmatpush1.msra.mxu0 0.0
    %2969 = vmatprep.subr.mxu0 0.0
    %2970 = vmatpush1.msra.mxu0 0.0
    %2971 = vmatprep.subr.mxu0 0.0
    %2972 = vmatpush1.msra.mxu0 0.0
    %2973 = vmatprep.subr.mxu0 0.0
    %2974 = vmatpush1.msra.mxu0 0.0
    %2975 = vmatprep.subr.mxu0 0.0
    %2976 = vmatpush1.msra.mxu0 0.0
    %2977 = vmatprep.subr.mxu0 0.0
    %2978 = vmatpush1.msra.mxu0 0.0
    %2979 = vmatprep.subr.mxu0 0.0
    %2980 = vmatpush1.msra.mxu0 0.0
    %2981 = vmatprep.subr.mxu0 0.0
    %2982 = vmatpush1.msra.mxu0 0.0
    %2983 = vmatprep.subr.mxu0 0.0
    %2984 = vmatpush1.msra.mxu0 0.0
    %2985 = vmatprep.subr.mxu0 0.0
    %2986 = vmatpush1.msra.mxu0 0.0
    %2987 = vmatprep.subr.mxu0 0.0
    %2988 = vmatpush1.msra.mxu0 0.0
    %2989 = vmatprep.subr.mxu0 0.0
    %2990 = vmatpush1.msra.mxu0 0.0
    %2991 = vmatprep.subr.mxu0 0.0
    %2992 = vmatpush1.msra.mxu0 0.0
    %2993 = vmatprep.mubr.f32.mxu0 0.0
    %2994 = vmatmul.mubr.f32.gmra.mrb[0].mxu0 %v2927
    %v2995 = vpop.f32.mrb[0].mxu0
    %v2996 = vadd.f32 0.0, %v2995
    %v2997 = vpop.f32.mrb[0].mxu0
    %2998 = vdwg.mxu0
    %v2999 = vmax.f32 %v2922, %v2996
    %v3000 = vld [vmem:[%s13] sm:$0xff]
    %v3001 = vld [vmem:[%s13 + $0x8] sm:$0xff]
    %v3002 = vld [vmem:[%s14] sm:$0x1]
    %v3004 = vlaneseq
    %v3005 = vshrl.u32 %v3004, 7
    %v3006 = vsub.s32 0, %v3005
    %v3007 = vrot.slane %v3002, %v3006
    %vm3009 = vcmask 130048
    %v3011 = vsel %vm3009, %v2999, 0
    %3013 = vmatprep.subr.mxu0 0.0
    %3014 = vmatpush1.msra.mxu0 %v3000
    %3015 = vmatprep.subr.mxu0 0.0
    %3016 = vmatpush1.msra.mxu0 %v3001
    %3017 = vmatprep.subr.mxu0 0.0
    %3018 = vmatpush1.msra.mxu0 0.0
    %3019 = vmatprep.subr.mxu0 0.0
    %3020 = vmatpush1.msra.mxu0 0.0
    %3021 = vmatprep.subr.mxu0 0.0
    %3022 = vmatpush1.msra.mxu0 0.0
    %3023 = vmatprep.subr.mxu0 0.0
    %3024 = vmatpush1.msra.mxu0 0.0
    %3025 = vmatprep.subr.mxu0 0.0
    %3026 = vmatpush1.msra.mxu0 0.0
    %3027 = vmatprep.subr.mxu0 0.0
    %3028 = vmatpush1.msra.mxu0 0.0
    %3029 = vmatprep.subr.mxu0 0.0
    %3030 = vmatpush1.msra.mxu0 0.0
    %3031 = vmatprep.subr.mxu0 0.0
    %3032 = vmatpush1.msra.mxu0 0.0
    %3033 = vmatprep.subr.mxu0 0.0
    %3034 = vmatpush1.msra.mxu0 0.0
    %3035 = vmatprep.subr.mxu0 0.0
    %3036 = vmatpush1.msra.mxu0 0.0
    %3037 = vmatprep.subr.mxu0 0.0
    %3038 = vmatpush1.msra.mxu0 0.0
    %3039 = vmatprep.subr.mxu0 0.0
    %3040 = vmatpush1.msra.mxu0 0.0
    %3041 = vmatprep.subr.mxu0 0.0
    %3042 = vmatpush1.msra.mxu0 0.0
    %3043 = vmatprep.subr.mxu0 0.0
    %3044 = vmatpush1.msra.mxu0 0.0
    %3045 = vmatprep.subr.mxu0 0.0
    %3046 = vmatpush1.msra.mxu0 0.0
    %3047 = vmatprep.subr.mxu0 0.0
    %3048 = vmatpush1.msra.mxu0 0.0
    %3049 = vmatprep.subr.mxu0 0.0
    %3050 = vmatpush1.msra.mxu0 0.0
    %3051 = vmatprep.subr.mxu0 0.0
    %3052 = vmatpush1.msra.mxu0 0.0
    %3053 = vmatprep.subr.mxu0 0.0
    %3054 = vmatpush1.msra.mxu0 0.0
    %3055 = vmatprep.subr.mxu0 0.0
    %3056 = vmatpush1.msra.mxu0 0.0
    %3057 = vmatprep.subr.mxu0 0.0
    %3058 = vmatpush1.msra.mxu0 0.0
    %3059 = vmatprep.subr.mxu0 0.0
    %3060 = vmatpush1.msra.mxu0 0.0
    %3061 = vmatprep.subr.mxu0 0.0
    %3062 = vmatpush1.msra.mxu0 0.0
    %3063 = vmatprep.subr.mxu0 0.0
    %3064 = vmatpush1.msra.mxu0 0.0
    %3065 = vmatprep.subr.mxu0 0.0
    %3066 = vmatpush1.msra.mxu0 0.0
    %3067 = vmatprep.subr.mxu0 0.0
    %3068 = vmatpush1.msra.mxu0 0.0
    %3069 = vmatprep.subr.mxu0 0.0
    %3070 = vmatpush1.msra.mxu0 0.0
    %3071 = vmatprep.subr.mxu0 0.0
    %3072 = vmatpush1.msra.mxu0 0.0
    %3073 = vmatprep.subr.mxu0 0.0
    %3074 = vmatpush1.msra.mxu0 0.0
    %3075 = vmatprep.subr.mxu0 0.0
    %3076 = vmatpush1.msra.mxu0 0.0
    %3077 = vmatprep.mubr.f32.mxu0 0.0
    %3078 = vmatmul.mubr.f32.gmra.mrb[0].mxu0 %v3011
    %v3079 = vpop.f32.mrb[0].mxu0
    %v3080 = vadd.f32 %v3007, %v3079
    %v3081 = vpop.f32.mrb[0].mxu0
    %3082 = vdwg.mxu0
    %vm3083 = vcmask 74752
    %3084 = vst.msk [vmem:[#allocation2] sm:$0x3] %vm3083, %v3080
    // Predicated region
    $region62: #{mnist_cnn_forward.1} parent=1 // pred_check
      _
    $region63: #{mnist_cnn_forward.1} parent=1 // pred_check_branch
      %3086 = sbr.rel (0) target = $region65
    $region64: #{mnist_cnn_forward.1} parent=1 // pred_region
      %s3088 = ssub.s32 32, 32
      %3089 = vsyncadd [#allocation3], %s3088
      %s3091 = sshll.u32 [#allocation2], 4
      %s3092 = int_to_ptr.vmem [resolvable:$true] %s3091
      %3094 = dma.vmem_to_hbm [thread:$0]  %s3092, 32, %s15, [#allocation3]
    $region65: #{mnist_cnn_forward.1} parent=1 // pred_fallthru
      _
    // Predicated region
    $region66: #{mnist_cnn_forward.1} parent=1 // pred_check
      _
    $region67: #{mnist_cnn_forward.1} parent=1 // pred_check_branch
      %3096 = sbr.rel (0) target = $region69
    $region68: #{mnist_cnn_forward.1} parent=1 // pred_region
      %3097 = dma.done [#allocation3], 32
    $region69: #{mnist_cnn_forward.1} parent=1 // pred_fallthru
      _
    %3098 = vsyncpa [#allocation3], 1

</llo_original>
